<compile_context>
chip_gen: v5e
topology: v5e:2x2
jax: 0.10.0
libtpu: 0.0.40
codegen_flags: <defaults>
</compile_context>

<pallas_src>
import jax
import jax.numpy as jnp
from jax.experimental import pallas as pl
from jax.experimental.pallas import tpu as pltpu


# ---------------------------------------------------------------------------
# Fused kernel factory: embedding + n_layers GRU (wavefront) + branch MLPs.
# ---------------------------------------------------------------------------
def make_escort_kernel(T, B, n_layers):
    def kernel(seq_ref, emb_ref, *refs):
        # seq_ref : (T*B, 1) int32 token ids
        # emb_ref : (V, E) bf16 embedding table
        # refs    : per layer [wih (Finp,3Hp) bf16, whh (Hp,3Hp) bf16,
        #                      bias_i (1,3Hp) f32,  b_hn (1,Hp) f32] * n_layers,
        #           then w1cat (Hp,128C) bf16, b1cat (1,128C) f32,
        #                w2bd (128C,64C) bf16, b2cat (1,64C) f32,
        #                w3bd (64C,C) bf16,    b3 (1,C) f32,
        #           out_ref (T,C) f32, last_ref scratch (Tp,Hp) f32
        gru_refs = refs[:4 * n_layers]
        (w1c_ref, b1c_ref, w2bd_ref, b2c_ref, w3bd_ref, b3_ref,
         out_ref, last_ref) = refs[4 * n_layers:]

        V = emb_ref.shape[0]
        Hp = gru_refs[3].shape[1]          # lane-padded hidden / per-gate width (128)

        wih = [gru_refs[4 * l + 0][...] for l in range(n_layers)]
        whh = [gru_refs[4 * l + 1][...] for l in range(n_layers)]
        bias_i = [gru_refs[4 * l + 2][...] for l in range(n_layers)]
        b_hn = [gru_refs[4 * l + 3][...] for l in range(n_layers)]

        # ---- Embedding lookup fused in-kernel as a one-hot MXU matmul ------------
        seq = seq_ref[...]                                                  # (T*B, 1)
        lane = jax.lax.broadcasted_iota(jnp.int32, (T * B, V), 1)
        onehot = jnp.where(seq == lane, 1.0, 0.0).astype(jnp.bfloat16)      # (T*B, V)
        emb = jnp.dot(onehot, emb_ref[...],
                      preferred_element_type=jnp.float32)                   # (T*B, E)

        # ---- Layer-0 input projection hoisted over the whole sequence ------------
        i0 = jnp.dot(emb.astype(jnp.bfloat16), wih[0],
                     preferred_element_type=jnp.float32) + bias_i[0]        # (T*B, 3Hp)

        def gru_cell(gi, h, whh_l, bhn_l):
            # gi / h are lane-padded to Hp; padding lanes stay exactly zero.
            hm = jnp.dot(h.astype(jnp.bfloat16), whh_l,
                         preferred_element_type=jnp.float32)                # (B, 3Hp)
            r = jax.nn.sigmoid(gi[:, :Hp] + hm[:, :Hp])
            z = jax.nn.sigmoid(gi[:, Hp:2 * Hp] + hm[:, Hp:2 * Hp])
            n = jnp.tanh(gi[:, 2 * Hp:] + r * (hm[:, 2 * Hp:] + bhn_l))
            return (1.0 - z) * n + z * h

        last_ref[...] = jnp.zeros_like(last_ref)      # padded rows T..Tp-1 stay zero

        hs = [jnp.zeros((B, Hp), jnp.float32) for _ in range(n_layers)]
        for t in range(T):                            # static unroll: T small & static
            x_t = None
            for l in range(n_layers):
                if l == 0:
                    gi = i0[t * B:(t + 1) * B, :]
                else:
                    # Per-step input projection -> wavefront: layer l step t depends
                    # only on layer l-1 step t and its own step t-1.
                    gi = jnp.dot(x_t.astype(jnp.bfloat16), wih[l],
                                 preferred_element_type=jnp.float32) + bias_i[l]
                hs[l] = gru_cell(gi, hs[l], whh[l], b_hn[l])
                x_t = hs[l]
            # gru_out[:, -1, :] slab: batch row B-1 of the top layer, one row per step.
            last_ref[pl.ds(t, 1), :] = hs[n_layers - 1][B - 1:B, :]

        # ---- Branch MLPs fused (dense1 concat, dense2/3 block-diagonal) ----------
        last = last_ref[...]                                                # (Tp, Hp)
        h1 = jnp.dot(last.astype(jnp.bfloat16), w1c_ref[...],
                     preferred_element_type=jnp.float32) + b1c_ref[...]
        h2 = jnp.dot(h1.astype(jnp.bfloat16), w2bd_ref[...],
                     preferred_element_type=jnp.float32) + b2c_ref[...]
        logits = jnp.dot(h2.astype(jnp.bfloat16), w3bd_ref[...],
                         preferred_element_type=jnp.float32) + b3_ref[...]
        out_ref[...] = jax.nn.sigmoid(logits[:T, :])

    return kernel


# ---------------------------------------------------------------------------
# Parameter init (deterministic; shapes/distributions follow the PyTorch module,
# pre-packed into the fused-kernel layout: lane-padded gates, bf16 MXU weights).
# ---------------------------------------------------------------------------
def init_params(key, vocab_size, embedd_size, gru_hidden_size, n_layers, num_classes):
    E, H, C = embedd_size, gru_hidden_size, num_classes
    Hp = ((H + 127) // 128) * 128            # lane-aligned per-gate / hidden width
    keys = iter(jax.random.split(key, 64))

    def uni(k, shape, bound):
        return jax.random.uniform(k, shape, jnp.float32, -bound, bound)

    params = {}
    # nn.Embedding default: N(0, 1); stored bf16 (MXU operand).
    params["embedding"] = jax.random.normal(
        next(keys), (vocab_size, E), jnp.float32).astype(jnp.bfloat16)

    # nn.GRU default: U(+/-1/sqrt(H)); gate order [r, z, n]; weights pre-transposed,
    # each gate block padded to Hp lanes, biases pre-summed where legal (b_hn must
    # stay inside r*(...)).
    gbound = 1.0 / float(H) ** 0.5
    gru_layers = []
    for layer in range(n_layers):
        fin = E if layer == 0 else H
        fin_pad = E if layer == 0 else Hp
        w_ih = uni(next(keys), (fin, 3, H), gbound)        # (Fin, gate, H)
        w_hh = uni(next(keys), (H, 3, H), gbound)
        b_ih = uni(next(keys), (3, H), gbound)
        b_hh = uni(next(keys), (3, H), gbound)

        wih_p = jnp.zeros((fin_pad, 3 * Hp), jnp.float32)
        whh_p = jnp.zeros((Hp, 3 * Hp), jnp.float32)
        bias_p = jnp.zeros((1, 3 * Hp), jnp.float32)
        bias_full = jnp.stack([b_ih[0] + b_hh[0], b_ih[1] + b_hh[1], b_ih[2]])  # (3, H)
        for g in range(3):
            wih_p = wih_p.at[:fin, g * Hp:g * Hp + H].set(w_ih[:, g, :])
            whh_p = whh_p.at[:H, g * Hp:g * Hp + H].set(w_hh[:, g, :])
            bias_p = bias_p.at[0, g * Hp:g * Hp + H].set(bias_full[g])
        bhn_p = jnp.zeros((1, Hp), jnp.float32).at[0, :H].set(b_hh[2])
        gru_layers.append((wih_p.astype(jnp.bfloat16), whh_p.astype(jnp.bfloat16),
                           bias_p, bhn_p))
    params["gru"] = gru_layers

    # Branch(H, 128, 64, 0.2, 1) x C. nn.Linear default: U(+/-1/sqrt(fan_in)).
    bnd1, bnd2, bnd3 = 1.0 / float(H) ** 0.5, 1.0 / 128.0 ** 0.5, 1.0 / 64.0 ** 0.5
    w1 = uni(next(keys), (C, H, 128), bnd1)
    w1cat = jnp.zeros((Hp, 128 * C), jnp.float32)
    for c in range(C):
        w1cat = w1cat.at[:H, 128 * c:128 * (c + 1)].set(w1[c])
    params["w1cat"] = w1cat.astype(jnp.bfloat16)
    params["b1cat"] = uni(next(keys), (C, 128), bnd1).reshape(1, 128 * C)

    w2 = uni(next(keys), (C, 128, 64), bnd2)
    w2bd = jnp.zeros((128 * C, 64 * C), jnp.float32)          # block-diagonal dense2
    for c in range(C):
        w2bd = w2bd.at[128 * c:128 * (c + 1), 64 * c:64 * (c + 1)].set(w2[c])
    params["w2bd"] = w2bd.astype(jnp.bfloat16)
    params["b2cat"] = uni(next(keys), (C, 64), bnd2).reshape(1, 64 * C)

    w3 = uni(next(keys), (C, 64), bnd3)                       # each branch dense3: (1, 64)
    w3bd = jnp.zeros((64 * C, C), jnp.float32)                # block-diagonal dense3
    for c in range(C):
        w3bd = w3bd.at[64 * c:64 * (c + 1), c].set(w3[c])
    params["w3bd"] = w3bd.astype(jnp.bfloat16)
    params["b3"] = uni(next(keys), (1, C), bnd3)
    return params


# ---------------------------------------------------------------------------
# Full forward pass (Escort.forward semantics) — ONE pallas_call, embedding included.
# ---------------------------------------------------------------------------
@jax.jit
def escort_forward(params, sequence):
    T, B = sequence.shape                     # (seq_len, batch) -- seq-major like nn.GRU
    C = params["b3"].shape[1]
    n_layers = len(params["gru"])
    Hp = params["gru"][0][3].shape[1]
    Tp = max(8, ((T + 7) // 8) * 8)           # sublane-padded last-slab scratch rows

    # Token ids, flattened outside (contiguous reshape = free); gathered in-kernel.
    seq2 = sequence.reshape(T * B, 1).astype(jnp.int32)

    flat_gru = [w for layer in params["gru"] for w in layer]
    branch_args = [params["w1cat"], params["b1cat"], params["w2bd"],
                   params["b2cat"], params["w3bd"], params["b3"]]
    n_inputs = 2 + len(flat_gru) + len(branch_args)

    # Whole model (< 1 MiB) is VMEM-resident; no grid needed.
    # TODO(synk): for batched requests on v7x add a leading "parallel" grid axis over
    # independent sequences so the second TensorCore is used.
    return pl.pallas_call(
        make_escort_kernel(T, B, n_layers),
        out_shape=jax.ShapeDtypeStruct((T, C), jnp.float32),
        in_specs=[pl.BlockSpec(memory_space=pltpu.MemorySpace.VMEM)] * n_inputs,
        out_specs=pl.BlockSpec(memory_space=pltpu.MemorySpace.VMEM),
        scratch_shapes=[pltpu.VMEM((Tp, Hp), jnp.float32)],
    )(seq2, params["embedding"], *flat_gru, *branch_args)


if __name__ == "__main__":
    vocab_size, embedd_size, gru_hidden_size, n_layers, num_classes = 50, 32, 32, 2, 5
    S0, S1 = 4, 8  # sequence tensor shape fed to Escort.forward

    key = jax.random.PRNGKey(0)
    kparam, kseq = jax.random.split(key)
    params = init_params(kparam, vocab_size, embedd_size, gru_hidden_size,
                         n_layers, num_classes)
    sequence = jax.random.randint(kseq, (S0, S1), 0, vocab_size, dtype=jnp.int32)

    out = escort_forward(params, sequence)
    out = jax.block_until_ready(out)
    assert out.shape == (S0, num_classes), out.shape
    assert bool(jnp.all(jnp.isfinite(out)))
    assert bool(jnp.all((out >= 0.0) & (out <= 1.0)))
    print("KERNEL_OK")
</pallas_src>

<mosaic_0001>
module attributes {stable_mosaic.version = 11 : i64} {
  func.func @kernel(%arg0: memref<32x1xi32, #tpu.memory_space<vmem>>, %arg1: memref<50x32xbf16, #tpu.memory_space<vmem>>, %arg2: memref<32x384xbf16, #tpu.memory_space<vmem>>, %arg3: memref<128x384xbf16, #tpu.memory_space<vmem>>, %arg4: memref<1x384xf32, #tpu.memory_space<vmem>>, %arg5: memref<1x128xf32, #tpu.memory_space<vmem>>, %arg6: memref<128x384xbf16, #tpu.memory_space<vmem>>, %arg7: memref<128x384xbf16, #tpu.memory_space<vmem>>, %arg8: memref<1x384xf32, #tpu.memory_space<vmem>>, %arg9: memref<1x128xf32, #tpu.memory_space<vmem>>, %arg10: memref<128x640xbf16, #tpu.memory_space<vmem>>, %arg11: memref<1x640xf32, #tpu.memory_space<vmem>>, %arg12: memref<640x320xbf16, #tpu.memory_space<vmem>>, %arg13: memref<1x320xf32, #tpu.memory_space<vmem>>, %arg14: memref<320x5xbf16, #tpu.memory_space<vmem>>, %arg15: memref<1x5xf32, #tpu.memory_space<vmem>>, %arg16: memref<4x5xf32, #tpu.memory_space<vmem>>, %arg17: memref<8x128xf32, #tpu.memory_space<vmem>>) attributes {dimension_semantics = [], scalar_prefetch = 0 : i64, scratch_operands = 1 : i64, tpu.core_type = #tpu.core_type<tc>} {
    %c0 = arith.constant 0 : index
    %c0_0 = arith.constant 0 : index
    %0 = vector.load %arg2[%c0, %c0_0] : memref<32x384xbf16, #tpu.memory_space<vmem>>, vector<32x384xbf16>
    %c0_1 = arith.constant 0 : index
    %c0_2 = arith.constant 0 : index
    %1 = vector.load %arg6[%c0_1, %c0_2] : memref<128x384xbf16, #tpu.memory_space<vmem>>, vector<128x384xbf16>
    %c0_3 = arith.constant 0 : index
    %c0_4 = arith.constant 0 : index
    %2 = vector.load %arg3[%c0_3, %c0_4] : memref<128x384xbf16, #tpu.memory_space<vmem>>, vector<128x384xbf16>
    %c0_5 = arith.constant 0 : index
    %c0_6 = arith.constant 0 : index
    %3 = vector.load %arg7[%c0_5, %c0_6] : memref<128x384xbf16, #tpu.memory_space<vmem>>, vector<128x384xbf16>
    %c0_7 = arith.constant 0 : index
    %c0_8 = arith.constant 0 : index
    %4 = vector.load %arg4[%c0_7, %c0_8] : memref<1x384xf32, #tpu.memory_space<vmem>>, vector<1x384xf32>
    %c0_9 = arith.constant 0 : index
    %c0_10 = arith.constant 0 : index
    %5 = vector.load %arg8[%c0_9, %c0_10] : memref<1x384xf32, #tpu.memory_space<vmem>>, vector<1x384xf32>
    %c0_11 = arith.constant 0 : index
    %c0_12 = arith.constant 0 : index
    %6 = vector.load %arg5[%c0_11, %c0_12] : memref<1x128xf32, #tpu.memory_space<vmem>>, vector<1x128xf32>
    %c0_13 = arith.constant 0 : index
    %c0_14 = arith.constant 0 : index
    %7 = vector.load %arg9[%c0_13, %c0_14] : memref<1x128xf32, #tpu.memory_space<vmem>>, vector<1x128xf32>
    %c0_15 = arith.constant 0 : index
    %c0_16 = arith.constant 0 : index
    %8 = vector.load %arg0[%c0_15, %c0_16] : memref<32x1xi32, #tpu.memory_space<vmem>>, vector<32x1xi32>
    %9 = tpu.iota {dimensions = array<i32: 1>} : vector<32x50xi32>
    %10 = vector.broadcast %8 : vector<32x1xi32> to vector<32x50xi32>
    %11 = arith.cmpi eq, %10, %9 : vector<32x50xi32>
    %cst = arith.constant 1.000000e+00 : f32
    %cst_17 = arith.constant 0.000000e+00 : f32
    %12 = vector.broadcast %cst : f32 to vector<32x50xf32>
    %13 = vector.broadcast %cst_17 : f32 to vector<32x50xf32>
    %14 = arith.select %11, %12, %13 : vector<32x50xi1>, vector<32x50xf32>
    %15 = arith.truncf %14 : vector<32x50xf32> to vector<32x50xbf16>
    %c0_18 = arith.constant 0 : index
    %c0_19 = arith.constant 0 : index
    %16 = vector.load %arg1[%c0_18, %c0_19] : memref<50x32xbf16, #tpu.memory_space<vmem>>, vector<50x32xbf16>
    %cst_20 = arith.constant dense<0.000000e+00> : vector<32x32xf32>
    %17 = tpu.matmul %15, %16, %cst_20 {dimension_numbers = #tpu.dot_dimension_numbers<[1], [0], [0], [1], [0, 0, 1, 1], [], []>} : vector<32x50xbf16>, vector<50x32xbf16>, vector<32x32xf32> -> vector<32x32xf32>
    %18 = arith.truncf %17 : vector<32x32xf32> to vector<32x32xbf16>
    %cst_21 = arith.constant dense<0.000000e+00> : vector<32x384xf32>
    %19 = tpu.matmul %18, %0, %cst_21 {dimension_numbers = #tpu.dot_dimension_numbers<[1], [0], [0], [1], [0, 0, 1, 1], [], []>} : vector<32x32xbf16>, vector<32x384xbf16>, vector<32x384xf32> -> vector<32x384xf32>
    %20 = vector.broadcast %4 : vector<1x384xf32> to vector<32x384xf32>
    %21 = arith.addf %19, %20 : vector<32x384xf32>
    %cst_22 = arith.constant 0.000000e+00 : f32
    %22 = vector.broadcast %cst_22 : f32 to vector<8x128xf32>
    %c0_23 = arith.constant 0 : index
    %c0_24 = arith.constant 0 : index
    %23 = vector.load %arg17[%c0_23, %c0_24] : memref<8x128xf32, #tpu.memory_space<vmem>>, vector<8x128xf32>
    tpu.vector_store %arg17[%c0_23, %c0_24], %22 {strides = array<i32>} : memref<8x128xf32, #tpu.memory_space<vmem>>, vector<8x128xf32>,
    %cst_25 = arith.constant 0.000000e+00 : f32
    %24 = vector.broadcast %cst_25 : f32 to vector<8x128xf32>
    %cst_26 = arith.constant 0.000000e+00 : f32
    %25 = vector.broadcast %cst_26 : f32 to vector<8x128xf32>
    %26 = vector.extract_strided_slice %21 {offsets = [0, 0], sizes = [8, 384], strides = [1, 1]} : vector<32x384xf32> to vector<8x384xf32>
    %27 = arith.truncf %24 : vector<8x128xf32> to vector<8x128xbf16>
    %cst_27 = arith.constant dense<0.000000e+00> : vector<8x384xf32>
    %28 = tpu.matmul %27, %2, %cst_27 {dimension_numbers = #tpu.dot_dimension_numbers<[1], [0], [0], [1], [0, 0, 1, 1], [], []>} : vector<8x128xbf16>, vector<128x384xbf16>, vector<8x384xf32> -> vector<8x384xf32>
    %29 = vector.extract_strided_slice %26 {offsets = [0, 0], sizes = [8, 128], strides = [1, 1]} : vector<8x384xf32> to vector<8x128xf32>
    %30 = vector.extract_strided_slice %28 {offsets = [0, 0], sizes = [8, 128], strides = [1, 1]} : vector<8x384xf32> to vector<8x128xf32>
    %31 = arith.addf %29, %30 : vector<8x128xf32>
    %32 = arith.negf %31 : vector<8x128xf32>
    %33 = math.exp %32 : vector<8x128xf32>
    %cst_28 = arith.constant 1.000000e+00 : f32
    %34 = vector.broadcast %cst_28 : f32 to vector<8x128xf32>
    %35 = arith.addf %34, %33 : vector<8x128xf32>
    %36 = arith.divf %34, %35 : vector<8x128xf32>
    %37 = vector.extract_strided_slice %26 {offsets = [0, 128], sizes = [8, 128], strides = [1, 1]} : vector<8x384xf32> to vector<8x128xf32>
    %38 = vector.extract_strided_slice %28 {offsets = [0, 128], sizes = [8, 128], strides = [1, 1]} : vector<8x384xf32> to vector<8x128xf32>
    %39 = arith.addf %37, %38 : vector<8x128xf32>
    %40 = arith.negf %39 : vector<8x128xf32>
    %41 = math.exp %40 : vector<8x128xf32>
    %cst_29 = arith.constant 1.000000e+00 : f32
    %42 = vector.broadcast %cst_29 : f32 to vector<8x128xf32>
    %43 = arith.addf %42, %41 : vector<8x128xf32>
    %44 = arith.divf %42, %43 : vector<8x128xf32>
    %45 = vector.extract_strided_slice %26 {offsets = [0, 256], sizes = [8, 128], strides = [1, 1]} : vector<8x384xf32> to vector<8x128xf32>
    %46 = vector.extract_strided_slice %28 {offsets = [0, 256], sizes = [8, 128], strides = [1, 1]} : vector<8x384xf32> to vector<8x128xf32>
    %47 = vector.broadcast %6 : vector<1x128xf32> to vector<8x128xf32>
    %48 = arith.addf %46, %47 : vector<8x128xf32>
    %49 = arith.mulf %36, %48 : vector<8x128xf32>
    %50 = arith.addf %45, %49 : vector<8x128xf32>
    %51 = math.tanh %50 : vector<8x128xf32>
    %cst_30 = arith.constant 1.000000e+00 : f32
    %52 = vector.broadcast %cst_30 : f32 to vector<8x128xf32>
    %53 = arith.subf %52, %44 : vector<8x128xf32>
    %54 = arith.mulf %53, %51 : vector<8x128xf32>
    %55 = arith.mulf %44, %24 : vector<8x128xf32>
    %56 = arith.addf %54, %55 : vector<8x128xf32>
    %57 = arith.truncf %56 : vector<8x128xf32> to vector<8x128xbf16>
    %cst_31 = arith.constant dense<0.000000e+00> : vector<8x384xf32>
    %58 = tpu.matmul %57, %1, %cst_31 {dimension_numbers = #tpu.dot_dimension_numbers<[1], [0], [0], [1], [0, 0, 1, 1], [], []>} : vector<8x128xbf16>, vector<128x384xbf16>, vector<8x384xf32> -> vector<8x384xf32>
    %59 = vector.broadcast %5 : vector<1x384xf32> to vector<8x384xf32>
    %60 = arith.addf %58, %59 : vector<8x384xf32>
    %61 = arith.truncf %25 : vector<8x128xf32> to vector<8x128xbf16>
    %cst_32 = arith.constant dense<0.000000e+00> : vector<8x384xf32>
    %62 = tpu.matmul %61, %3, %cst_32 {dimension_numbers = #tpu.dot_dimension_numbers<[1], [0], [0], [1], [0, 0, 1, 1], [], []>} : vector<8x128xbf16>, vector<128x384xbf16>, vector<8x384xf32> -> vector<8x384xf32>
    %63 = vector.extract_strided_slice %60 {offsets = [0, 0], sizes = [8, 128], strides = [1, 1]} : vector<8x384xf32> to vector<8x128xf32>
    %64 = vector.extract_strided_slice %62 {offsets = [0, 0], sizes = [8, 128], strides = [1, 1]} : vector<8x384xf32> to vector<8x128xf32>
    %65 = arith.addf %63, %64 : vector<8x128xf32>
    %66 = arith.negf %65 : vector<8x128xf32>
    %67 = math.exp %66 : vector<8x128xf32>
    %cst_33 = arith.constant 1.000000e+00 : f32
    %68 = vector.broadcast %cst_33 : f32 to vector<8x128xf32>
    %69 = arith.addf %68, %67 : vector<8x128xf32>
    %70 = arith.divf %68, %69 : vector<8x128xf32>
    %71 = vector.extract_strided_slice %60 {offsets = [0, 128], sizes = [8, 128], strides = [1, 1]} : vector<8x384xf32> to vector<8x128xf32>
    %72 = vector.extract_strided_slice %62 {offsets = [0, 128], sizes = [8, 128], strides = [1, 1]} : vector<8x384xf32> to vector<8x128xf32>
    %73 = arith.addf %71, %72 : vector<8x128xf32>
    %74 = arith.negf %73 : vector<8x128xf32>
    %75 = math.exp %74 : vector<8x128xf32>
    %cst_34 = arith.constant 1.000000e+00 : f32
    %76 = vector.broadcast %cst_34 : f32 to vector<8x128xf32>
    %77 = arith.addf %76, %75 : vector<8x128xf32>
    %78 = arith.divf %76, %77 : vector<8x128xf32>
    %79 = vector.extract_strided_slice %60 {offsets = [0, 256], sizes = [8, 128], strides = [1, 1]} : vector<8x384xf32> to vector<8x128xf32>
    %80 = vector.extract_strided_slice %62 {offsets = [0, 256], sizes = [8, 128], strides = [1, 1]} : vector<8x384xf32> to vector<8x128xf32>
    %81 = vector.broadcast %7 : vector<1x128xf32> to vector<8x128xf32>
    %82 = arith.addf %80, %81 : vector<8x128xf32>
    %83 = arith.mulf %70, %82 : vector<8x128xf32>
    %84 = arith.addf %79, %83 : vector<8x128xf32>
    %85 = math.tanh %84 : vector<8x128xf32>
    %cst_35 = arith.constant 1.000000e+00 : f32
    %86 = vector.broadcast %cst_35 : f32 to vector<8x128xf32>
    %87 = arith.subf %86, %78 : vector<8x128xf32>
    %88 = arith.mulf %87, %85 : vector<8x128xf32>
    %89 = arith.mulf %78, %25 : vector<8x128xf32>
    %90 = arith.addf %88, %89 : vector<8x128xf32>
    %91 = vector.extract_strided_slice %90 {offsets = [7, 0], sizes = [1, 128], strides = [1, 1]} : vector<8x128xf32> to vector<1x128xf32>
    %c0_36 = arith.constant 0 : index
    %c0_37 = arith.constant 0 : index
    %92 = vector.load %arg17[%c0_36, %c0_37] : memref<8x128xf32, #tpu.memory_space<vmem>>, vector<1x128xf32>
    tpu.vector_store %arg17[%c0_36, %c0_37], %91 {strides = array<i32>} : memref<8x128xf32, #tpu.memory_space<vmem>>, vector<1x128xf32>,
    %93 = vector.extract_strided_slice %21 {offsets = [8, 0], sizes = [8, 384], strides = [1, 1]} : vector<32x384xf32> to vector<8x384xf32>
    %94 = arith.truncf %56 : vector<8x128xf32> to vector<8x128xbf16>
    %cst_38 = arith.constant dense<0.000000e+00> : vector<8x384xf32>
    %95 = tpu.matmul %94, %2, %cst_38 {dimension_numbers = #tpu.dot_dimension_numbers<[1], [0], [0], [1], [0, 0, 1, 1], [], []>} : vector<8x128xbf16>, vector<128x384xbf16>, vector<8x384xf32> -> vector<8x384xf32>
    %96 = vector.extract_strided_slice %93 {offsets = [0, 0], sizes = [8, 128], strides = [1, 1]} : vector<8x384xf32> to vector<8x128xf32>
    %97 = vector.extract_strided_slice %95 {offsets = [0, 0], sizes = [8, 128], strides = [1, 1]} : vector<8x384xf32> to vector<8x128xf32>
    %98 = arith.addf %96, %97 : vector<8x128xf32>
    %99 = arith.negf %98 : vector<8x128xf32>
    %100 = math.exp %99 : vector<8x128xf32>
    %cst_39 = arith.constant 1.000000e+00 : f32
    %101 = vector.broadcast %cst_39 : f32 to vector<8x128xf32>
    %102 = arith.addf %101, %100 : vector<8x128xf32>
    %103 = arith.divf %101, %102 : vector<8x128xf32>
    %104 = vector.extract_strided_slice %93 {offsets = [0, 128], sizes = [8, 128], strides = [1, 1]} : vector<8x384xf32> to vector<8x128xf32>
    %105 = vector.extract_strided_slice %95 {offsets = [0, 128], sizes = [8, 128], strides = [1, 1]} : vector<8x384xf32> to vector<8x128xf32>
    %106 = arith.addf %104, %105 : vector<8x128xf32>
    %107 = arith.negf %106 : vector<8x128xf32>
    %108 = math.exp %107 : vector<8x128xf32>
    %cst_40 = arith.constant 1.000000e+00 : f32
    %109 = vector.broadcast %cst_40 : f32 to vector<8x128xf32>
    %110 = arith.addf %109, %108 : vector<8x128xf32>
    %111 = arith.divf %109, %110 : vector<8x128xf32>
    %112 = vector.extract_strided_slice %93 {offsets = [0, 256], sizes = [8, 128], strides = [1, 1]} : vector<8x384xf32> to vector<8x128xf32>
    %113 = vector.extract_strided_slice %95 {offsets = [0, 256], sizes = [8, 128], strides = [1, 1]} : vector<8x384xf32> to vector<8x128xf32>
    %114 = vector.broadcast %6 : vector<1x128xf32> to vector<8x128xf32>
    %115 = arith.addf %113, %114 : vector<8x128xf32>
    %116 = arith.mulf %103, %115 : vector<8x128xf32>
    %117 = arith.addf %112, %116 : vector<8x128xf32>
    %118 = math.tanh %117 : vector<8x128xf32>
    %cst_41 = arith.constant 1.000000e+00 : f32
    %119 = vector.broadcast %cst_41 : f32 to vector<8x128xf32>
    %120 = arith.subf %119, %111 : vector<8x128xf32>
    %121 = arith.mulf %120, %118 : vector<8x128xf32>
    %122 = arith.mulf %111, %56 : vector<8x128xf32>
    %123 = arith.addf %121, %122 : vector<8x128xf32>
    %124 = arith.truncf %123 : vector<8x128xf32> to vector<8x128xbf16>
    %cst_42 = arith.constant dense<0.000000e+00> : vector<8x384xf32>
    %125 = tpu.matmul %124, %1, %cst_42 {dimension_numbers = #tpu.dot_dimension_numbers<[1], [0], [0], [1], [0, 0, 1, 1], [], []>} : vector<8x128xbf16>, vector<128x384xbf16>, vector<8x384xf32> -> vector<8x384xf32>
    %126 = vector.broadcast %5 : vector<1x384xf32> to vector<8x384xf32>
    %127 = arith.addf %125, %126 : vector<8x384xf32>
    %128 = arith.truncf %90 : vector<8x128xf32> to vector<8x128xbf16>
    %cst_43 = arith.constant dense<0.000000e+00> : vector<8x384xf32>
    %129 = tpu.matmul %128, %3, %cst_43 {dimension_numbers = #tpu.dot_dimension_numbers<[1], [0], [0], [1], [0, 0, 1, 1], [], []>} : vector<8x128xbf16>, vector<128x384xbf16>, vector<8x384xf32> -> vector<8x384xf32>
    %130 = vector.extract_strided_slice %127 {offsets = [0, 0], sizes = [8, 128], strides = [1, 1]} : vector<8x384xf32> to vector<8x128xf32>
    %131 = vector.extract_strided_slice %129 {offsets = [0, 0], sizes = [8, 128], strides = [1, 1]} : vector<8x384xf32> to vector<8x128xf32>
    %132 = arith.addf %130, %131 : vector<8x128xf32>
    %133 = arith.negf %132 : vector<8x128xf32>
    %134 = math.exp %133 : vector<8x128xf32>
    %cst_44 = arith.constant 1.000000e+00 : f32
    %135 = vector.broadcast %cst_44 : f32 to vector<8x128xf32>
    %136 = arith.addf %135, %134 : vector<8x128xf32>
    %137 = arith.divf %135, %136 : vector<8x128xf32>
    %138 = vector.extract_strided_slice %127 {offsets = [0, 128], sizes = [8, 128], strides = [1, 1]} : vector<8x384xf32> to vector<8x128xf32>
    %139 = vector.extract_strided_slice %129 {offsets = [0, 128], sizes = [8, 128], strides = [1, 1]} : vector<8x384xf32> to vector<8x128xf32>
    %140 = arith.addf %138, %139 : vector<8x128xf32>
    %141 = arith.negf %140 : vector<8x128xf32>
    %142 = math.exp %141 : vector<8x128xf32>
    %cst_45 = arith.constant 1.000000e+00 : f32
    %143 = vector.broadcast %cst_45 : f32 to vector<8x128xf32>
    %144 = arith.addf %143, %142 : vector<8x128xf32>
    %145 = arith.divf %143, %144 : vector<8x128xf32>
    %146 = vector.extract_strided_slice %127 {offsets = [0, 256], sizes = [8, 128], strides = [1, 1]} : vector<8x384xf32> to vector<8x128xf32>
    %147 = vector.extract_strided_slice %129 {offsets = [0, 256], sizes = [8, 128], strides = [1, 1]} : vector<8x384xf32> to vector<8x128xf32>
    %148 = vector.broadcast %7 : vector<1x128xf32> to vector<8x128xf32>
    %149 = arith.addf %147, %148 : vector<8x128xf32>
    %150 = arith.mulf %137, %149 : vector<8x128xf32>
    %151 = arith.addf %146, %150 : vector<8x128xf32>
    %152 = math.tanh %151 : vector<8x128xf32>
    %cst_46 = arith.constant 1.000000e+00 : f32
    %153 = vector.broadcast %cst_46 : f32 to vector<8x128xf32>
    %154 = arith.subf %153, %145 : vector<8x128xf32>
    %155 = arith.mulf %154, %152 : vector<8x128xf32>
    %156 = arith.mulf %145, %90 : vector<8x128xf32>
    %157 = arith.addf %155, %156 : vector<8x128xf32>
    %158 = vector.extract_strided_slice %157 {offsets = [7, 0], sizes = [1, 128], strides = [1, 1]} : vector<8x128xf32> to vector<1x128xf32>
    %c1 = arith.constant 1 : index
    %c0_47 = arith.constant 0 : index
    %159 = vector.load %arg17[%c1, %c0_47] : memref<8x128xf32, #tpu.memory_space<vmem>>, vector<1x128xf32>
    tpu.vector_store %arg17[%c1, %c0_47], %158 {strides = array<i32>} : memref<8x128xf32, #tpu.memory_space<vmem>>, vector<1x128xf32>,
    %160 = vector.extract_strided_slice %21 {offsets = [16, 0], sizes = [8, 384], strides = [1, 1]} : vector<32x384xf32> to vector<8x384xf32>
    %161 = arith.truncf %123 : vector<8x128xf32> to vector<8x128xbf16>
    %cst_48 = arith.constant dense<0.000000e+00> : vector<8x384xf32>
    %162 = tpu.matmul %161, %2, %cst_48 {dimension_numbers = #tpu.dot_dimension_numbers<[1], [0], [0], [1], [0, 0, 1, 1], [], []>} : vector<8x128xbf16>, vector<128x384xbf16>, vector<8x384xf32> -> vector<8x384xf32>
    %163 = vector.extract_strided_slice %160 {offsets = [0, 0], sizes = [8, 128], strides = [1, 1]} : vector<8x384xf32> to vector<8x128xf32>
    %164 = vector.extract_strided_slice %162 {offsets = [0, 0], sizes = [8, 128], strides = [1, 1]} : vector<8x384xf32> to vector<8x128xf32>
    %165 = arith.addf %163, %164 : vector<8x128xf32>
    %166 = arith.negf %165 : vector<8x128xf32>
    %167 = math.exp %166 : vector<8x128xf32>
    %cst_49 = arith.constant 1.000000e+00 : f32
    %168 = vector.broadcast %cst_49 : f32 to vector<8x128xf32>
    %169 = arith.addf %168, %167 : vector<8x128xf32>
    %170 = arith.divf %168, %169 : vector<8x128xf32>
    %171 = vector.extract_strided_slice %160 {offsets = [0, 128], sizes = [8, 128], strides = [1, 1]} : vector<8x384xf32> to vector<8x128xf32>
    %172 = vector.extract_strided_slice %162 {offsets = [0, 128], sizes = [8, 128], strides = [1, 1]} : vector<8x384xf32> to vector<8x128xf32>
    %173 = arith.addf %171, %172 : vector<8x128xf32>
    %174 = arith.negf %173 : vector<8x128xf32>
    %175 = math.exp %174 : vector<8x128xf32>
    %cst_50 = arith.constant 1.000000e+00 : f32
    %176 = vector.broadcast %cst_50 : f32 to vector<8x128xf32>
    %177 = arith.addf %176, %175 : vector<8x128xf32>
    %178 = arith.divf %176, %177 : vector<8x128xf32>
    %179 = vector.extract_strided_slice %160 {offsets = [0, 256], sizes = [8, 128], strides = [1, 1]} : vector<8x384xf32> to vector<8x128xf32>
    %180 = vector.extract_strided_slice %162 {offsets = [0, 256], sizes = [8, 128], strides = [1, 1]} : vector<8x384xf32> to vector<8x128xf32>
    %181 = vector.broadcast %6 : vector<1x128xf32> to vector<8x128xf32>
    %182 = arith.addf %180, %181 : vector<8x128xf32>
    %183 = arith.mulf %170, %182 : vector<8x128xf32>
    %184 = arith.addf %179, %183 : vector<8x128xf32>
    %185 = math.tanh %184 : vector<8x128xf32>
    %cst_51 = arith.constant 1.000000e+00 : f32
    %186 = vector.broadcast %cst_51 : f32 to vector<8x128xf32>
    %187 = arith.subf %186, %178 : vector<8x128xf32>
    %188 = arith.mulf %187, %185 : vector<8x128xf32>
    %189 = arith.mulf %178, %123 : vector<8x128xf32>
    %190 = arith.addf %188, %189 : vector<8x128xf32>
    %191 = arith.truncf %190 : vector<8x128xf32> to vector<8x128xbf16>
    %cst_52 = arith.constant dense<0.000000e+00> : vector<8x384xf32>
    %192 = tpu.matmul %191, %1, %cst_52 {dimension_numbers = #tpu.dot_dimension_numbers<[1], [0], [0], [1], [0, 0, 1, 1], [], []>} : vector<8x128xbf16>, vector<128x384xbf16>, vector<8x384xf32> -> vector<8x384xf32>
    %193 = vector.broadcast %5 : vector<1x384xf32> to vector<8x384xf32>
    %194 = arith.addf %192, %193 : vector<8x384xf32>
    %195 = arith.truncf %157 : vector<8x128xf32> to vector<8x128xbf16>
    %cst_53 = arith.constant dense<0.000000e+00> : vector<8x384xf32>
    %196 = tpu.matmul %195, %3, %cst_53 {dimension_numbers = #tpu.dot_dimension_numbers<[1], [0], [0], [1], [0, 0, 1, 1], [], []>} : vector<8x128xbf16>, vector<128x384xbf16>, vector<8x384xf32> -> vector<8x384xf32>
    %197 = vector.extract_strided_slice %194 {offsets = [0, 0], sizes = [8, 128], strides = [1, 1]} : vector<8x384xf32> to vector<8x128xf32>
    %198 = vector.extract_strided_slice %196 {offsets = [0, 0], sizes = [8, 128], strides = [1, 1]} : vector<8x384xf32> to vector<8x128xf32>
    %199 = arith.addf %197, %198 : vector<8x128xf32>
    %200 = arith.negf %199 : vector<8x128xf32>
    %201 = math.exp %200 : vector<8x128xf32>
    %cst_54 = arith.constant 1.000000e+00 : f32
    %202 = vector.broadcast %cst_54 : f32 to vector<8x128xf32>
    %203 = arith.addf %202, %201 : vector<8x128xf32>
    %204 = arith.divf %202, %203 : vector<8x128xf32>
    %205 = vector.extract_strided_slice %194 {offsets = [0, 128], sizes = [8, 128], strides = [1, 1]} : vector<8x384xf32> to vector<8x128xf32>
    %206 = vector.extract_strided_slice %196 {offsets = [0, 128], sizes = [8, 128], strides = [1, 1]} : vector<8x384xf32> to vector<8x128xf32>
    %207 = arith.addf %205, %206 : vector<8x128xf32>
    %208 = arith.negf %207 : vector<8x128xf32>
    %209 = math.exp %208 : vector<8x128xf32>
    %cst_55 = arith.constant 1.000000e+00 : f32
    %210 = vector.broadcast %cst_55 : f32 to vector<8x128xf32>
    %211 = arith.addf %210, %209 : vector<8x128xf32>
    %212 = arith.divf %210, %211 : vector<8x128xf32>
    %213 = vector.extract_strided_slice %194 {offsets = [0, 256], sizes = [8, 128], strides = [1, 1]} : vector<8x384xf32> to vector<8x128xf32>
    %214 = vector.extract_strided_slice %196 {offsets = [0, 256], sizes = [8, 128], strides = [1, 1]} : vector<8x384xf32> to vector<8x128xf32>
    %215 = vector.broadcast %7 : vector<1x128xf32> to vector<8x128xf32>
    %216 = arith.addf %214, %215 : vector<8x128xf32>
    %217 = arith.mulf %204, %216 : vector<8x128xf32>
    %218 = arith.addf %213, %217 : vector<8x128xf32>
    %219 = math.tanh %218 : vector<8x128xf32>
    %cst_56 = arith.constant 1.000000e+00 : f32
    %220 = vector.broadcast %cst_56 : f32 to vector<8x128xf32>
    %221 = arith.subf %220, %212 : vector<8x128xf32>
    %222 = arith.mulf %221, %219 : vector<8x128xf32>
    %223 = arith.mulf %212, %157 : vector<8x128xf32>
    %224 = arith.addf %222, %223 : vector<8x128xf32>
    %225 = vector.extract_strided_slice %224 {offsets = [7, 0], sizes = [1, 128], strides = [1, 1]} : vector<8x128xf32> to vector<1x128xf32>
    %c2 = arith.constant 2 : index
    %c0_57 = arith.constant 0 : index
    %226 = vector.load %arg17[%c2, %c0_57] : memref<8x128xf32, #tpu.memory_space<vmem>>, vector<1x128xf32>
    tpu.vector_store %arg17[%c2, %c0_57], %225 {strides = array<i32>} : memref<8x128xf32, #tpu.memory_space<vmem>>, vector<1x128xf32>,
    %227 = vector.extract_strided_slice %21 {offsets = [24, 0], sizes = [8, 384], strides = [1, 1]} : vector<32x384xf32> to vector<8x384xf32>
    %228 = arith.truncf %190 : vector<8x128xf32> to vector<8x128xbf16>
    %cst_58 = arith.constant dense<0.000000e+00> : vector<8x384xf32>
    %229 = tpu.matmul %228, %2, %cst_58 {dimension_numbers = #tpu.dot_dimension_numbers<[1], [0], [0], [1], [0, 0, 1, 1], [], []>} : vector<8x128xbf16>, vector<128x384xbf16>, vector<8x384xf32> -> vector<8x384xf32>
    %230 = vector.extract_strided_slice %227 {offsets = [0, 0], sizes = [8, 128], strides = [1, 1]} : vector<8x384xf32> to vector<8x128xf32>
    %231 = vector.extract_strided_slice %229 {offsets = [0, 0], sizes = [8, 128], strides = [1, 1]} : vector<8x384xf32> to vector<8x128xf32>
    %232 = arith.addf %230, %231 : vector<8x128xf32>
    %233 = arith.negf %232 : vector<8x128xf32>
    %234 = math.exp %233 : vector<8x128xf32>
    %cst_59 = arith.constant 1.000000e+00 : f32
    %235 = vector.broadcast %cst_59 : f32 to vector<8x128xf32>
    %236 = arith.addf %235, %234 : vector<8x128xf32>
    %237 = arith.divf %235, %236 : vector<8x128xf32>
    %238 = vector.extract_strided_slice %227 {offsets = [0, 128], sizes = [8, 128], strides = [1, 1]} : vector<8x384xf32> to vector<8x128xf32>
    %239 = vector.extract_strided_slice %229 {offsets = [0, 128], sizes = [8, 128], strides = [1, 1]} : vector<8x384xf32> to vector<8x128xf32>
    %240 = arith.addf %238, %239 : vector<8x128xf32>
    %241 = arith.negf %240 : vector<8x128xf32>
    %242 = math.exp %241 : vector<8x128xf32>
    %cst_60 = arith.constant 1.000000e+00 : f32
    %243 = vector.broadcast %cst_60 : f32 to vector<8x128xf32>
    %244 = arith.addf %243, %242 : vector<8x128xf32>
    %245 = arith.divf %243, %244 : vector<8x128xf32>
    %246 = vector.extract_strided_slice %227 {offsets = [0, 256], sizes = [8, 128], strides = [1, 1]} : vector<8x384xf32> to vector<8x128xf32>
    %247 = vector.extract_strided_slice %229 {offsets = [0, 256], sizes = [8, 128], strides = [1, 1]} : vector<8x384xf32> to vector<8x128xf32>
    %248 = vector.broadcast %6 : vector<1x128xf32> to vector<8x128xf32>
    %249 = arith.addf %247, %248 : vector<8x128xf32>
    %250 = arith.mulf %237, %249 : vector<8x128xf32>
    %251 = arith.addf %246, %250 : vector<8x128xf32>
    %252 = math.tanh %251 : vector<8x128xf32>
    %cst_61 = arith.constant 1.000000e+00 : f32
    %253 = vector.broadcast %cst_61 : f32 to vector<8x128xf32>
    %254 = arith.subf %253, %245 : vector<8x128xf32>
    %255 = arith.mulf %254, %252 : vector<8x128xf32>
    %256 = arith.mulf %245, %190 : vector<8x128xf32>
    %257 = arith.addf %255, %256 : vector<8x128xf32>
    %258 = arith.truncf %257 : vector<8x128xf32> to vector<8x128xbf16>
    %cst_62 = arith.constant dense<0.000000e+00> : vector<8x384xf32>
    %259 = tpu.matmul %258, %1, %cst_62 {dimension_numbers = #tpu.dot_dimension_numbers<[1], [0], [0], [1], [0, 0, 1, 1], [], []>} : vector<8x128xbf16>, vector<128x384xbf16>, vector<8x384xf32> -> vector<8x384xf32>
    %260 = vector.broadcast %5 : vector<1x384xf32> to vector<8x384xf32>
    %261 = arith.addf %259, %260 : vector<8x384xf32>
    %262 = arith.truncf %224 : vector<8x128xf32> to vector<8x128xbf16>
    %cst_63 = arith.constant dense<0.000000e+00> : vector<8x384xf32>
    %263 = tpu.matmul %262, %3, %cst_63 {dimension_numbers = #tpu.dot_dimension_numbers<[1], [0], [0], [1], [0, 0, 1, 1], [], []>} : vector<8x128xbf16>, vector<128x384xbf16>, vector<8x384xf32> -> vector<8x384xf32>
    %264 = vector.extract_strided_slice %261 {offsets = [0, 0], sizes = [8, 128], strides = [1, 1]} : vector<8x384xf32> to vector<8x128xf32>
    %265 = vector.extract_strided_slice %263 {offsets = [0, 0], sizes = [8, 128], strides = [1, 1]} : vector<8x384xf32> to vector<8x128xf32>
    %266 = arith.addf %264, %265 : vector<8x128xf32>
    %267 = arith.negf %266 : vector<8x128xf32>
    %268 = math.exp %267 : vector<8x128xf32>
    %cst_64 = arith.constant 1.000000e+00 : f32
    %269 = vector.broadcast %cst_64 : f32 to vector<8x128xf32>
    %270 = arith.addf %269, %268 : vector<8x128xf32>
    %271 = arith.divf %269, %270 : vector<8x128xf32>
    %272 = vector.extract_strided_slice %261 {offsets = [0, 128], sizes = [8, 128], strides = [1, 1]} : vector<8x384xf32> to vector<8x128xf32>
    %273 = vector.extract_strided_slice %263 {offsets = [0, 128], sizes = [8, 128], strides = [1, 1]} : vector<8x384xf32> to vector<8x128xf32>
    %274 = arith.addf %272, %273 : vector<8x128xf32>
    %275 = arith.negf %274 : vector<8x128xf32>
    %276 = math.exp %275 : vector<8x128xf32>
    %cst_65 = arith.constant 1.000000e+00 : f32
    %277 = vector.broadcast %cst_65 : f32 to vector<8x128xf32>
    %278 = arith.addf %277, %276 : vector<8x128xf32>
    %279 = arith.divf %277, %278 : vector<8x128xf32>
    %280 = vector.extract_strided_slice %261 {offsets = [0, 256], sizes = [8, 128], strides = [1, 1]} : vector<8x384xf32> to vector<8x128xf32>
    %281 = vector.extract_strided_slice %263 {offsets = [0, 256], sizes = [8, 128], strides = [1, 1]} : vector<8x384xf32> to vector<8x128xf32>
    %282 = vector.broadcast %7 : vector<1x128xf32> to vector<8x128xf32>
    %283 = arith.addf %281, %282 : vector<8x128xf32>
    %284 = arith.mulf %271, %283 : vector<8x128xf32>
    %285 = arith.addf %280, %284 : vector<8x128xf32>
    %286 = math.tanh %285 : vector<8x128xf32>
    %cst_66 = arith.constant 1.000000e+00 : f32
    %287 = vector.broadcast %cst_66 : f32 to vector<8x128xf32>
    %288 = arith.subf %287, %279 : vector<8x128xf32>
    %289 = arith.mulf %288, %286 : vector<8x128xf32>
    %290 = arith.mulf %279, %224 : vector<8x128xf32>
    %291 = arith.addf %289, %290 : vector<8x128xf32>
    %292 = vector.extract_strided_slice %291 {offsets = [7, 0], sizes = [1, 128], strides = [1, 1]} : vector<8x128xf32> to vector<1x128xf32>
    %c3 = arith.constant 3 : index
    %c0_67 = arith.constant 0 : index
    %293 = vector.load %arg17[%c3, %c0_67] : memref<8x128xf32, #tpu.memory_space<vmem>>, vector<1x128xf32>
    tpu.vector_store %arg17[%c3, %c0_67], %292 {strides = array<i32>} : memref<8x128xf32, #tpu.memory_space<vmem>>, vector<1x128xf32>,
    %c0_68 = arith.constant 0 : index
    %c0_69 = arith.constant 0 : index
    %294 = vector.load %arg17[%c0_68, %c0_69] : memref<8x128xf32, #tpu.memory_space<vmem>>, vector<8x128xf32>
    %295 = arith.truncf %294 : vector<8x128xf32> to vector<8x128xbf16>
    %c0_70 = arith.constant 0 : index
    %c0_71 = arith.constant 0 : index
    %296 = vector.load %arg10[%c0_70, %c0_71] : memref<128x640xbf16, #tpu.memory_space<vmem>>, vector<128x640xbf16>
    %cst_72 = arith.constant dense<0.000000e+00> : vector<8x640xf32>
    %297 = tpu.matmul %295, %296, %cst_72 {dimension_numbers = #tpu.dot_dimension_numbers<[1], [0], [0], [1], [0, 0, 1, 1], [], []>} : vector<8x128xbf16>, vector<128x640xbf16>, vector<8x640xf32> -> vector<8x640xf32>
    %c0_73 = arith.constant 0 : index
    %c0_74 = arith.constant 0 : index
    %298 = vector.load %arg11[%c0_73, %c0_74] : memref<1x640xf32, #tpu.memory_space<vmem>>, vector<1x640xf32>
    %299 = vector.broadcast %298 : vector<1x640xf32> to vector<8x640xf32>
    %300 = arith.addf %297, %299 : vector<8x640xf32>
    %301 = arith.truncf %300 : vector<8x640xf32> to vector<8x640xbf16>
    %c0_75 = arith.constant 0 : index
    %c0_76 = arith.constant 0 : index
    %302 = vector.load %arg12[%c0_75, %c0_76] : memref<640x320xbf16, #tpu.memory_space<vmem>>, vector<640x320xbf16>
    %cst_77 = arith.constant dense<0.000000e+00> : vector<8x320xf32>
    %303 = tpu.matmul %301, %302, %cst_77 {dimension_numbers = #tpu.dot_dimension_numbers<[1], [0], [0], [1], [0, 0, 1, 1], [], []>} : vector<8x640xbf16>, vector<640x320xbf16>, vector<8x320xf32> -> vector<8x320xf32>
    %c0_78 = arith.constant 0 : index
    %c0_79 = arith.constant 0 : index
    %304 = vector.load %arg13[%c0_78, %c0_79] : memref<1x320xf32, #tpu.memory_space<vmem>>, vector<1x320xf32>
    %305 = vector.broadcast %304 : vector<1x320xf32> to vector<8x320xf32>
    %306 = arith.addf %303, %305 : vector<8x320xf32>
    %307 = arith.truncf %306 : vector<8x320xf32> to vector<8x320xbf16>
    %c0_80 = arith.constant 0 : index
    %c0_81 = arith.constant 0 : index
    %308 = vector.load %arg14[%c0_80, %c0_81] : memref<320x5xbf16, #tpu.memory_space<vmem>>, vector<320x5xbf16>
    %cst_82 = arith.constant dense<0.000000e+00> : vector<8x5xf32>
    %309 = tpu.matmul %307, %308, %cst_82 {dimension_numbers = #tpu.dot_dimension_numbers<[1], [0], [0], [1], [0, 0, 1, 1], [], []>} : vector<8x320xbf16>, vector<320x5xbf16>, vector<8x5xf32> -> vector<8x5xf32>
    %c0_83 = arith.constant 0 : index
    %c0_84 = arith.constant 0 : index
    %310 = vector.load %arg15[%c0_83, %c0_84] : memref<1x5xf32, #tpu.memory_space<vmem>>, vector<1x5xf32>
    %311 = vector.broadcast %310 : vector<1x5xf32> to vector<8x5xf32>
    %312 = arith.addf %309, %311 : vector<8x5xf32>
    %313 = vector.extract_strided_slice %312 {offsets = [0, 0], sizes = [4, 5], strides = [1, 1]} : vector<8x5xf32> to vector<4x5xf32>
    %314 = arith.negf %313 : vector<4x5xf32>
    %315 = math.exp %314 : vector<4x5xf32>
    %cst_85 = arith.constant 1.000000e+00 : f32
    %316 = vector.broadcast %cst_85 : f32 to vector<4x5xf32>
    %317 = arith.addf %316, %315 : vector<4x5xf32>
    %318 = arith.divf %316, %317 : vector<4x5xf32>
    %c0_86 = arith.constant 0 : index
    %c0_87 = arith.constant 0 : index
    %319 = vector.load %arg16[%c0_86, %c0_87] : memref<4x5xf32, #tpu.memory_space<vmem>>, vector<4x5xf32>
    tpu.vector_store %arg16[%c0_86, %c0_87], %318 {strides = array<i32>} : memref<4x5xf32, #tpu.memory_space<vmem>>, vector<4x5xf32>,
    return
  }
}

</mosaic_0001>

<llo_original>
// kernel: escort_forward.1
$region0: #{escort_forward.1}
  #allocation0 [shape = 'u32[]', space=smem, size = 0x4, offset = 0x4, fixed_abs, tag = 'smem constant byte address 0x4 - core index']
  #allocation1 [shape = 'u32[72,128]{1,0:T(1,128)}', space=vmem, size = 0x9000, scoped, tag = 'internal scratch']
  #allocation2 [shape = 'f32[8,128]{1,0:T(8,128)}', space=vmem, size = 0x1000, scoped, tag = 'scratch operand']
  %s0 = inlined_call_operand.vmem [shape: s32[32,1], index: 0, kind: input, shape index: {}]
  %s1 = inlined_call_operand.vmem [shape: bf16[50,32], index: 1, kind: input, shape index: {}]
  %s2 = inlined_call_operand.vmem [shape: bf16[32,384], index: 2, kind: input, shape index: {}]
  %s3 = inlined_call_operand.vmem [shape: bf16[128,384], index: 3, kind: input, shape index: {}]
  %s4 = inlined_call_operand.vmem [shape: f32[1,384], index: 4, kind: input, shape index: {}]
  %s5 = inlined_call_operand.vmem [shape: f32[1,128], index: 5, kind: input, shape index: {}]
  %s6 = inlined_call_operand.vmem [shape: bf16[128,384], index: 6, kind: input, shape index: {}]
  %s7 = inlined_call_operand.vmem [shape: bf16[128,384], index: 7, kind: input, shape index: {}]
  %s8 = inlined_call_operand.vmem [shape: f32[1,384], index: 8, kind: input, shape index: {}]
  %s9 = inlined_call_operand.vmem [shape: f32[1,128], index: 9, kind: input, shape index: {}]
  %s10 = inlined_call_operand.vmem [shape: bf16[128,640], index: 10, kind: input, shape index: {}]
  %s11 = inlined_call_operand.vmem [shape: f32[1,640], index: 11, kind: input, shape index: {}]
  %s12 = inlined_call_operand.vmem [shape: bf16[640,320], index: 12, kind: input, shape index: {}]
  %s13 = inlined_call_operand.vmem [shape: f32[1,320], index: 13, kind: input, shape index: {}]
  %s14 = inlined_call_operand.vmem [shape: bf16[320,5], index: 14, kind: input, shape index: {}]
  %s15 = inlined_call_operand.vmem [shape: f32[1,5], index: 15, kind: input, shape index: {}]
  %s16 = inlined_call_operand.hbm [shape: f32[4,5], index: 16, kind: output, shape index: {}]
  %s17 = sld [smem:[#allocation0]]
  $region74: #{escort_forward.1} parent=0
    _
  %s19 = ssub.s32 1, %s17
  %s20 = scalar_select 0, %s19, %s17
  $region1: #{escort_forward.1} parent=0
    #allocation3 [shape = 'u8[2048]{0}', space=vmem, size = 0x800, scoped, tag = 'output window, operand 0, single buffered']
    #allocation4 [shape = 's32[1]{0}', space=sflag, size = 0x4, scoped, tag = 'scoped memory for escort_forward.1']
    %21 = vsyncpa [#allocation4], 0
    // Predicated region
    $region2: #{escort_forward.1} parent=1 // pred_check
      _
    $region3: #{escort_forward.1} parent=1 // pred_check_branch
      %23 = sbr.rel (0) target = $region5
    $region4: #{escort_forward.1} parent=1 // pred_region
      _
    $region5: #{escort_forward.1} parent=1 // pred_fallthru
      _
    // Predicated region
    $region6: #{escort_forward.1} parent=1 // pred_check
      _
    $region7: #{escort_forward.1} parent=1 // pred_check_branch
      %25 = sbr.rel (0) target = $region9
    $region8: #{escort_forward.1} parent=1 // pred_region
      _
    $region9: #{escort_forward.1} parent=1 // pred_fallthru
      _
    // Predicated region
    $region10: #{escort_forward.1} parent=1 // pred_check
      _
    $region11: #{escort_forward.1} parent=1 // pred_check_branch
      %27 = sbr.rel (0) target = $region13
    $region12: #{escort_forward.1} parent=1 // pred_region
      _
    $region13: #{escort_forward.1} parent=1 // pred_fallthru
      _
    // Predicated region
    $region14: #{escort_forward.1} parent=1 // pred_check
      _
    $region15: #{escort_forward.1} parent=1 // pred_check_branch
      %29 = sbr.rel (0) target = $region17
    $region16: #{escort_forward.1} parent=1 // pred_region
      _
    $region17: #{escort_forward.1} parent=1 // pred_fallthru
      _
    // Predicated region
    $region18: #{escort_forward.1} parent=1 // pred_check
      _
    $region19: #{escort_forward.1} parent=1 // pred_check_branch
      %31 = sbr.rel (0) target = $region21
    $region20: #{escort_forward.1} parent=1 // pred_region
      _
    $region21: #{escort_forward.1} parent=1 // pred_fallthru
      _
    // Predicated region
    $region22: #{escort_forward.1} parent=1 // pred_check
      _
    $region23: #{escort_forward.1} parent=1 // pred_check_branch
      %33 = sbr.rel (0) target = $region25
    $region24: #{escort_forward.1} parent=1 // pred_region
      _
    $region25: #{escort_forward.1} parent=1 // pred_fallthru
      _
    // Predicated region
    $region26: #{escort_forward.1} parent=1 // pred_check
      _
    $region27: #{escort_forward.1} parent=1 // pred_check_branch
      %35 = sbr.rel (0) target = $region29
    $region28: #{escort_forward.1} parent=1 // pred_region
      _
    $region29: #{escort_forward.1} parent=1 // pred_fallthru
      _
    // Predicated region
    $region30: #{escort_forward.1} parent=1 // pred_check
      _
    $region31: #{escort_forward.1} parent=1 // pred_check_branch
      %37 = sbr.rel (0) target = $region33
    $region32: #{escort_forward.1} parent=1 // pred_region
      _
    $region33: #{escort_forward.1} parent=1 // pred_fallthru
      _
    // Predicated region
    $region34: #{escort_forward.1} parent=1 // pred_check
      _
    $region35: #{escort_forward.1} parent=1 // pred_check_branch
      %39 = sbr.rel (0) target = $region37
    $region36: #{escort_forward.1} parent=1 // pred_region
      _
    $region37: #{escort_forward.1} parent=1 // pred_fallthru
      _
    // Predicated region
    $region38: #{escort_forward.1} parent=1 // pred_check
      _
    $region39: #{escort_forward.1} parent=1 // pred_check_branch
      %41 = sbr.rel (0) target = $region41
    $region40: #{escort_forward.1} parent=1 // pred_region
      _
    $region41: #{escort_forward.1} parent=1 // pred_fallthru
      _
    // Predicated region
    $region42: #{escort_forward.1} parent=1 // pred_check
      _
    $region43: #{escort_forward.1} parent=1 // pred_check_branch
      %43 = sbr.rel (0) target = $region45
    $region44: #{escort_forward.1} parent=1 // pred_region
      _
    $region45: #{escort_forward.1} parent=1 // pred_fallthru
      _
    // Predicated region
    $region46: #{escort_forward.1} parent=1 // pred_check
      _
    $region47: #{escort_forward.1} parent=1 // pred_check_branch
      %45 = sbr.rel (0) target = $region49
    $region48: #{escort_forward.1} parent=1 // pred_region
      _
    $region49: #{escort_forward.1} parent=1 // pred_fallthru
      _
    // Predicated region
    $region50: #{escort_forward.1} parent=1 // pred_check
      _
    $region51: #{escort_forward.1} parent=1 // pred_check_branch
      %47 = sbr.rel (0) target = $region53
    $region52: #{escort_forward.1} parent=1 // pred_region
      _
    $region53: #{escort_forward.1} parent=1 // pred_fallthru
      _
    // Predicated region
    $region54: #{escort_forward.1} parent=1 // pred_check
      _
    $region55: #{escort_forward.1} parent=1 // pred_check_branch
      %49 = sbr.rel (0) target = $region57
    $region56: #{escort_forward.1} parent=1 // pred_region
      _
    $region57: #{escort_forward.1} parent=1 // pred_fallthru
      _
    // Predicated region
    $region58: #{escort_forward.1} parent=1 // pred_check
      _
    $region59: #{escort_forward.1} parent=1 // pred_check_branch
      %51 = sbr.rel (0) target = $region61
    $region60: #{escort_forward.1} parent=1 // pred_region
      _
    $region61: #{escort_forward.1} parent=1 // pred_fallthru
      _
    // Predicated region
    $region62: #{escort_forward.1} parent=1 // pred_check
      _
    $region63: #{escort_forward.1} parent=1 // pred_check_branch
      %53 = sbr.rel (0) target = $region65
    $region64: #{escort_forward.1} parent=1 // pred_region
      _
    $region65: #{escort_forward.1} parent=1 // pred_fallthru
      _
    %v55 = vld [vmem:[%s2] sm:$0xff]
    %v56 = vld [vmem:[%s2 + $0x8] sm:$0xf]
    %v57 = vld [vmem:[%s2 + $0xc] sm:$0xff]
    %v58 = vld [vmem:[%s2 + $0x14] sm:$0xf]
    %v59 = vld [vmem:[%s2 + $0x18] sm:$0xff]
    %v60 = vld [vmem:[%s2 + $0x20] sm:$0xf]
    %v61 = vld [vmem:[%s2 + $0x24] sm:$0xff]
    %v62 = vld [vmem:[%s2 + $0x2c] sm:$0xf]
    %v63 = vld [vmem:[%s6] sm:$0xff]
    %v64 = vld [vmem:[%s6 + $0x8] sm:$0xf]
    %v65 = vld [vmem:[%s6 + $0xc] sm:$0xff]
    %v66 = vld [vmem:[%s6 + $0x14] sm:$0xf]
    %v67 = vld [vmem:[%s6 + $0x18] sm:$0xff]
    %v68 = vld [vmem:[%s6 + $0x20] sm:$0xf]
    %v69 = vld [vmem:[%s6 + $0x24] sm:$0xff]
    %v70 = vld [vmem:[%s6 + $0x2c] sm:$0xf]
    %v71 = vld [vmem:[%s6 + $0x30] sm:$0xff]
    %v72 = vld [vmem:[%s6 + $0x38] sm:$0xf]
    %v73 = vld [vmem:[%s6 + $0x3c] sm:$0xff]
    %v74 = vld [vmem:[%s6 + $0x44] sm:$0xf]
    %v75 = vld [vmem:[%s6 + $0x48] sm:$0xff]
    %v76 = vld [vmem:[%s6 + $0x50] sm:$0xf]
    %v77 = vld [vmem:[%s6 + $0x54] sm:$0xff]
    %v78 = vld [vmem:[%s6 + $0x5c] sm:$0xf]
    %v79 = vld [vmem:[%s6 + $0x60] sm:$0xff]
    %v80 = vld [vmem:[%s6 + $0x68] sm:$0xf]
    %v81 = vld [vmem:[%s6 + $0x6c] sm:$0xff]
    %v82 = vld [vmem:[%s6 + $0x74] sm:$0xf]
    %v83 = vld [vmem:[%s6 + $0x78] sm:$0xff]
    %v84 = vld [vmem:[%s6 + $0x80] sm:$0xf]
    %v85 = vld [vmem:[%s6 + $0x84] sm:$0xff]
    %v86 = vld [vmem:[%s6 + $0x8c] sm:$0xf]
    %v87 = vld [vmem:[%s6 + $0x90] sm:$0xff]
    %v88 = vld [vmem:[%s6 + $0x98] sm:$0xf]
    %v89 = vld [vmem:[%s6 + $0x9c] sm:$0xff]
    %v90 = vld [vmem:[%s6 + $0xa4] sm:$0xf]
    %v91 = vld [vmem:[%s6 + $0xa8] sm:$0xff]
    %v92 = vld [vmem:[%s6 + $0xb0] sm:$0xf]
    %v93 = vld [vmem:[%s6 + $0xb4] sm:$0xff]
    %v94 = vld [vmem:[%s6 + $0xbc] sm:$0xf]
    %v95 = vld [vmem:[%s3] sm:$0xff]
    %v96 = vld [vmem:[%s3 + $0x8] sm:$0xf]
    %v97 = vld [vmem:[%s3 + $0xc] sm:$0xff]
    %v98 = vld [vmem:[%s3 + $0x14] sm:$0xf]
    %v99 = vld [vmem:[%s3 + $0x18] sm:$0xff]
    %v100 = vld [vmem:[%s3 + $0x20] sm:$0xf]
    %v101 = vld [vmem:[%s3 + $0x24] sm:$0xff]
    %v102 = vld [vmem:[%s3 + $0x2c] sm:$0xf]
    %v103 = vld [vmem:[%s3 + $0x30] sm:$0xff]
    %v104 = vld [vmem:[%s3 + $0x38] sm:$0xf]
    %v105 = vld [vmem:[%s3 + $0x3c] sm:$0xff]
    %v106 = vld [vmem:[%s3 + $0x44] sm:$0xf]
    %v107 = vld [vmem:[%s3 + $0x48] sm:$0xff]
    %v108 = vld [vmem:[%s3 + $0x50] sm:$0xf]
    %v109 = vld [vmem:[%s3 + $0x54] sm:$0xff]
    %v110 = vld [vmem:[%s3 + $0x5c] sm:$0xf]
    %v111 = vld [vmem:[%s3 + $0x60] sm:$0xff]
    %v112 = vld [vmem:[%s3 + $0x68] sm:$0xf]
    %v113 = vld [vmem:[%s3 + $0x6c] sm:$0xff]
    %v114 = vld [vmem:[%s3 + $0x74] sm:$0xf]
    %v115 = vld [vmem:[%s3 + $0x78] sm:$0xff]
    %v116 = vld [vmem:[%s3 + $0x80] sm:$0xf]
    %v117 = vld [vmem:[%s3 + $0x84] sm:$0xff]
    %v118 = vld [vmem:[%s3 + $0x8c] sm:$0xf]
    %v119 = vld [vmem:[%s3 + $0x90] sm:$0xff]
    %v120 = vld [vmem:[%s3 + $0x98] sm:$0xf]
    %v121 = vld [vmem:[%s3 + $0x9c] sm:$0xff]
    %v122 = vld [vmem:[%s3 + $0xa4] sm:$0xf]
    %v123 = vld [vmem:[%s3 + $0xa8] sm:$0xff]
    %v124 = vld [vmem:[%s3 + $0xb0] sm:$0xf]
    %v125 = vld [vmem:[%s3 + $0xb4] sm:$0xff]
    %v126 = vld [vmem:[%s3 + $0xbc] sm:$0xf]
    %v127 = vld [vmem:[%s7] sm:$0xff]
    %v128 = vld [vmem:[%s7 + $0x8] sm:$0xf]
    %v129 = vld [vmem:[%s7 + $0xc] sm:$0xff]
    %v130 = vld [vmem:[%s7 + $0x14] sm:$0xf]
    %v131 = vld [vmem:[%s7 + $0x18] sm:$0xff]
    %v132 = vld [vmem:[%s7 + $0x20] sm:$0xf]
    %v133 = vld [vmem:[%s7 + $0x24] sm:$0xff]
    %v134 = vld [vmem:[%s7 + $0x2c] sm:$0xf]
    %v135 = vld [vmem:[%s7 + $0x30] sm:$0xff]
    %v136 = vld [vmem:[%s7 + $0x38] sm:$0xf]
    %v137 = vld [vmem:[%s7 + $0x3c] sm:$0xff]
    %v138 = vld [vmem:[%s7 + $0x44] sm:$0xf]
    %v139 = vld [vmem:[%s7 + $0x48] sm:$0xff]
    %v140 = vld [vmem:[%s7 + $0x50] sm:$0xf]
    %v141 = vld [vmem:[%s7 + $0x54] sm:$0xff]
    %v142 = vld [vmem:[%s7 + $0x5c] sm:$0xf]
    %v143 = vld [vmem:[%s7 + $0x60] sm:$0xff]
    %v144 = vld [vmem:[%s7 + $0x68] sm:$0xf]
    %v145 = vld [vmem:[%s7 + $0x6c] sm:$0xff]
    %v146 = vld [vmem:[%s7 + $0x74] sm:$0xf]
    %v147 = vld [vmem:[%s7 + $0x78] sm:$0xff]
    %v148 = vld [vmem:[%s7 + $0x80] sm:$0xf]
    %v149 = vld [vmem:[%s7 + $0x84] sm:$0xff]
    %v150 = vld [vmem:[%s7 + $0x8c] sm:$0xf]
    %v151 = vld [vmem:[%s7 + $0x90] sm:$0xff]
    %v152 = vld [vmem:[%s7 + $0x98] sm:$0xf]
    %v153 = vld [vmem:[%s7 + $0x9c] sm:$0xff]
    %v154 = vld [vmem:[%s7 + $0xa4] sm:$0xf]
    %v155 = vld [vmem:[%s7 + $0xa8] sm:$0xff]
    %v156 = vld [vmem:[%s7 + $0xb0] sm:$0xf]
    %v157 = vld [vmem:[%s7 + $0xb4] sm:$0xff]
    %v158 = vld [vmem:[%s7 + $0xbc] sm:$0xf]
    %v159 = vld [vmem:[%s4] sm:$0x7]
    %v160 = vld [vmem:[%s8] sm:$0x7]
    %v161 = vld [vmem:[%s5] sm:$0x1]
    %v162 = vld [vmem:[%s9] sm:$0x1]
    %v163 = vld [vmem:[%s0] sm:$0xff]
    %v164 = vld [vmem:[%s0 + $0x8] sm:$0xff]
    %v165 = vld [vmem:[%s0 + $0x10] sm:$0xff]
    %v166 = vld [vmem:[%s0 + $0x18] sm:$0xff]
    %v167 = vlaneseq
    %v168 = vand.u32 %v167, 127
    %169 = vset.pattern.permute.xlu0 0
    %170 = vperm.xlu0 %169, %v163
    %v171 = vpop.permute.xlu0 %170
    %172 = vset.pattern.permute.xlu0 0
    %173 = vperm.xlu0 %172, %v164
    %v174 = vpop.permute.xlu0 %173
    %175 = vset.pattern.permute.xlu0 0
    %176 = vperm.xlu0 %175, %v165
    %v177 = vpop.permute.xlu0 %176
    %178 = vset.pattern.permute.xlu0 0
    %179 = vperm.xlu0 %178, %v166
    %v180 = vpop.permute.xlu0 %179
    %vm181 = vcmp.eq.s32.totalorder %v171, %v168
    %vm182 = vcmp.eq.s32.totalorder %v174, %v168
    %vm183 = vcmp.eq.s32.totalorder %v177, %v168
    %vm184 = vcmp.eq.s32.totalorder %v180, %v168
    %v185 = vsel %vm181, 1.0, 0.0
    %v186 = vsel %vm182, 1.0, 0.0
    %v187 = vsel %vm183, 1.0, 0.0
    %v188 = vsel %vm184, 1.0, 0.0
    %v189 = vpack.c.bf16 %v186, %v185
    %v190 = vpack.c.bf16 %v188, %v187
    %v191 = vld [vmem:[%s1] sm:$0xf]
    %v192 = vld [vmem:[%s1 + $0x4] sm:$0xf]
    %v193 = vld [vmem:[%s1 + $0x8] sm:$0xf]
    %v194 = vld [vmem:[%s1 + $0xc] sm:$0xf]
    %v195 = vld [vmem:[%s1 + $0x10] sm:$0xf]
    %v196 = vld [vmem:[%s1 + $0x14] sm:$0xf]
    %v197 = vld [vmem:[%s1 + $0x18] sm:$0x1]
    %v205 = vunpack.c.l.b16 %v191
    %v206 = vunpack.c.l.b16 %v192
    %v207 = vunpack.c.l.b16 %v193
    %v208 = vunpack.c.l.b16 %v194
    %v209 = vunpack.c.l.b16 %v195
    %v210 = vunpack.c.l.b16 %v196
    %v211 = vunpack.c.l.b16 %v197
    %v212 = vpack.c.b16 %v206, %v205
    %v213 = vpack.c.b16 %v208, %v207
    %v214 = vpack.c.b16 %v210, %v209
    %v215 = vpack.c.b16 %v211, %v211
    %vm219 = vcmask 408576
    %v221 = vsel %vm219, %v189, 0
    %v224 = vsel %vm219, %v190, 0
    %vm226 = vcmask 1040384
    %v228 = vsel %vm226, %v215, 0
    %230 = vmatpush.bf16.msra.mxu0 0
    %231 = vmatpush.bf16.msra.mxu0 0
    %232 = vmatpush.bf16.msra.mxu0 0
    %233 = vmatpush.bf16.msra.mxu0 0
    %234 = vmatpush.bf16.msra.mxu0 %v228
    %235 = vmatpush.bf16.msra.mxu0 %v214
    %236 = vmatpush.bf16.msra.mxu0 %v213
    %237 = vmatpush.bf16.msra.mxu0 %v212
    %238 = vmatmul.bf16.gmra.mxu0 %v221
    %v239 = vpop.f32.mrf.mxu0
    %v240 = vadd.f32 0.0, %v239
    %v241 = vpop.f32.mrf.mxu0
    %v242 = vadd.f32 0.0, %v241
    %243 = vmatmul.bf16.gmra.mxu0 %v224
    %v244 = vpop.f32.mrf.mxu0
    %v245 = vadd.f32 0.0, %v244
    %v246 = vpop.f32.mrf.mxu0
    %v247 = vadd.f32 0.0, %v246
    %248 = vdwg.mxu0
    %v249 = vpack.c.bf16 %v242, %v240
    %v250 = vpack.c.bf16 %v247, %v245
    %v252 = vperm.slane %v159, 0
    %v253 = vperm.slane %v159, 1
    %v254 = vperm.slane %v159, 2
    %v266 = vunpack.c.l.b16 %v55
    %v267 = vunpack.c.h.b16 %v55
    %v268 = vunpack.c.l.b16 %v56
    %v269 = vunpack.c.l.b16 %v57
    %v270 = vunpack.c.h.b16 %v57
    %v271 = vunpack.c.l.b16 %v58
    %v272 = vunpack.c.l.b16 %v59
    %v273 = vunpack.c.h.b16 %v59
    %v274 = vunpack.c.l.b16 %v60
    %v275 = vunpack.c.l.b16 %v61
    %v276 = vunpack.c.h.b16 %v61
    %v277 = vunpack.c.l.b16 %v62
    %v278 = vpack.c.b16 %v269, %v266
    %v279 = vpack.c.b16 %v270, %v267
    %v280 = vpack.c.b16 %v271, %v268
    %v281 = vpack.c.b16 %v275, %v272
    %v282 = vpack.c.b16 %v276, %v273
    %v283 = vpack.c.b16 %v277, %v274
    %vm290 = vcmask 261120
    %v292 = vsel %vm290, %v249, 0
    %v295 = vsel %vm290, %v250, 0
    %297 = vmatpush.bf16.msra.mxu0 0
    %298 = vmatpush.bf16.msra.mxu0 0
    %299 = vmatpush.bf16.msra.mxu0 0
    %300 = vmatpush.bf16.msra.mxu0 0
    %301 = vmatpush.bf16.msra.mxu0 0
    %302 = vmatpush.bf16.msra.mxu0 0
    %303 = vmatpush.bf16.msra.mxu0 %v281
    %304 = vmatpush.bf16.msra.mxu0 %v278
    %305 = vmatmul.bf16.gmra.mxu0 %v292
    %v306 = vpop.f32.mrf.mxu0
    %v307 = vadd.f32 %v252, %v306
    %v308 = vpop.f32.mrf.mxu0
    %v309 = vadd.f32 %v252, %v308
    %310 = vmatmul.bf16.gmra.mxu0 %v295
    %v311 = vpop.f32.mrf.mxu0
    %v312 = vadd.f32 %v252, %v311
    %v313 = vpop.f32.mrf.mxu0
    %v314 = vadd.f32 %v252, %v313
    %315 = vdwg.mxu0
    %316 = vmatpush.bf16.msra.mxu0 0
    %317 = vmatpush.bf16.msra.mxu0 0
    %318 = vmatpush.bf16.msra.mxu0 0
    %319 = vmatpush.bf16.msra.mxu0 0
    %320 = vmatpush.bf16.msra.mxu0 0
    %321 = vmatpush.bf16.msra.mxu0 0
    %322 = vmatpush.bf16.msra.mxu0 %v282
    %323 = vmatpush.bf16.msra.mxu0 %v279
    %324 = vmatmul.bf16.gmra.mxu0 %v292
    %v325 = vpop.f32.mrf.mxu0
    %v326 = vadd.f32 %v253, %v325
    %v327 = vpop.f32.mrf.mxu0
    %v328 = vadd.f32 %v253, %v327
    %329 = vmatmul.bf16.gmra.mxu0 %v295
    %v330 = vpop.f32.mrf.mxu0
    %v331 = vadd.f32 %v253, %v330
    %v332 = vpop.f32.mrf.mxu0
    %v333 = vadd.f32 %v253, %v332
    %334 = vdwg.mxu0
    %335 = vmatpush.bf16.msra.mxu0 0
    %336 = vmatpush.bf16.msra.mxu0 0
    %337 = vmatpush.bf16.msra.mxu0 0
    %338 = vmatpush.bf16.msra.mxu0 0
    %339 = vmatpush.bf16.msra.mxu0 0
    %340 = vmatpush.bf16.msra.mxu0 0
    %341 = vmatpush.bf16.msra.mxu0 %v283
    %342 = vmatpush.bf16.msra.mxu0 %v280
    %343 = vmatmul.bf16.gmra.mxu0 %v292
    %v344 = vpop.f32.mrf.mxu0
    %v345 = vadd.f32 %v254, %v344
    %v346 = vpop.f32.mrf.mxu0
    %v347 = vadd.f32 %v254, %v346
    %348 = vmatmul.bf16.gmra.mxu0 %v295
    %v349 = vpop.f32.mrf.mxu0
    %v350 = vadd.f32 %v254, %v349
    %v351 = vpop.f32.mrf.mxu0
    %v352 = vadd.f32 %v254, %v351
    %353 = vdwg.mxu0
    %354 = vst [vmem:[#allocation2] sm:$0xff] 0.0
    %v387 = vunpack.c.l.b16 %v95
    %v388 = vunpack.c.h.b16 %v95
    %v389 = vunpack.c.l.b16 %v96
    %v390 = vunpack.c.l.b16 %v97
    %v391 = vunpack.c.h.b16 %v97
    %v392 = vunpack.c.l.b16 %v98
    %v393 = vunpack.c.l.b16 %v99
    %v394 = vunpack.c.h.b16 %v99
    %v395 = vunpack.c.l.b16 %v100
    %v396 = vunpack.c.l.b16 %v101
    %v397 = vunpack.c.h.b16 %v101
    %v398 = vunpack.c.l.b16 %v102
    %v399 = vunpack.c.l.b16 %v103
    %v400 = vunpack.c.h.b16 %v103
    %v401 = vunpack.c.l.b16 %v104
    %v402 = vunpack.c.l.b16 %v105
    %v403 = vunpack.c.h.b16 %v105
    %v404 = vunpack.c.l.b16 %v106
    %v405 = vunpack.c.l.b16 %v107
    %v406 = vunpack.c.h.b16 %v107
    %v407 = vunpack.c.l.b16 %v108
    %v408 = vunpack.c.l.b16 %v109
    %v409 = vunpack.c.h.b16 %v109
    %v410 = vunpack.c.l.b16 %v110
    %v411 = vunpack.c.l.b16 %v111
    %v412 = vunpack.c.h.b16 %v111
    %v413 = vunpack.c.l.b16 %v112
    %v414 = vunpack.c.l.b16 %v113
    %v415 = vunpack.c.h.b16 %v113
    %v416 = vunpack.c.l.b16 %v114
    %v417 = vunpack.c.l.b16 %v115
    %v418 = vunpack.c.h.b16 %v115
    %v419 = vunpack.c.l.b16 %v116
    %v420 = vunpack.c.l.b16 %v117
    %v421 = vunpack.c.h.b16 %v117
    %v422 = vunpack.c.l.b16 %v118
    %v423 = vunpack.c.l.b16 %v119
    %v424 = vunpack.c.h.b16 %v119
    %v425 = vunpack.c.l.b16 %v120
    %v426 = vunpack.c.l.b16 %v121
    %v427 = vunpack.c.h.b16 %v121
    %v428 = vunpack.c.l.b16 %v122
    %v429 = vunpack.c.l.b16 %v123
    %v430 = vunpack.c.h.b16 %v123
    %v431 = vunpack.c.l.b16 %v124
    %v432 = vunpack.c.l.b16 %v125
    %v433 = vunpack.c.h.b16 %v125
    %v434 = vunpack.c.l.b16 %v126
    %v435 = vpack.c.b16 %v390, %v387
    %v436 = vpack.c.b16 %v391, %v388
    %v437 = vpack.c.b16 %v392, %v389
    %v438 = vpack.c.b16 %v396, %v393
    %v439 = vpack.c.b16 %v397, %v394
    %v440 = vpack.c.b16 %v398, %v395
    %v441 = vpack.c.b16 %v402, %v399
    %v442 = vpack.c.b16 %v403, %v400
    %v443 = vpack.c.b16 %v404, %v401
    %v444 = vpack.c.b16 %v408, %v405
    %v445 = vpack.c.b16 %v409, %v406
    %v446 = vpack.c.b16 %v410, %v407
    %v447 = vpack.c.b16 %v414, %v411
    %v448 = vpack.c.b16 %v415, %v412
    %v449 = vpack.c.b16 %v416, %v413
    %v450 = vpack.c.b16 %v420, %v417
    %v451 = vpack.c.b16 %v421, %v418
    %v452 = vpack.c.b16 %v422, %v419
    %v453 = vpack.c.b16 %v426, %v423
    %v454 = vpack.c.b16 %v427, %v424
    %v455 = vpack.c.b16 %v428, %v425
    %v456 = vpack.c.b16 %v432, %v429
    %v457 = vpack.c.b16 %v433, %v430
    %v458 = vpack.c.b16 %v434, %v431
    %483 = vmatpush.bf16.msra.mxu0 %v456
    %484 = vmatpush.bf16.msra.mxu0 %v453
    %485 = vmatpush.bf16.msra.mxu0 %v450
    %486 = vmatpush.bf16.msra.mxu0 %v447
    %487 = vmatpush.bf16.msra.mxu0 %v444
    %488 = vmatpush.bf16.msra.mxu0 %v441
    %489 = vmatpush.bf16.msra.mxu0 %v438
    %490 = vmatpush.bf16.msra.mxu0 %v435
    %491 = vmatmul.bf16.gmra.mxu0 0
    %v492 = vpop.f32.mrf.mxu0
    %v493 = vadd.f32 0.0, %v492
    %v494 = vpop.f32.mrf.mxu0
    %495 = vdwg.mxu0
    %496 = vmatpush.bf16.msra.mxu0 %v457
    %497 = vmatpush.bf16.msra.mxu0 %v454
    %498 = vmatpush.bf16.msra.mxu0 %v451
    %499 = vmatpush.bf16.msra.mxu0 %v448
    %500 = vmatpush.bf16.msra.mxu0 %v445
    %501 = vmatpush.bf16.msra.mxu0 %v442
    %502 = vmatpush.bf16.msra.mxu0 %v439
    %503 = vmatpush.bf16.msra.mxu0 %v436
    %504 = vmatmul.bf16.gmra.mxu0 0
    %v505 = vpop.f32.mrf.mxu0
    %v506 = vadd.f32 0.0, %v505
    %v507 = vpop.f32.mrf.mxu0
    %508 = vdwg.mxu0
    %509 = vmatpush.bf16.msra.mxu0 %v458
    %510 = vmatpush.bf16.msra.mxu0 %v455
    %511 = vmatpush.bf16.msra.mxu0 %v452
    %512 = vmatpush.bf16.msra.mxu0 %v449
    %513 = vmatpush.bf16.msra.mxu0 %v446
    %514 = vmatpush.bf16.msra.mxu0 %v443
    %515 = vmatpush.bf16.msra.mxu0 %v440
    %516 = vmatpush.bf16.msra.mxu0 %v437
    %517 = vmatmul.bf16.gmra.mxu0 0
    %v518 = vpop.f32.mrf.mxu0
    %v519 = vadd.f32 0.0, %v518
    %v520 = vpop.f32.mrf.mxu0
    %521 = vdwg.mxu0
    %v522 = vadd.f32 %v307, %v493
    %v523 = vxor.u32 %v522, 2147483648
    %v524 = vmul.f32 %v523, 1.442695
    %v525 = vpow.pop %v524
    %v526 = vadd.f32 %v525, 1.0
    %v527 = vrcp.pop %v526
    %v528 = vmul.f32 %v526, %v527
    %v529 = vsub.f32 1.0, %v528
    %v530 = vmul.f32 %v527, %v529
    %v531 = vadd.f32 %v527, %v530
    %vm532 = vweird.f32 %v526
    %vm533 = vweird.f32 %v527
    %vm534 = vmor %vm532, %vm533
    %v535 = vsel %vm534, %v527, %v531
    %v536 = vand.u32 2147483647, %v526
    %vm537 = vcmp.eq.f32.partialorder %v536, 8.507059e+37
    %v538 = vand.u32 %v526, 2147483648
    %v539 = vor.u32 1.1754944e-38, %v538
    %v540 = vsel %vm537, %v539, %v535
    %v541 = vmul.f32 1.0, %v540
    %v542 = vadd.f32 %v326, %v506
    %v543 = vxor.u32 %v542, 2147483648
    %v544 = vmul.f32 %v543, 1.442695
    %v545 = vpow.pop %v544
    %v546 = vadd.f32 %v545, 1.0
    %v547 = vrcp.pop %v546
    %v548 = vmul.f32 %v546, %v547
    %v549 = vsub.f32 1.0, %v548
    %v550 = vmul.f32 %v547, %v549
    %v551 = vadd.f32 %v547, %v550
    %vm552 = vweird.f32 %v546
    %vm553 = vweird.f32 %v547
    %vm554 = vmor %vm552, %vm553
    %v555 = vsel %vm554, %v547, %v551
    %v556 = vand.u32 2147483647, %v546
    %vm557 = vcmp.eq.f32.partialorder %v556, 8.507059e+37
    %v558 = vand.u32 %v546, 2147483648
    %v559 = vor.u32 1.1754944e-38, %v558
    %v560 = vsel %vm557, %v559, %v555
    %v561 = vmul.f32 1.0, %v560
    %v563 = vperm.slane %v161, 0
    %v565 = vadd.f32 %v519, %v563
    %v566 = vmul.f32 %v541, %v565
    %v567 = vadd.f32 %v345, %v566
    %v568 = vtanh.pop %v567
    %v569 = vsub.f32 1.0, %v561
    %v570 = vmul.f32 %v569, %v568
    %v571 = vmul.f32 %v561, 0.0
    %v572 = vadd.f32 %v570, %v571
    %v573 = vpack.c.bf16 %v572, %v572
    %v575 = vperm.slane %v160, 0
    %v576 = vperm.slane %v160, 1
    %v577 = vperm.slane %v160, 2
    %v613 = vunpack.c.l.b16 %v63
    %v614 = vunpack.c.h.b16 %v63
    %v615 = vunpack.c.l.b16 %v64
    %v616 = vunpack.c.l.b16 %v65
    %v617 = vunpack.c.h.b16 %v65
    %v618 = vunpack.c.l.b16 %v66
    %v619 = vunpack.c.l.b16 %v67
    %v620 = vunpack.c.h.b16 %v67
    %v621 = vunpack.c.l.b16 %v68
    %v622 = vunpack.c.l.b16 %v69
    %v623 = vunpack.c.h.b16 %v69
    %v624 = vunpack.c.l.b16 %v70
    %v625 = vunpack.c.l.b16 %v71
    %v626 = vunpack.c.h.b16 %v71
    %v627 = vunpack.c.l.b16 %v72
    %v628 = vunpack.c.l.b16 %v73
    %v629 = vunpack.c.h.b16 %v73
    %v630 = vunpack.c.l.b16 %v74
    %v631 = vunpack.c.l.b16 %v75
    %v632 = vunpack.c.h.b16 %v75
    %v633 = vunpack.c.l.b16 %v76
    %v634 = vunpack.c.l.b16 %v77
    %v635 = vunpack.c.h.b16 %v77
    %v636 = vunpack.c.l.b16 %v78
    %v637 = vunpack.c.l.b16 %v79
    %v638 = vunpack.c.h.b16 %v79
    %v639 = vunpack.c.l.b16 %v80
    %v640 = vunpack.c.l.b16 %v81
    %v641 = vunpack.c.h.b16 %v81
    %v642 = vunpack.c.l.b16 %v82
    %v643 = vunpack.c.l.b16 %v83
    %v644 = vunpack.c.h.b16 %v83
    %v645 = vunpack.c.l.b16 %v84
    %v646 = vunpack.c.l.b16 %v85
    %v647 = vunpack.c.h.b16 %v85
    %v648 = vunpack.c.l.b16 %v86
    %v649 = vunpack.c.l.b16 %v87
    %v650 = vunpack.c.h.b16 %v87
    %v651 = vunpack.c.l.b16 %v88
    %v652 = vunpack.c.l.b16 %v89
    %v653 = vunpack.c.h.b16 %v89
    %v654 = vunpack.c.l.b16 %v90
    %v655 = vunpack.c.l.b16 %v91
    %v656 = vunpack.c.h.b16 %v91
    %v657 = vunpack.c.l.b16 %v92
    %v658 = vunpack.c.l.b16 %v93
    %v659 = vunpack.c.h.b16 %v93
    %v660 = vunpack.c.l.b16 %v94
    %v661 = vpack.c.b16 %v616, %v613
    %v662 = vpack.c.b16 %v617, %v614
    %v663 = vpack.c.b16 %v618, %v615
    %v664 = vpack.c.b16 %v622, %v619
    %v665 = vpack.c.b16 %v623, %v620
    %v666 = vpack.c.b16 %v624, %v621
    %v667 = vpack.c.b16 %v628, %v625
    %v668 = vpack.c.b16 %v629, %v626
    %v669 = vpack.c.b16 %v630, %v627
    %v670 = vpack.c.b16 %v634, %v631
    %v671 = vpack.c.b16 %v635, %v632
    %v672 = vpack.c.b16 %v636, %v633
    %v673 = vpack.c.b16 %v640, %v637
    %v674 = vpack.c.b16 %v641, %v638
    %v675 = vpack.c.b16 %v642, %v639
    %v676 = vpack.c.b16 %v646, %v643
    %v677 = vpack.c.b16 %v647, %v644
    %v678 = vpack.c.b16 %v648, %v645
    %v679 = vpack.c.b16 %v652, %v649
    %v680 = vpack.c.b16 %v653, %v650
    %v681 = vpack.c.b16 %v654, %v651
    %v682 = vpack.c.b16 %v658, %v655
    %v683 = vpack.c.b16 %v659, %v656
    %v684 = vpack.c.b16 %v660, %v657
    %709 = vmatpush.bf16.msra.mxu0 %v682
    %710 = vmatpush.bf16.msra.mxu0 %v679
    %711 = vmatpush.bf16.msra.mxu0 %v676
    %712 = vmatpush.bf16.msra.mxu0 %v673
    %713 = vmatpush.bf16.msra.mxu0 %v670
    %714 = vmatpush.bf16.msra.mxu0 %v667
    %715 = vmatpush.bf16.msra.mxu0 %v664
    %716 = vmatpush.bf16.msra.mxu0 %v661
    %717 = vmatmul.bf16.gmra.mxu0 %v573
    %v718 = vpop.f32.mrf.mxu0
    %v719 = vadd.f32 %v575, %v718
    %v720 = vpop.f32.mrf.mxu0
    %721 = vdwg.mxu0
    %722 = vmatpush.bf16.msra.mxu0 %v683
    %723 = vmatpush.bf16.msra.mxu0 %v680
    %724 = vmatpush.bf16.msra.mxu0 %v677
    %725 = vmatpush.bf16.msra.mxu0 %v674
    %726 = vmatpush.bf16.msra.mxu0 %v671
    %727 = vmatpush.bf16.msra.mxu0 %v668
    %728 = vmatpush.bf16.msra.mxu0 %v665
    %729 = vmatpush.bf16.msra.mxu0 %v662
    %730 = vmatmul.bf16.gmra.mxu0 %v573
    %v731 = vpop.f32.mrf.mxu0
    %v732 = vadd.f32 %v576, %v731
    %v733 = vpop.f32.mrf.mxu0
    %734 = vdwg.mxu0
    %735 = vmatpush.bf16.msra.mxu0 %v684
    %736 = vmatpush.bf16.msra.mxu0 %v681
    %737 = vmatpush.bf16.msra.mxu0 %v678
    %738 = vmatpush.bf16.msra.mxu0 %v675
    %739 = vmatpush.bf16.msra.mxu0 %v672
    %740 = vmatpush.bf16.msra.mxu0 %v669
    %741 = vmatpush.bf16.msra.mxu0 %v666
    %742 = vmatpush.bf16.msra.mxu0 %v663
    %743 = vmatmul.bf16.gmra.mxu0 %v573
    %v744 = vpop.f32.mrf.mxu0
    %v745 = vadd.f32 %v577, %v744
    %v746 = vpop.f32.mrf.mxu0
    %747 = vdwg.mxu0
    %v780 = vunpack.c.l.b16 %v127
    %v781 = vunpack.c.h.b16 %v127
    %v782 = vunpack.c.l.b16 %v128
    %v783 = vunpack.c.l.b16 %v129
    %v784 = vunpack.c.h.b16 %v129
    %v785 = vunpack.c.l.b16 %v130
    %v786 = vunpack.c.l.b16 %v131
    %v787 = vunpack.c.h.b16 %v131
    %v788 = vunpack.c.l.b16 %v132
    %v789 = vunpack.c.l.b16 %v133
    %v790 = vunpack.c.h.b16 %v133
    %v791 = vunpack.c.l.b16 %v134
    %v792 = vunpack.c.l.b16 %v135
    %v793 = vunpack.c.h.b16 %v135
    %v794 = vunpack.c.l.b16 %v136
    %v795 = vunpack.c.l.b16 %v137
    %v796 = vunpack.c.h.b16 %v137
    %v797 = vunpack.c.l.b16 %v138
    %v798 = vunpack.c.l.b16 %v139
    %v799 = vunpack.c.h.b16 %v139
    %v800 = vunpack.c.l.b16 %v140
    %v801 = vunpack.c.l.b16 %v141
    %v802 = vunpack.c.h.b16 %v141
    %v803 = vunpack.c.l.b16 %v142
    %v804 = vunpack.c.l.b16 %v143
    %v805 = vunpack.c.h.b16 %v143
    %v806 = vunpack.c.l.b16 %v144
    %v807 = vunpack.c.l.b16 %v145
    %v808 = vunpack.c.h.b16 %v145
    %v809 = vunpack.c.l.b16 %v146
    %v810 = vunpack.c.l.b16 %v147
    %v811 = vunpack.c.h.b16 %v147
    %v812 = vunpack.c.l.b16 %v148
    %v813 = vunpack.c.l.b16 %v149
    %v814 = vunpack.c.h.b16 %v149
    %v815 = vunpack.c.l.b16 %v150
    %v816 = vunpack.c.l.b16 %v151
    %v817 = vunpack.c.h.b16 %v151
    %v818 = vunpack.c.l.b16 %v152
    %v819 = vunpack.c.l.b16 %v153
    %v820 = vunpack.c.h.b16 %v153
    %v821 = vunpack.c.l.b16 %v154
    %v822 = vunpack.c.l.b16 %v155
    %v823 = vunpack.c.h.b16 %v155
    %v824 = vunpack.c.l.b16 %v156
    %v825 = vunpack.c.l.b16 %v157
    %v826 = vunpack.c.h.b16 %v157
    %v827 = vunpack.c.l.b16 %v158
    %v828 = vpack.c.b16 %v783, %v780
    %v829 = vpack.c.b16 %v784, %v781
    %v830 = vpack.c.b16 %v785, %v782
    %v831 = vpack.c.b16 %v789, %v786
    %v832 = vpack.c.b16 %v790, %v787
    %v833 = vpack.c.b16 %v791, %v788
    %v834 = vpack.c.b16 %v795, %v792
    %v835 = vpack.c.b16 %v796, %v793
    %v836 = vpack.c.b16 %v797, %v794
    %v837 = vpack.c.b16 %v801, %v798
    %v838 = vpack.c.b16 %v802, %v799
    %v839 = vpack.c.b16 %v803, %v800
    %v840 = vpack.c.b16 %v807, %v804
    %v841 = vpack.c.b16 %v808, %v805
    %v842 = vpack.c.b16 %v809, %v806
    %v843 = vpack.c.b16 %v813, %v810
    %v844 = vpack.c.b16 %v814, %v811
    %v845 = vpack.c.b16 %v815, %v812
    %v846 = vpack.c.b16 %v819, %v816
    %v847 = vpack.c.b16 %v820, %v817
    %v848 = vpack.c.b16 %v821, %v818
    %v849 = vpack.c.b16 %v825, %v822
    %v850 = vpack.c.b16 %v826, %v823
    %v851 = vpack.c.b16 %v827, %v824
    %876 = vmatpush.bf16.msra.mxu0 %v849
    %877 = vmatpush.bf16.msra.mxu0 %v846
    %878 = vmatpush.bf16.msra.mxu0 %v843
    %879 = vmatpush.bf16.msra.mxu0 %v840
    %880 = vmatpush.bf16.msra.mxu0 %v837
    %881 = vmatpush.bf16.msra.mxu0 %v834
    %882 = vmatpush.bf16.msra.mxu0 %v831
    %883 = vmatpush.bf16.msra.mxu0 %v828
    %884 = vmatmul.bf16.gmra.mxu0 0
    %v885 = vpop.f32.mrf.mxu0
    %v886 = vadd.f32 0.0, %v885
    %v887 = vpop.f32.mrf.mxu0
    %888 = vdwg.mxu0
    %889 = vmatpush.bf16.msra.mxu0 %v850
    %890 = vmatpush.bf16.msra.mxu0 %v847
    %891 = vmatpush.bf16.msra.mxu0 %v844
    %892 = vmatpush.bf16.msra.mxu0 %v841
    %893 = vmatpush.bf16.msra.mxu0 %v838
    %894 = vmatpush.bf16.msra.mxu0 %v835
    %895 = vmatpush.bf16.msra.mxu0 %v832
    %896 = vmatpush.bf16.msra.mxu0 %v829
    %897 = vmatmul.bf16.gmra.mxu0 0
    %v898 = vpop.f32.mrf.mxu0
    %v899 = vadd.f32 0.0, %v898
    %v900 = vpop.f32.mrf.mxu0
    %901 = vdwg.mxu0
    %902 = vmatpush.bf16.msra.mxu0 %v851
    %903 = vmatpush.bf16.msra.mxu0 %v848
    %904 = vmatpush.bf16.msra.mxu0 %v845
    %905 = vmatpush.bf16.msra.mxu0 %v842
    %906 = vmatpush.bf16.msra.mxu0 %v839
    %907 = vmatpush.bf16.msra.mxu0 %v836
    %908 = vmatpush.bf16.msra.mxu0 %v833
    %909 = vmatpush.bf16.msra.mxu0 %v830
    %910 = vmatmul.bf16.gmra.mxu0 0
    %v911 = vpop.f32.mrf.mxu0
    %v912 = vadd.f32 0.0, %v911
    %v913 = vpop.f32.mrf.mxu0
    %914 = vdwg.mxu0
    %v915 = vadd.f32 %v719, %v886
    %v916 = vxor.u32 %v915, 2147483648
    %v917 = vmul.f32 %v916, 1.442695
    %v918 = vpow.pop %v917
    %v919 = vadd.f32 %v918, 1.0
    %v920 = vrcp.pop %v919
    %v921 = vmul.f32 %v919, %v920
    %v922 = vsub.f32 1.0, %v921
    %v923 = vmul.f32 %v920, %v922
    %v924 = vadd.f32 %v920, %v923
    %vm925 = vweird.f32 %v919
    %vm926 = vweird.f32 %v920
    %vm927 = vmor %vm925, %vm926
    %v928 = vsel %vm927, %v920, %v924
    %v929 = vand.u32 2147483647, %v919
    %vm930 = vcmp.eq.f32.partialorder %v929, 8.507059e+37
    %v931 = vand.u32 %v919, 2147483648
    %v932 = vor.u32 1.1754944e-38, %v931
    %v933 = vsel %vm930, %v932, %v928
    %v934 = vmul.f32 1.0, %v933
    %v935 = vadd.f32 %v732, %v899
    %v936 = vxor.u32 %v935, 2147483648
    %v937 = vmul.f32 %v936, 1.442695
    %v938 = vpow.pop %v937
    %v939 = vadd.f32 %v938, 1.0
    %v940 = vrcp.pop %v939
    %v941 = vmul.f32 %v939, %v940
    %v942 = vsub.f32 1.0, %v941
    %v943 = vmul.f32 %v940, %v942
    %v944 = vadd.f32 %v940, %v943
    %vm945 = vweird.f32 %v939
    %vm946 = vweird.f32 %v940
    %vm947 = vmor %vm945, %vm946
    %v948 = vsel %vm947, %v940, %v944
    %v949 = vand.u32 2147483647, %v939
    %vm950 = vcmp.eq.f32.partialorder %v949, 8.507059e+37
    %v951 = vand.u32 %v939, 2147483648
    %v952 = vor.u32 1.1754944e-38, %v951
    %v953 = vsel %vm950, %v952, %v948
    %v954 = vmul.f32 1.0, %v953
    %v956 = vperm.slane %v162, 0
    %v958 = vadd.f32 %v912, %v956
    %v959 = vmul.f32 %v934, %v958
    %v960 = vadd.f32 %v745, %v959
    %v961 = vtanh.pop %v960
    %v962 = vsub.f32 1.0, %v954
    %v963 = vmul.f32 %v962, %v961
    %v964 = vmul.f32 %v954, 0.0
    %v965 = vadd.f32 %v963, %v964
    %966 = vst [vmem:[#allocation2 - $0x7] sm:$0x80] %v965
    %967 = vmatpush.bf16.msra.mxu0 %v456
    %968 = vmatpush.bf16.msra.mxu0 %v453
    %969 = vmatpush.bf16.msra.mxu0 %v450
    %970 = vmatpush.bf16.msra.mxu0 %v447
    %971 = vmatpush.bf16.msra.mxu0 %v444
    %972 = vmatpush.bf16.msra.mxu0 %v441
    %973 = vmatpush.bf16.msra.mxu0 %v438
    %974 = vmatpush.bf16.msra.mxu0 %v435
    %975 = vmatmul.bf16.gmra.mxu0 %v573
    %v976 = vpop.f32.mrf.mxu0
    %v977 = vadd.f32 0.0, %v976
    %v978 = vpop.f32.mrf.mxu0
    %979 = vdwg.mxu0
    %980 = vmatpush.bf16.msra.mxu0 %v457
    %981 = vmatpush.bf16.msra.mxu0 %v454
    %982 = vmatpush.bf16.msra.mxu0 %v451
    %983 = vmatpush.bf16.msra.mxu0 %v448
    %984 = vmatpush.bf16.msra.mxu0 %v445
    %985 = vmatpush.bf16.msra.mxu0 %v442
    %986 = vmatpush.bf16.msra.mxu0 %v439
    %987 = vmatpush.bf16.msra.mxu0 %v436
    %988 = vmatmul.bf16.gmra.mxu0 %v573
    %v989 = vpop.f32.mrf.mxu0
    %v990 = vadd.f32 0.0, %v989
    %v991 = vpop.f32.mrf.mxu0
    %992 = vdwg.mxu0
    %993 = vmatpush.bf16.msra.mxu0 %v458
    %994 = vmatpush.bf16.msra.mxu0 %v455
    %995 = vmatpush.bf16.msra.mxu0 %v452
    %996 = vmatpush.bf16.msra.mxu0 %v449
    %997 = vmatpush.bf16.msra.mxu0 %v446
    %998 = vmatpush.bf16.msra.mxu0 %v443
    %999 = vmatpush.bf16.msra.mxu0 %v440
    %1000 = vmatpush.bf16.msra.mxu0 %v437
    %1001 = vmatmul.bf16.gmra.mxu0 %v573
    %v1002 = vpop.f32.mrf.mxu0
    %v1003 = vadd.f32 0.0, %v1002
    %v1004 = vpop.f32.mrf.mxu0
    %1005 = vdwg.mxu0
    %v1006 = vadd.f32 %v309, %v977
    %v1007 = vxor.u32 %v1006, 2147483648
    %v1008 = vmul.f32 %v1007, 1.442695
    %v1009 = vpow.pop %v1008
    %v1010 = vadd.f32 %v1009, 1.0
    %v1011 = vrcp.pop %v1010
    %v1012 = vmul.f32 %v1010, %v1011
    %v1013 = vsub.f32 1.0, %v1012
    %v1014 = vmul.f32 %v1011, %v1013
    %v1015 = vadd.f32 %v1011, %v1014
    %vm1016 = vweird.f32 %v1010
    %vm1017 = vweird.f32 %v1011
    %vm1018 = vmor %vm1016, %vm1017
    %v1019 = vsel %vm1018, %v1011, %v1015
    %v1020 = vand.u32 2147483647, %v1010
    %vm1021 = vcmp.eq.f32.partialorder %v1020, 8.507059e+37
    %v1022 = vand.u32 %v1010, 2147483648
    %v1023 = vor.u32 1.1754944e-38, %v1022
    %v1024 = vsel %vm1021, %v1023, %v1019
    %v1025 = vmul.f32 1.0, %v1024
    %v1026 = vadd.f32 %v328, %v990
    %v1027 = vxor.u32 %v1026, 2147483648
    %v1028 = vmul.f32 %v1027, 1.442695
    %v1029 = vpow.pop %v1028
    %v1030 = vadd.f32 %v1029, 1.0
    %v1031 = vrcp.pop %v1030
    %v1032 = vmul.f32 %v1030, %v1031
    %v1033 = vsub.f32 1.0, %v1032
    %v1034 = vmul.f32 %v1031, %v1033
    %v1035 = vadd.f32 %v1031, %v1034
    %vm1036 = vweird.f32 %v1030
    %vm1037 = vweird.f32 %v1031
    %vm1038 = vmor %vm1036, %vm1037
    %v1039 = vsel %vm1038, %v1031, %v1035
    %v1040 = vand.u32 2147483647, %v1030
    %vm1041 = vcmp.eq.f32.partialorder %v1040, 8.507059e+37
    %v1042 = vand.u32 %v1030, 2147483648
    %v1043 = vor.u32 1.1754944e-38, %v1042
    %v1044 = vsel %vm1041, %v1043, %v1039
    %v1045 = vmul.f32 1.0, %v1044
    %v1046 = vadd.f32 %v1003, %v563
    %v1047 = vmul.f32 %v1025, %v1046
    %v1048 = vadd.f32 %v347, %v1047
    %v1049 = vtanh.pop %v1048
    %v1050 = vsub.f32 1.0, %v1045
    %v1051 = vmul.f32 %v1050, %v1049
    %v1052 = vmul.f32 %v1045, %v572
    %v1053 = vadd.f32 %v1051, %v1052
    %v1054 = vpack.c.bf16 %v1053, %v1053
    %1055 = vmatpush.bf16.msra.mxu0 %v682
    %1056 = vmatpush.bf16.msra.mxu0 %v679
    %1057 = vmatpush.bf16.msra.mxu0 %v676
    %1058 = vmatpush.bf16.msra.mxu0 %v673
    %1059 = vmatpush.bf16.msra.mxu0 %v670
    %1060 = vmatpush.bf16.msra.mxu0 %v667
    %1061 = vmatpush.bf16.msra.mxu0 %v664
    %1062 = vmatpush.bf16.msra.mxu0 %v661
    %1063 = vmatmul.bf16.gmra.mxu0 %v1054
    %v1064 = vpop.f32.mrf.mxu0
    %v1065 = vadd.f32 %v575, %v1064
    %v1066 = vpop.f32.mrf.mxu0
    %1067 = vdwg.mxu0
    %1068 = vmatpush.bf16.msra.mxu0 %v683
    %1069 = vmatpush.bf16.msra.mxu0 %v680
    %1070 = vmatpush.bf16.msra.mxu0 %v677
    %1071 = vmatpush.bf16.msra.mxu0 %v674
    %1072 = vmatpush.bf16.msra.mxu0 %v671
    %1073 = vmatpush.bf16.msra.mxu0 %v668
    %1074 = vmatpush.bf16.msra.mxu0 %v665
    %1075 = vmatpush.bf16.msra.mxu0 %v662
    %1076 = vmatmul.bf16.gmra.mxu0 %v1054
    %v1077 = vpop.f32.mrf.mxu0
    %v1078 = vadd.f32 %v576, %v1077
    %v1079 = vpop.f32.mrf.mxu0
    %1080 = vdwg.mxu0
    %1081 = vmatpush.bf16.msra.mxu0 %v684
    %1082 = vmatpush.bf16.msra.mxu0 %v681
    %1083 = vmatpush.bf16.msra.mxu0 %v678
    %1084 = vmatpush.bf16.msra.mxu0 %v675
    %1085 = vmatpush.bf16.msra.mxu0 %v672
    %1086 = vmatpush.bf16.msra.mxu0 %v669
    %1087 = vmatpush.bf16.msra.mxu0 %v666
    %1088 = vmatpush.bf16.msra.mxu0 %v663
    %1089 = vmatmul.bf16.gmra.mxu0 %v1054
    %v1090 = vpop.f32.mrf.mxu0
    %v1091 = vadd.f32 %v577, %v1090
    %v1092 = vpop.f32.mrf.mxu0
    %1093 = vdwg.mxu0
    %v1094 = vpack.c.bf16 %v965, %v965
    %1095 = vmatpush.bf16.msra.mxu0 %v849
    %1096 = vmatpush.bf16.msra.mxu0 %v846
    %1097 = vmatpush.bf16.msra.mxu0 %v843
    %1098 = vmatpush.bf16.msra.mxu0 %v840
    %1099 = vmatpush.bf16.msra.mxu0 %v837
    %1100 = vmatpush.bf16.msra.mxu0 %v834
    %1101 = vmatpush.bf16.msra.mxu0 %v831
    %1102 = vmatpush.bf16.msra.mxu0 %v828
    %1103 = vmatmul.bf16.gmra.mxu0 %v1094
    %v1104 = vpop.f32.mrf.mxu0
    %v1105 = vadd.f32 0.0, %v1104
    %v1106 = vpop.f32.mrf.mxu0
    %1107 = vdwg.mxu0
    %1108 = vmatpush.bf16.msra.mxu0 %v850
    %1109 = vmatpush.bf16.msra.mxu0 %v847
    %1110 = vmatpush.bf16.msra.mxu0 %v844
    %1111 = vmatpush.bf16.msra.mxu0 %v841
    %1112 = vmatpush.bf16.msra.mxu0 %v838
    %1113 = vmatpush.bf16.msra.mxu0 %v835
    %1114 = vmatpush.bf16.msra.mxu0 %v832
    %1115 = vmatpush.bf16.msra.mxu0 %v829
    %1116 = vmatmul.bf16.gmra.mxu0 %v1094
    %v1117 = vpop.f32.mrf.mxu0
    %v1118 = vadd.f32 0.0, %v1117
    %v1119 = vpop.f32.mrf.mxu0
    %1120 = vdwg.mxu0
    %1121 = vmatpush.bf16.msra.mxu0 %v851
    %1122 = vmatpush.bf16.msra.mxu0 %v848
    %1123 = vmatpush.bf16.msra.mxu0 %v845
    %1124 = vmatpush.bf16.msra.mxu0 %v842
    %1125 = vmatpush.bf16.msra.mxu0 %v839
    %1126 = vmatpush.bf16.msra.mxu0 %v836
    %1127 = vmatpush.bf16.msra.mxu0 %v833
    %1128 = vmatpush.bf16.msra.mxu0 %v830
    %1129 = vmatmul.bf16.gmra.mxu0 %v1094
    %v1130 = vpop.f32.mrf.mxu0
    %v1131 = vadd.f32 0.0, %v1130
    %v1132 = vpop.f32.mrf.mxu0
    %1133 = vdwg.mxu0
    %v1134 = vadd.f32 %v1065, %v1105
    %v1135 = vxor.u32 %v1134, 2147483648
    %v1136 = vmul.f32 %v1135, 1.442695
    %v1137 = vpow.pop %v1136
    %v1138 = vadd.f32 %v1137, 1.0
    %v1139 = vrcp.pop %v1138
    %v1140 = vmul.f32 %v1138, %v1139
    %v1141 = vsub.f32 1.0, %v1140
    %v1142 = vmul.f32 %v1139, %v1141
    %v1143 = vadd.f32 %v1139, %v1142
    %vm1144 = vweird.f32 %v1138
    %vm1145 = vweird.f32 %v1139
    %vm1146 = vmor %vm1144, %vm1145
    %v1147 = vsel %vm1146, %v1139, %v1143
    %v1148 = vand.u32 2147483647, %v1138
    %vm1149 = vcmp.eq.f32.partialorder %v1148, 8.507059e+37
    %v1150 = vand.u32 %v1138, 2147483648
    %v1151 = vor.u32 1.1754944e-38, %v1150
    %v1152 = vsel %vm1149, %v1151, %v1147
    %v1153 = vmul.f32 1.0, %v1152
    %v1154 = vadd.f32 %v1078, %v1118
    %v1155 = vxor.u32 %v1154, 2147483648
    %v1156 = vmul.f32 %v1155, 1.442695
    %v1157 = vpow.pop %v1156
    %v1158 = vadd.f32 %v1157, 1.0
    %v1159 = vrcp.pop %v1158
    %v1160 = vmul.f32 %v1158, %v1159
    %v1161 = vsub.f32 1.0, %v1160
    %v1162 = vmul.f32 %v1159, %v1161
    %v1163 = vadd.f32 %v1159, %v1162
    %vm1164 = vweird.f32 %v1158
    %vm1165 = vweird.f32 %v1159
    %vm1166 = vmor %vm1164, %vm1165
    %v1167 = vsel %vm1166, %v1159, %v1163
    %v1168 = vand.u32 2147483647, %v1158
    %vm1169 = vcmp.eq.f32.partialorder %v1168, 8.507059e+37
    %v1170 = vand.u32 %v1158, 2147483648
    %v1171 = vor.u32 1.1754944e-38, %v1170
    %v1172 = vsel %vm1169, %v1171, %v1167
    %v1173 = vmul.f32 1.0, %v1172
    %v1174 = vadd.f32 %v1131, %v956
    %v1175 = vmul.f32 %v1153, %v1174
    %v1176 = vadd.f32 %v1091, %v1175
    %v1177 = vtanh.pop %v1176
    %v1178 = vsub.f32 1.0, %v1173
    %v1179 = vmul.f32 %v1178, %v1177
    %v1180 = vmul.f32 %v1173, %v965
    %v1181 = vadd.f32 %v1179, %v1180
    %1182 = vst [vmem:[#allocation2 - $0x6] sm:$0x80] %v1181
    %1183 = vmatpush.bf16.msra.mxu0 %v456
    %1184 = vmatpush.bf16.msra.mxu0 %v453
    %1185 = vmatpush.bf16.msra.mxu0 %v450
    %1186 = vmatpush.bf16.msra.mxu0 %v447
    %1187 = vmatpush.bf16.msra.mxu0 %v444
    %1188 = vmatpush.bf16.msra.mxu0 %v441
    %1189 = vmatpush.bf16.msra.mxu0 %v438
    %1190 = vmatpush.bf16.msra.mxu0 %v435
    %1191 = vmatmul.bf16.gmra.mxu0 %v1054
    %v1192 = vpop.f32.mrf.mxu0
    %v1193 = vadd.f32 0.0, %v1192
    %v1194 = vpop.f32.mrf.mxu0
    %1195 = vdwg.mxu0
    %1196 = vmatpush.bf16.msra.mxu0 %v457
    %1197 = vmatpush.bf16.msra.mxu0 %v454
    %1198 = vmatpush.bf16.msra.mxu0 %v451
    %1199 = vmatpush.bf16.msra.mxu0 %v448
    %1200 = vmatpush.bf16.msra.mxu0 %v445
    %1201 = vmatpush.bf16.msra.mxu0 %v442
    %1202 = vmatpush.bf16.msra.mxu0 %v439
    %1203 = vmatpush.bf16.msra.mxu0 %v436
    %1204 = vmatmul.bf16.gmra.mxu0 %v1054
    %v1205 = vpop.f32.mrf.mxu0
    %v1206 = vadd.f32 0.0, %v1205
    %v1207 = vpop.f32.mrf.mxu0
    %1208 = vdwg.mxu0
    %1209 = vmatpush.bf16.msra.mxu0 %v458
    %1210 = vmatpush.bf16.msra.mxu0 %v455
    %1211 = vmatpush.bf16.msra.mxu0 %v452
    %1212 = vmatpush.bf16.msra.mxu0 %v449
    %1213 = vmatpush.bf16.msra.mxu0 %v446
    %1214 = vmatpush.bf16.msra.mxu0 %v443
    %1215 = vmatpush.bf16.msra.mxu0 %v440
    %1216 = vmatpush.bf16.msra.mxu0 %v437
    %1217 = vmatmul.bf16.gmra.mxu0 %v1054
    %v1218 = vpop.f32.mrf.mxu0
    %v1219 = vadd.f32 0.0, %v1218
    %v1220 = vpop.f32.mrf.mxu0
    %1221 = vdwg.mxu0
    %v1222 = vadd.f32 %v312, %v1193
    %v1223 = vxor.u32 %v1222, 2147483648
    %v1224 = vmul.f32 %v1223, 1.442695
    %v1225 = vpow.pop %v1224
    %v1226 = vadd.f32 %v1225, 1.0
    %v1227 = vrcp.pop %v1226
    %v1228 = vmul.f32 %v1226, %v1227
    %v1229 = vsub.f32 1.0, %v1228
    %v1230 = vmul.f32 %v1227, %v1229
    %v1231 = vadd.f32 %v1227, %v1230
    %vm1232 = vweird.f32 %v1226
    %vm1233 = vweird.f32 %v1227
    %vm1234 = vmor %vm1232, %vm1233
    %v1235 = vsel %vm1234, %v1227, %v1231
    %v1236 = vand.u32 2147483647, %v1226
    %vm1237 = vcmp.eq.f32.partialorder %v1236, 8.507059e+37
    %v1238 = vand.u32 %v1226, 2147483648
    %v1239 = vor.u32 1.1754944e-38, %v1238
    %v1240 = vsel %vm1237, %v1239, %v1235
    %v1241 = vmul.f32 1.0, %v1240
    %v1242 = vadd.f32 %v331, %v1206
    %v1243 = vxor.u32 %v1242, 2147483648
    %v1244 = vmul.f32 %v1243, 1.442695
    %v1245 = vpow.pop %v1244
    %v1246 = vadd.f32 %v1245, 1.0
    %v1247 = vrcp.pop %v1246
    %v1248 = vmul.f32 %v1246, %v1247
    %v1249 = vsub.f32 1.0, %v1248
    %v1250 = vmul.f32 %v1247, %v1249
    %v1251 = vadd.f32 %v1247, %v1250
    %vm1252 = vweird.f32 %v1246
    %vm1253 = vweird.f32 %v1247
    %vm1254 = vmor %vm1252, %vm1253
    %v1255 = vsel %vm1254, %v1247, %v1251
    %v1256 = vand.u32 2147483647, %v1246
    %vm1257 = vcmp.eq.f32.partialorder %v1256, 8.507059e+37
    %v1258 = vand.u32 %v1246, 2147483648
    %v1259 = vor.u32 1.1754944e-38, %v1258
    %v1260 = vsel %vm1257, %v1259, %v1255
    %v1261 = vmul.f32 1.0, %v1260
    %v1262 = vadd.f32 %v1219, %v563
    %v1263 = vmul.f32 %v1241, %v1262
    %v1264 = vadd.f32 %v350, %v1263
    %v1265 = vtanh.pop %v1264
    %v1266 = vsub.f32 1.0, %v1261
    %v1267 = vmul.f32 %v1266, %v1265
    %v1268 = vmul.f32 %v1261, %v1053
    %v1269 = vadd.f32 %v1267, %v1268
    %v1270 = vpack.c.bf16 %v1269, %v1269
    %1271 = vmatpush.bf16.msra.mxu0 %v682
    %1272 = vmatpush.bf16.msra.mxu0 %v679
    %1273 = vmatpush.bf16.msra.mxu0 %v676
    %1274 = vmatpush.bf16.msra.mxu0 %v673
    %1275 = vmatpush.bf16.msra.mxu0 %v670
    %1276 = vmatpush.bf16.msra.mxu0 %v667
    %1277 = vmatpush.bf16.msra.mxu0 %v664
    %1278 = vmatpush.bf16.msra.mxu0 %v661
    %1279 = vmatmul.bf16.gmra.mxu0 %v1270
    %v1280 = vpop.f32.mrf.mxu0
    %v1281 = vadd.f32 %v575, %v1280
    %v1282 = vpop.f32.mrf.mxu0
    %1283 = vdwg.mxu0
    %1284 = vmatpush.bf16.msra.mxu0 %v683
    %1285 = vmatpush.bf16.msra.mxu0 %v680
    %1286 = vmatpush.bf16.msra.mxu0 %v677
    %1287 = vmatpush.bf16.msra.mxu0 %v674
    %1288 = vmatpush.bf16.msra.mxu0 %v671
    %1289 = vmatpush.bf16.msra.mxu0 %v668
    %1290 = vmatpush.bf16.msra.mxu0 %v665
    %1291 = vmatpush.bf16.msra.mxu0 %v662
    %1292 = vmatmul.bf16.gmra.mxu0 %v1270
    %v1293 = vpop.f32.mrf.mxu0
    %v1294 = vadd.f32 %v576, %v1293
    %v1295 = vpop.f32.mrf.mxu0
    %1296 = vdwg.mxu0
    %1297 = vmatpush.bf16.msra.mxu0 %v684
    %1298 = vmatpush.bf16.msra.mxu0 %v681
    %1299 = vmatpush.bf16.msra.mxu0 %v678
    %1300 = vmatpush.bf16.msra.mxu0 %v675
    %1301 = vmatpush.bf16.msra.mxu0 %v672
    %1302 = vmatpush.bf16.msra.mxu0 %v669
    %1303 = vmatpush.bf16.msra.mxu0 %v666
    %1304 = vmatpush.bf16.msra.mxu0 %v663
    %1305 = vmatmul.bf16.gmra.mxu0 %v1270
    %v1306 = vpop.f32.mrf.mxu0
    %v1307 = vadd.f32 %v577, %v1306
    %v1308 = vpop.f32.mrf.mxu0
    %1309 = vdwg.mxu0
    %v1310 = vpack.c.bf16 %v1181, %v1181
    %1311 = vmatpush.bf16.msra.mxu0 %v849
    %1312 = vmatpush.bf16.msra.mxu0 %v846
    %1313 = vmatpush.bf16.msra.mxu0 %v843
    %1314 = vmatpush.bf16.msra.mxu0 %v840
    %1315 = vmatpush.bf16.msra.mxu0 %v837
    %1316 = vmatpush.bf16.msra.mxu0 %v834
    %1317 = vmatpush.bf16.msra.mxu0 %v831
    %1318 = vmatpush.bf16.msra.mxu0 %v828
    %1319 = vmatmul.bf16.gmra.mxu0 %v1310
    %v1320 = vpop.f32.mrf.mxu0
    %v1321 = vadd.f32 0.0, %v1320
    %v1322 = vpop.f32.mrf.mxu0
    %1323 = vdwg.mxu0
    %1324 = vmatpush.bf16.msra.mxu0 %v850
    %1325 = vmatpush.bf16.msra.mxu0 %v847
    %1326 = vmatpush.bf16.msra.mxu0 %v844
    %1327 = vmatpush.bf16.msra.mxu0 %v841
    %1328 = vmatpush.bf16.msra.mxu0 %v838
    %1329 = vmatpush.bf16.msra.mxu0 %v835
    %1330 = vmatpush.bf16.msra.mxu0 %v832
    %1331 = vmatpush.bf16.msra.mxu0 %v829
    %1332 = vmatmul.bf16.gmra.mxu0 %v1310
    %v1333 = vpop.f32.mrf.mxu0
    %v1334 = vadd.f32 0.0, %v1333
    %v1335 = vpop.f32.mrf.mxu0
    %1336 = vdwg.mxu0
    %1337 = vmatpush.bf16.msra.mxu0 %v851
    %1338 = vmatpush.bf16.msra.mxu0 %v848
    %1339 = vmatpush.bf16.msra.mxu0 %v845
    %1340 = vmatpush.bf16.msra.mxu0 %v842
    %1341 = vmatpush.bf16.msra.mxu0 %v839
    %1342 = vmatpush.bf16.msra.mxu0 %v836
    %1343 = vmatpush.bf16.msra.mxu0 %v833
    %1344 = vmatpush.bf16.msra.mxu0 %v830
    %1345 = vmatmul.bf16.gmra.mxu0 %v1310
    %v1346 = vpop.f32.mrf.mxu0
    %v1347 = vadd.f32 0.0, %v1346
    %v1348 = vpop.f32.mrf.mxu0
    %1349 = vdwg.mxu0
    %v1350 = vadd.f32 %v1281, %v1321
    %v1351 = vxor.u32 %v1350, 2147483648
    %v1352 = vmul.f32 %v1351, 1.442695
    %v1353 = vpow.pop %v1352
    %v1354 = vadd.f32 %v1353, 1.0
    %v1355 = vrcp.pop %v1354
    %v1356 = vmul.f32 %v1354, %v1355
    %v1357 = vsub.f32 1.0, %v1356
    %v1358 = vmul.f32 %v1355, %v1357
    %v1359 = vadd.f32 %v1355, %v1358
    %vm1360 = vweird.f32 %v1354
    %vm1361 = vweird.f32 %v1355
    %vm1362 = vmor %vm1360, %vm1361
    %v1363 = vsel %vm1362, %v1355, %v1359
    %v1364 = vand.u32 2147483647, %v1354
    %vm1365 = vcmp.eq.f32.partialorder %v1364, 8.507059e+37
    %v1366 = vand.u32 %v1354, 2147483648
    %v1367 = vor.u32 1.1754944e-38, %v1366
    %v1368 = vsel %vm1365, %v1367, %v1363
    %v1369 = vmul.f32 1.0, %v1368
    %v1370 = vadd.f32 %v1294, %v1334
    %v1371 = vxor.u32 %v1370, 2147483648
    %v1372 = vmul.f32 %v1371, 1.442695
    %v1373 = vpow.pop %v1372
    %v1374 = vadd.f32 %v1373, 1.0
    %v1375 = vrcp.pop %v1374
    %v1376 = vmul.f32 %v1374, %v1375
    %v1377 = vsub.f32 1.0, %v1376
    %v1378 = vmul.f32 %v1375, %v1377
    %v1379 = vadd.f32 %v1375, %v1378
    %vm1380 = vweird.f32 %v1374
    %vm1381 = vweird.f32 %v1375
    %vm1382 = vmor %vm1380, %vm1381
    %v1383 = vsel %vm1382, %v1375, %v1379
    %v1384 = vand.u32 2147483647, %v1374
    %vm1385 = vcmp.eq.f32.partialorder %v1384, 8.507059e+37
    %v1386 = vand.u32 %v1374, 2147483648
    %v1387 = vor.u32 1.1754944e-38, %v1386
    %v1388 = vsel %vm1385, %v1387, %v1383
    %v1389 = vmul.f32 1.0, %v1388
    %v1390 = vadd.f32 %v1347, %v956
    %v1391 = vmul.f32 %v1369, %v1390
    %v1392 = vadd.f32 %v1307, %v1391
    %v1393 = vtanh.pop %v1392
    %v1394 = vsub.f32 1.0, %v1389
    %v1395 = vmul.f32 %v1394, %v1393
    %v1396 = vmul.f32 %v1389, %v1181
    %v1397 = vadd.f32 %v1395, %v1396
    %1398 = vst [vmem:[#allocation2 - $0x5] sm:$0x80] %v1397
    %1399 = vmatpush.bf16.msra.mxu0 %v456
    %1400 = vmatpush.bf16.msra.mxu0 %v453
    %1401 = vmatpush.bf16.msra.mxu0 %v450
    %1402 = vmatpush.bf16.msra.mxu0 %v447
    %1403 = vmatpush.bf16.msra.mxu0 %v444
    %1404 = vmatpush.bf16.msra.mxu0 %v441
    %1405 = vmatpush.bf16.msra.mxu0 %v438
    %1406 = vmatpush.bf16.msra.mxu0 %v435
    %1407 = vmatmul.bf16.gmra.mxu0 %v1270
    %v1408 = vpop.f32.mrf.mxu0
    %v1409 = vadd.f32 0.0, %v1408
    %v1410 = vpop.f32.mrf.mxu0
    %1411 = vdwg.mxu0
    %1412 = vmatpush.bf16.msra.mxu0 %v457
    %1413 = vmatpush.bf16.msra.mxu0 %v454
    %1414 = vmatpush.bf16.msra.mxu0 %v451
    %1415 = vmatpush.bf16.msra.mxu0 %v448
    %1416 = vmatpush.bf16.msra.mxu0 %v445
    %1417 = vmatpush.bf16.msra.mxu0 %v442
    %1418 = vmatpush.bf16.msra.mxu0 %v439
    %1419 = vmatpush.bf16.msra.mxu0 %v436
    %1420 = vmatmul.bf16.gmra.mxu0 %v1270
    %v1421 = vpop.f32.mrf.mxu0
    %v1422 = vadd.f32 0.0, %v1421
    %v1423 = vpop.f32.mrf.mxu0
    %1424 = vdwg.mxu0
    %1425 = vmatpush.bf16.msra.mxu0 %v458
    %1426 = vmatpush.bf16.msra.mxu0 %v455
    %1427 = vmatpush.bf16.msra.mxu0 %v452
    %1428 = vmatpush.bf16.msra.mxu0 %v449
    %1429 = vmatpush.bf16.msra.mxu0 %v446
    %1430 = vmatpush.bf16.msra.mxu0 %v443
    %1431 = vmatpush.bf16.msra.mxu0 %v440
    %1432 = vmatpush.bf16.msra.mxu0 %v437
    %1433 = vmatmul.bf16.gmra.mxu0 %v1270
    %v1434 = vpop.f32.mrf.mxu0
    %v1435 = vadd.f32 0.0, %v1434
    %v1436 = vpop.f32.mrf.mxu0
    %1437 = vdwg.mxu0
    %v1438 = vadd.f32 %v314, %v1409
    %v1439 = vxor.u32 %v1438, 2147483648
    %v1440 = vmul.f32 %v1439, 1.442695
    %v1441 = vpow.pop %v1440
    %v1442 = vadd.f32 %v1441, 1.0
    %v1443 = vrcp.pop %v1442
    %v1444 = vmul.f32 %v1442, %v1443
    %v1445 = vsub.f32 1.0, %v1444
    %v1446 = vmul.f32 %v1443, %v1445
    %v1447 = vadd.f32 %v1443, %v1446
    %vm1448 = vweird.f32 %v1442
    %vm1449 = vweird.f32 %v1443
    %vm1450 = vmor %vm1448, %vm1449
    %v1451 = vsel %vm1450, %v1443, %v1447
    %v1452 = vand.u32 2147483647, %v1442
    %vm1453 = vcmp.eq.f32.partialorder %v1452, 8.507059e+37
    %v1454 = vand.u32 %v1442, 2147483648
    %v1455 = vor.u32 1.1754944e-38, %v1454
    %v1456 = vsel %vm1453, %v1455, %v1451
    %v1457 = vmul.f32 1.0, %v1456
    %v1458 = vadd.f32 %v333, %v1422
    %v1459 = vxor.u32 %v1458, 2147483648
    %v1460 = vmul.f32 %v1459, 1.442695
    %v1461 = vpow.pop %v1460
    %v1462 = vadd.f32 %v1461, 1.0
    %v1463 = vrcp.pop %v1462
    %v1464 = vmul.f32 %v1462, %v1463
    %v1465 = vsub.f32 1.0, %v1464
    %v1466 = vmul.f32 %v1463, %v1465
    %v1467 = vadd.f32 %v1463, %v1466
    %vm1468 = vweird.f32 %v1462
    %vm1469 = vweird.f32 %v1463
    %vm1470 = vmor %vm1468, %vm1469
    %v1471 = vsel %vm1470, %v1463, %v1467
    %v1472 = vand.u32 2147483647, %v1462
    %vm1473 = vcmp.eq.f32.partialorder %v1472, 8.507059e+37
    %v1474 = vand.u32 %v1462, 2147483648
    %v1475 = vor.u32 1.1754944e-38, %v1474
    %v1476 = vsel %vm1473, %v1475, %v1471
    %v1477 = vmul.f32 1.0, %v1476
    %v1478 = vadd.f32 %v1435, %v563
    %v1479 = vmul.f32 %v1457, %v1478
    %v1480 = vadd.f32 %v352, %v1479
    %v1481 = vtanh.pop %v1480
    %v1482 = vsub.f32 1.0, %v1477
    %v1483 = vmul.f32 %v1482, %v1481
    %v1484 = vmul.f32 %v1477, %v1269
    %v1485 = vadd.f32 %v1483, %v1484
    %v1486 = vpack.c.bf16 %v1485, %v1485
    %1487 = vmatpush.bf16.msra.mxu0 %v682
    %1488 = vmatpush.bf16.msra.mxu0 %v679
    %1489 = vmatpush.bf16.msra.mxu0 %v676
    %1490 = vmatpush.bf16.msra.mxu0 %v673
    %1491 = vmatpush.bf16.msra.mxu0 %v670
    %1492 = vmatpush.bf16.msra.mxu0 %v667
    %1493 = vmatpush.bf16.msra.mxu0 %v664
    %1494 = vmatpush.bf16.msra.mxu0 %v661
    %1495 = vmatmul.bf16.gmra.mxu0 %v1486
    %v1496 = vpop.f32.mrf.mxu0
    %v1497 = vadd.f32 %v575, %v1496
    %v1498 = vpop.f32.mrf.mxu0
    %1499 = vdwg.mxu0
    %1500 = vmatpush.bf16.msra.mxu0 %v683
    %1501 = vmatpush.bf16.msra.mxu0 %v680
    %1502 = vmatpush.bf16.msra.mxu0 %v677
    %1503 = vmatpush.bf16.msra.mxu0 %v674
    %1504 = vmatpush.bf16.msra.mxu0 %v671
    %1505 = vmatpush.bf16.msra.mxu0 %v668
    %1506 = vmatpush.bf16.msra.mxu0 %v665
    %1507 = vmatpush.bf16.msra.mxu0 %v662
    %1508 = vmatmul.bf16.gmra.mxu0 %v1486
    %v1509 = vpop.f32.mrf.mxu0
    %v1510 = vadd.f32 %v576, %v1509
    %v1511 = vpop.f32.mrf.mxu0
    %1512 = vdwg.mxu0
    %1513 = vmatpush.bf16.msra.mxu0 %v684
    %1514 = vmatpush.bf16.msra.mxu0 %v681
    %1515 = vmatpush.bf16.msra.mxu0 %v678
    %1516 = vmatpush.bf16.msra.mxu0 %v675
    %1517 = vmatpush.bf16.msra.mxu0 %v672
    %1518 = vmatpush.bf16.msra.mxu0 %v669
    %1519 = vmatpush.bf16.msra.mxu0 %v666
    %1520 = vmatpush.bf16.msra.mxu0 %v663
    %1521 = vmatmul.bf16.gmra.mxu0 %v1486
    %v1522 = vpop.f32.mrf.mxu0
    %v1523 = vadd.f32 %v577, %v1522
    %v1524 = vpop.f32.mrf.mxu0
    %1525 = vdwg.mxu0
    %v1526 = vpack.c.bf16 %v1397, %v1397
    %1527 = vmatpush.bf16.msra.mxu0 %v849
    %1528 = vmatpush.bf16.msra.mxu0 %v846
    %1529 = vmatpush.bf16.msra.mxu0 %v843
    %1530 = vmatpush.bf16.msra.mxu0 %v840
    %1531 = vmatpush.bf16.msra.mxu0 %v837
    %1532 = vmatpush.bf16.msra.mxu0 %v834
    %1533 = vmatpush.bf16.msra.mxu0 %v831
    %1534 = vmatpush.bf16.msra.mxu0 %v828
    %1535 = vmatmul.bf16.gmra.mxu0 %v1526
    %v1536 = vpop.f32.mrf.mxu0
    %v1537 = vadd.f32 0.0, %v1536
    %v1538 = vpop.f32.mrf.mxu0
    %1539 = vdwg.mxu0
    %1540 = vmatpush.bf16.msra.mxu0 %v850
    %1541 = vmatpush.bf16.msra.mxu0 %v847
    %1542 = vmatpush.bf16.msra.mxu0 %v844
    %1543 = vmatpush.bf16.msra.mxu0 %v841
    %1544 = vmatpush.bf16.msra.mxu0 %v838
    %1545 = vmatpush.bf16.msra.mxu0 %v835
    %1546 = vmatpush.bf16.msra.mxu0 %v832
    %1547 = vmatpush.bf16.msra.mxu0 %v829
    %1548 = vmatmul.bf16.gmra.mxu0 %v1526
    %v1549 = vpop.f32.mrf.mxu0
    %v1550 = vadd.f32 0.0, %v1549
    %v1551 = vpop.f32.mrf.mxu0
    %1552 = vdwg.mxu0
    %1553 = vmatpush.bf16.msra.mxu0 %v851
    %1554 = vmatpush.bf16.msra.mxu0 %v848
    %1555 = vmatpush.bf16.msra.mxu0 %v845
    %1556 = vmatpush.bf16.msra.mxu0 %v842
    %1557 = vmatpush.bf16.msra.mxu0 %v839
    %1558 = vmatpush.bf16.msra.mxu0 %v836
    %1559 = vmatpush.bf16.msra.mxu0 %v833
    %1560 = vmatpush.bf16.msra.mxu0 %v830
    %1561 = vmatmul.bf16.gmra.mxu0 %v1526
    %v1562 = vpop.f32.mrf.mxu0
    %v1563 = vadd.f32 0.0, %v1562
    %v1564 = vpop.f32.mrf.mxu0
    %1565 = vdwg.mxu0
    %v1566 = vadd.f32 %v1497, %v1537
    %v1567 = vxor.u32 %v1566, 2147483648
    %v1568 = vmul.f32 %v1567, 1.442695
    %v1569 = vpow.pop %v1568
    %v1570 = vadd.f32 %v1569, 1.0
    %v1571 = vrcp.pop %v1570
    %v1572 = vmul.f32 %v1570, %v1571
    %v1573 = vsub.f32 1.0, %v1572
    %v1574 = vmul.f32 %v1571, %v1573
    %v1575 = vadd.f32 %v1571, %v1574
    %vm1576 = vweird.f32 %v1570
    %vm1577 = vweird.f32 %v1571
    %vm1578 = vmor %vm1576, %vm1577
    %v1579 = vsel %vm1578, %v1571, %v1575
    %v1580 = vand.u32 2147483647, %v1570
    %vm1581 = vcmp.eq.f32.partialorder %v1580, 8.507059e+37
    %v1582 = vand.u32 %v1570, 2147483648
    %v1583 = vor.u32 1.1754944e-38, %v1582
    %v1584 = vsel %vm1581, %v1583, %v1579
    %v1585 = vmul.f32 1.0, %v1584
    %v1586 = vadd.f32 %v1510, %v1550
    %v1587 = vxor.u32 %v1586, 2147483648
    %v1588 = vmul.f32 %v1587, 1.442695
    %v1589 = vpow.pop %v1588
    %v1590 = vadd.f32 %v1589, 1.0
    %v1591 = vrcp.pop %v1590
    %v1592 = vmul.f32 %v1590, %v1591
    %v1593 = vsub.f32 1.0, %v1592
    %v1594 = vmul.f32 %v1591, %v1593
    %v1595 = vadd.f32 %v1591, %v1594
    %vm1596 = vweird.f32 %v1590
    %vm1597 = vweird.f32 %v1591
    %vm1598 = vmor %vm1596, %vm1597
    %v1599 = vsel %vm1598, %v1591, %v1595
    %v1600 = vand.u32 2147483647, %v1590
    %vm1601 = vcmp.eq.f32.partialorder %v1600, 8.507059e+37
    %v1602 = vand.u32 %v1590, 2147483648
    %v1603 = vor.u32 1.1754944e-38, %v1602
    %v1604 = vsel %vm1601, %v1603, %v1599
    %v1605 = vmul.f32 1.0, %v1604
    %v1606 = vadd.f32 %v1563, %v956
    %v1607 = vmul.f32 %v1585, %v1606
    %v1608 = vadd.f32 %v1523, %v1607
    %v1609 = vtanh.pop %v1608
    %v1610 = vsub.f32 1.0, %v1605
    %v1611 = vmul.f32 %v1610, %v1609
    %v1612 = vmul.f32 %v1605, %v1397
    %v1613 = vadd.f32 %v1611, %v1612
    %1614 = vst [vmem:[#allocation2 - $0x4] sm:$0x80] %v1613
    %v1615 = vld [vmem:[#allocation2] sm:$0xff]
    %v1616 = vpack.c.bf16 %v1615, %v1615
    %v1617 = vld [vmem:[%s10] sm:$0xff]
    %v1618 = vld [vmem:[%s10 + $0x8] sm:$0xff]
    %v1619 = vld [vmem:[%s10 + $0x10] sm:$0xf]
    %v1620 = vld [vmem:[%s10 + $0x14] sm:$0xff]
    %v1621 = vld [vmem:[%s10 + $0x1c] sm:$0xff]
    %v1622 = vld [vmem:[%s10 + $0x24] sm:$0xf]
    %v1623 = vld [vmem:[%s10 + $0x28] sm:$0xff]
    %v1624 = vld [vmem:[%s10 + $0x30] sm:$0xff]
    %v1625 = vld [vmem:[%s10 + $0x38] sm:$0xf]
    %v1626 = vld [vmem:[%s10 + $0x3c] sm:$0xff]
    %v1627 = vld [vmem:[%s10 + $0x44] sm:$0xff]
    %v1628 = vld [vmem:[%s10 + $0x4c] sm:$0xf]
    %v1629 = vld [vmem:[%s10 + $0x50] sm:$0xff]
    %v1630 = vld [vmem:[%s10 + $0x58] sm:$0xff]
    %v1631 = vld [vmem:[%s10 + $0x60] sm:$0xf]
    %v1632 = vld [vmem:[%s10 + $0x64] sm:$0xff]
    %v1633 = vld [vmem:[%s10 + $0x6c] sm:$0xff]
    %v1634 = vld [vmem:[%s10 + $0x74] sm:$0xf]
    %v1635 = vld [vmem:[%s10 + $0x78] sm:$0xff]
    %v1636 = vld [vmem:[%s10 + $0x80] sm:$0xff]
    %v1637 = vld [vmem:[%s10 + $0x88] sm:$0xf]
    %v1638 = vld [vmem:[%s10 + $0x8c] sm:$0xff]
    %v1639 = vld [vmem:[%s10 + $0x94] sm:$0xff]
    %v1640 = vld [vmem:[%s10 + $0x9c] sm:$0xf]
    %v1641 = vld [vmem:[%s10 + $0xa0] sm:$0xff]
    %v1642 = vld [vmem:[%s10 + $0xa8] sm:$0xff]
    %v1643 = vld [vmem:[%s10 + $0xb0] sm:$0xf]
    %v1644 = vld [vmem:[%s10 + $0xb4] sm:$0xff]
    %v1645 = vld [vmem:[%s10 + $0xbc] sm:$0xff]
    %v1646 = vld [vmem:[%s10 + $0xc4] sm:$0xf]
    %v1647 = vld [vmem:[%s10 + $0xc8] sm:$0xff]
    %v1648 = vld [vmem:[%s10 + $0xd0] sm:$0xff]
    %v1649 = vld [vmem:[%s10 + $0xd8] sm:$0xf]
    %v1650 = vld [vmem:[%s10 + $0xdc] sm:$0xff]
    %v1651 = vld [vmem:[%s10 + $0xe4] sm:$0xff]
    %v1652 = vld [vmem:[%s10 + $0xec] sm:$0xf]
    %v1653 = vld [vmem:[%s10 + $0xf0] sm:$0xff]
    %v1654 = vld [vmem:[%s10 + $0xf8] sm:$0xff]
    %v1655 = vld [vmem:[%s10 + $0x100] sm:$0xf]
    %v1656 = vld [vmem:[%s10 + $0x104] sm:$0xff]
    %v1657 = vld [vmem:[%s10 + $0x10c] sm:$0xff]
    %v1658 = vld [vmem:[%s10 + $0x114] sm:$0xf]
    %v1659 = vld [vmem:[%s10 + $0x118] sm:$0xff]
    %v1660 = vld [vmem:[%s10 + $0x120] sm:$0xff]
    %v1661 = vld [vmem:[%s10 + $0x128] sm:$0xf]
    %v1662 = vld [vmem:[%s10 + $0x12c] sm:$0xff]
    %v1663 = vld [vmem:[%s10 + $0x134] sm:$0xff]
    %v1664 = vld [vmem:[%s10 + $0x13c] sm:$0xf]
    %v1665 = vld [vmem:[%s11] sm:$0x1f]
    %v1667 = vperm.slane %v1665, 0
    %v1668 = vperm.slane %v1665, 1
    %v1669 = vperm.slane %v1665, 2
    %v1670 = vperm.slane %v1665, 3
    %v1671 = vperm.slane %v1665, 4
    %v1725 = vunpack.c.l.b16 %v1617
    %v1726 = vunpack.c.h.b16 %v1617
    %v1727 = vunpack.c.l.b16 %v1618
    %v1728 = vunpack.c.h.b16 %v1618
    %v1729 = vunpack.c.l.b16 %v1619
    %v1730 = vunpack.c.l.b16 %v1620
    %v1731 = vunpack.c.h.b16 %v1620
    %v1732 = vunpack.c.l.b16 %v1621
    %v1733 = vunpack.c.h.b16 %v1621
    %v1734 = vunpack.c.l.b16 %v1622
    %v1735 = vunpack.c.l.b16 %v1623
    %v1736 = vunpack.c.h.b16 %v1623
    %v1737 = vunpack.c.l.b16 %v1624
    %v1738 = vunpack.c.h.b16 %v1624
    %v1739 = vunpack.c.l.b16 %v1625
    %v1740 = vunpack.c.l.b16 %v1626
    %v1741 = vunpack.c.h.b16 %v1626
    %v1742 = vunpack.c.l.b16 %v1627
    %v1743 = vunpack.c.h.b16 %v1627
    %v1744 = vunpack.c.l.b16 %v1628
    %v1745 = vunpack.c.l.b16 %v1629
    %v1746 = vunpack.c.h.b16 %v1629
    %v1747 = vunpack.c.l.b16 %v1630
    %v1748 = vunpack.c.h.b16 %v1630
    %v1749 = vunpack.c.l.b16 %v1631
    %v1750 = vunpack.c.l.b16 %v1632
    %v1751 = vunpack.c.h.b16 %v1632
    %v1752 = vunpack.c.l.b16 %v1633
    %v1753 = vunpack.c.h.b16 %v1633
    %v1754 = vunpack.c.l.b16 %v1634
    %v1755 = vunpack.c.l.b16 %v1635
    %v1756 = vunpack.c.h.b16 %v1635
    %v1757 = vunpack.c.l.b16 %v1636
    %v1758 = vunpack.c.h.b16 %v1636
    %v1759 = vunpack.c.l.b16 %v1637
    %v1760 = vunpack.c.l.b16 %v1638
    %v1761 = vunpack.c.h.b16 %v1638
    %v1762 = vunpack.c.l.b16 %v1639
    %v1763 = vunpack.c.h.b16 %v1639
    %v1764 = vunpack.c.l.b16 %v1640
    %v1765 = vunpack.c.l.b16 %v1641
    %v1766 = vunpack.c.h.b16 %v1641
    %v1767 = vunpack.c.l.b16 %v1642
    %v1768 = vunpack.c.h.b16 %v1642
    %v1769 = vunpack.c.l.b16 %v1643
    %v1770 = vunpack.c.l.b16 %v1644
    %v1771 = vunpack.c.h.b16 %v1644
    %v1772 = vunpack.c.l.b16 %v1645
    %v1773 = vunpack.c.h.b16 %v1645
    %v1774 = vunpack.c.l.b16 %v1646
    %v1775 = vunpack.c.l.b16 %v1647
    %v1776 = vunpack.c.h.b16 %v1647
    %v1777 = vunpack.c.l.b16 %v1648
    %v1778 = vunpack.c.h.b16 %v1648
    %v1779 = vunpack.c.l.b16 %v1649
    %v1780 = vunpack.c.l.b16 %v1650
    %v1781 = vunpack.c.h.b16 %v1650
    %v1782 = vunpack.c.l.b16 %v1651
    %v1783 = vunpack.c.h.b16 %v1651
    %v1784 = vunpack.c.l.b16 %v1652
    %v1785 = vunpack.c.l.b16 %v1653
    %v1786 = vunpack.c.h.b16 %v1653
    %v1787 = vunpack.c.l.b16 %v1654
    %v1788 = vunpack.c.h.b16 %v1654
    %v1789 = vunpack.c.l.b16 %v1655
    %v1790 = vunpack.c.l.b16 %v1656
    %v1791 = vunpack.c.h.b16 %v1656
    %v1792 = vunpack.c.l.b16 %v1657
    %v1793 = vunpack.c.h.b16 %v1657
    %v1794 = vunpack.c.l.b16 %v1658
    %v1795 = vunpack.c.l.b16 %v1659
    %v1796 = vunpack.c.h.b16 %v1659
    %v1797 = vunpack.c.l.b16 %v1660
    %v1798 = vunpack.c.h.b16 %v1660
    %v1799 = vunpack.c.l.b16 %v1661
    %v1800 = vunpack.c.l.b16 %v1662
    %v1801 = vunpack.c.h.b16 %v1662
    %v1802 = vunpack.c.l.b16 %v1663
    %v1803 = vunpack.c.h.b16 %v1663
    %v1804 = vunpack.c.l.b16 %v1664
    %v1805 = vpack.c.b16 %v1730, %v1725
    %v1806 = vpack.c.b16 %v1731, %v1726
    %v1807 = vpack.c.b16 %v1732, %v1727
    %v1808 = vpack.c.b16 %v1733, %v1728
    %v1809 = vpack.c.b16 %v1734, %v1729
    %v1810 = vpack.c.b16 %v1740, %v1735
    %v1811 = vpack.c.b16 %v1741, %v1736
    %v1812 = vpack.c.b16 %v1742, %v1737
    %v1813 = vpack.c.b16 %v1743, %v1738
    %v1814 = vpack.c.b16 %v1744, %v1739
    %v1815 = vpack.c.b16 %v1750, %v1745
    %v1816 = vpack.c.b16 %v1751, %v1746
    %v1817 = vpack.c.b16 %v1752, %v1747
    %v1818 = vpack.c.b16 %v1753, %v1748
    %v1819 = vpack.c.b16 %v1754, %v1749
    %v1820 = vpack.c.b16 %v1760, %v1755
    %v1821 = vpack.c.b16 %v1761, %v1756
    %v1822 = vpack.c.b16 %v1762, %v1757
    %v1823 = vpack.c.b16 %v1763, %v1758
    %v1824 = vpack.c.b16 %v1764, %v1759
    %v1825 = vpack.c.b16 %v1770, %v1765
    %v1826 = vpack.c.b16 %v1771, %v1766
    %v1827 = vpack.c.b16 %v1772, %v1767
    %v1828 = vpack.c.b16 %v1773, %v1768
    %v1829 = vpack.c.b16 %v1774, %v1769
    %v1830 = vpack.c.b16 %v1780, %v1775
    %v1831 = vpack.c.b16 %v1781, %v1776
    %v1832 = vpack.c.b16 %v1782, %v1777
    %v1833 = vpack.c.b16 %v1783, %v1778
    %v1834 = vpack.c.b16 %v1784, %v1779
    %v1835 = vpack.c.b16 %v1790, %v1785
    %v1836 = vpack.c.b16 %v1791, %v1786
    %v1837 = vpack.c.b16 %v1792, %v1787
    %v1838 = vpack.c.b16 %v1793, %v1788
    %v1839 = vpack.c.b16 %v1794, %v1789
    %v1840 = vpack.c.b16 %v1800, %v1795
    %v1841 = vpack.c.b16 %v1801, %v1796
    %v1842 = vpack.c.b16 %v1802, %v1797
    %v1843 = vpack.c.b16 %v1803, %v1798
    %v1844 = vpack.c.b16 %v1804, %v1799
    %1885 = vmatpush.bf16.msra.mxu0 %v1840
    %1886 = vmatpush.bf16.msra.mxu0 %v1835
    %1887 = vmatpush.bf16.msra.mxu0 %v1830
    %1888 = vmatpush.bf16.msra.mxu0 %v1825
    %1889 = vmatpush.bf16.msra.mxu0 %v1820
    %1890 = vmatpush.bf16.msra.mxu0 %v1815
    %1891 = vmatpush.bf16.msra.mxu0 %v1810
    %1892 = vmatpush.bf16.msra.mxu0 %v1805
    %1893 = vmatmul.bf16.gmra.mxu0 %v1616
    %v1894 = vpop.f32.mrf.mxu0
    %v1895 = vadd.f32 %v1667, %v1894
    %v1896 = vpop.f32.mrf.mxu0
    %1897 = vdwg.mxu0
    %1898 = vmatpush.bf16.msra.mxu0 %v1841
    %1899 = vmatpush.bf16.msra.mxu0 %v1836
    %1900 = vmatpush.bf16.msra.mxu0 %v1831
    %1901 = vmatpush.bf16.msra.mxu0 %v1826
    %1902 = vmatpush.bf16.msra.mxu0 %v1821
    %1903 = vmatpush.bf16.msra.mxu0 %v1816
    %1904 = vmatpush.bf16.msra.mxu0 %v1811
    %1905 = vmatpush.bf16.msra.mxu0 %v1806
    %1906 = vmatmul.bf16.gmra.mxu0 %v1616
    %v1907 = vpop.f32.mrf.mxu0
    %v1908 = vadd.f32 %v1668, %v1907
    %v1909 = vpop.f32.mrf.mxu0
    %1910 = vdwg.mxu0
    %1911 = vmatpush.bf16.msra.mxu0 %v1842
    %1912 = vmatpush.bf16.msra.mxu0 %v1837
    %1913 = vmatpush.bf16.msra.mxu0 %v1832
    %1914 = vmatpush.bf16.msra.mxu0 %v1827
    %1915 = vmatpush.bf16.msra.mxu0 %v1822
    %1916 = vmatpush.bf16.msra.mxu0 %v1817
    %1917 = vmatpush.bf16.msra.mxu0 %v1812
    %1918 = vmatpush.bf16.msra.mxu0 %v1807
    %1919 = vmatmul.bf16.gmra.mxu0 %v1616
    %v1920 = vpop.f32.mrf.mxu0
    %v1921 = vadd.f32 %v1669, %v1920
    %v1922 = vpop.f32.mrf.mxu0
    %1923 = vdwg.mxu0
    %1924 = vmatpush.bf16.msra.mxu0 %v1843
    %1925 = vmatpush.bf16.msra.mxu0 %v1838
    %1926 = vmatpush.bf16.msra.mxu0 %v1833
    %1927 = vmatpush.bf16.msra.mxu0 %v1828
    %1928 = vmatpush.bf16.msra.mxu0 %v1823
    %1929 = vmatpush.bf16.msra.mxu0 %v1818
    %1930 = vmatpush.bf16.msra.mxu0 %v1813
    %1931 = vmatpush.bf16.msra.mxu0 %v1808
    %1932 = vmatmul.bf16.gmra.mxu0 %v1616
    %v1933 = vpop.f32.mrf.mxu0
    %v1934 = vadd.f32 %v1670, %v1933
    %v1935 = vpop.f32.mrf.mxu0
    %1936 = vdwg.mxu0
    %1937 = vmatpush.bf16.msra.mxu0 %v1844
    %1938 = vmatpush.bf16.msra.mxu0 %v1839
    %1939 = vmatpush.bf16.msra.mxu0 %v1834
    %1940 = vmatpush.bf16.msra.mxu0 %v1829
    %1941 = vmatpush.bf16.msra.mxu0 %v1824
    %1942 = vmatpush.bf16.msra.mxu0 %v1819
    %1943 = vmatpush.bf16.msra.mxu0 %v1814
    %1944 = vmatpush.bf16.msra.mxu0 %v1809
    %1945 = vmatmul.bf16.gmra.mxu0 %v1616
    %v1946 = vpop.f32.mrf.mxu0
    %v1947 = vadd.f32 %v1671, %v1946
    %v1948 = vpop.f32.mrf.mxu0
    %1949 = vdwg.mxu0
    %v1950 = vpack.c.bf16 %v1895, %v1895
    %v1951 = vpack.c.bf16 %v1908, %v1908
    %v1952 = vpack.c.bf16 %v1921, %v1921
    %v1953 = vpack.c.bf16 %v1934, %v1934
    %v1954 = vpack.c.bf16 %v1947, %v1947
    %v1955 = vld [vmem:[%s12] sm:$0xff]
    %v1956 = vld [vmem:[%s12 + $0x8] sm:$0xf]
    %v1957 = vld [vmem:[%s12 + $0xc] sm:$0xff]
    %v1958 = vld [vmem:[%s12 + $0x14] sm:$0xf]
    %v1959 = vld [vmem:[%s12 + $0x18] sm:$0xff]
    %v1960 = vld [vmem:[%s12 + $0x20] sm:$0xf]
    %v1961 = vld [vmem:[%s12 + $0x24] sm:$0xff]
    %v1962 = vld [vmem:[%s12 + $0x2c] sm:$0xf]
    %v1963 = vld [vmem:[%s12 + $0x30] sm:$0xff]
    %v1964 = vld [vmem:[%s12 + $0x38] sm:$0xf]
    %v1965 = vld [vmem:[%s12 + $0x3c] sm:$0xff]
    %v1966 = vld [vmem:[%s12 + $0x44] sm:$0xf]
    %v1967 = vld [vmem:[%s12 + $0x48] sm:$0xff]
    %v1968 = vld [vmem:[%s12 + $0x50] sm:$0xf]
    %v1969 = vld [vmem:[%s12 + $0x54] sm:$0xff]
    %v1970 = vld [vmem:[%s12 + $0x5c] sm:$0xf]
    %v1971 = vld [vmem:[%s12 + $0x60] sm:$0xff]
    %v1972 = vld [vmem:[%s12 + $0x68] sm:$0xf]
    %v1973 = vld [vmem:[%s12 + $0x6c] sm:$0xff]
    %v1974 = vld [vmem:[%s12 + $0x74] sm:$0xf]
    %v1975 = vld [vmem:[%s12 + $0x78] sm:$0xff]
    %v1976 = vld [vmem:[%s12 + $0x80] sm:$0xf]
    %v1977 = vld [vmem:[%s12 + $0x84] sm:$0xff]
    %v1978 = vld [vmem:[%s12 + $0x8c] sm:$0xf]
    %v1979 = vld [vmem:[%s12 + $0x90] sm:$0xff]
    %v1980 = vld [vmem:[%s12 + $0x98] sm:$0xf]
    %v1981 = vld [vmem:[%s12 + $0x9c] sm:$0xff]
    %v1982 = vld [vmem:[%s12 + $0xa4] sm:$0xf]
    %v1983 = vld [vmem:[%s12 + $0xa8] sm:$0xff]
    %v1984 = vld [vmem:[%s12 + $0xb0] sm:$0xf]
    %v1985 = vld [vmem:[%s12 + $0xb4] sm:$0xff]
    %v1986 = vld [vmem:[%s12 + $0xbc] sm:$0xf]
    %v1987 = vld [vmem:[%s12 + $0xc0] sm:$0xff]
    %v1988 = vld [vmem:[%s12 + $0xc8] sm:$0xf]
    %v1989 = vld [vmem:[%s12 + $0xcc] sm:$0xff]
    %v1990 = vld [vmem:[%s12 + $0xd4] sm:$0xf]
    %v1991 = vld [vmem:[%s12 + $0xd8] sm:$0xff]
    %v1992 = vld [vmem:[%s12 + $0xe0] sm:$0xf]
    %v1993 = vld [vmem:[%s12 + $0xe4] sm:$0xff]
    %v1994 = vld [vmem:[%s12 + $0xec] sm:$0xf]
    %v1995 = vld [vmem:[%s12 + $0xf0] sm:$0xff]
    %v1996 = vld [vmem:[%s12 + $0xf8] sm:$0xf]
    %v1997 = vld [vmem:[%s12 + $0xfc] sm:$0xff]
    %v1998 = vld [vmem:[%s12 + $0x104] sm:$0xf]
    %v1999 = vld [vmem:[%s12 + $0x108] sm:$0xff]
    %v2000 = vld [vmem:[%s12 + $0x110] sm:$0xf]
    %v2001 = vld [vmem:[%s12 + $0x114] sm:$0xff]
    %v2002 = vld [vmem:[%s12 + $0x11c] sm:$0xf]
    %v2003 = vld [vmem:[%s12 + $0x120] sm:$0xff]
    %v2004 = vld [vmem:[%s12 + $0x128] sm:$0xf]
    %v2005 = vld [vmem:[%s12 + $0x12c] sm:$0xff]
    %v2006 = vld [vmem:[%s12 + $0x134] sm:$0xf]
    %v2007 = vld [vmem:[%s12 + $0x138] sm:$0xff]
    %v2008 = vld [vmem:[%s12 + $0x140] sm:$0xf]
    %v2009 = vld [vmem:[%s12 + $0x144] sm:$0xff]
    %v2010 = vld [vmem:[%s12 + $0x14c] sm:$0xf]
    %v2011 = vld [vmem:[%s12 + $0x150] sm:$0xff]
    %v2012 = vld [vmem:[%s12 + $0x158] sm:$0xf]
    %v2013 = vld [vmem:[%s12 + $0x15c] sm:$0xff]
    %v2014 = vld [vmem:[%s12 + $0x164] sm:$0xf]
    %v2015 = vld [vmem:[%s12 + $0x168] sm:$0xff]
    %v2016 = vld [vmem:[%s12 + $0x170] sm:$0xf]
    %v2017 = vld [vmem:[%s12 + $0x174] sm:$0xff]
    %v2018 = vld [vmem:[%s12 + $0x17c] sm:$0xf]
    %v2019 = vld [vmem:[%s12 + $0x180] sm:$0xff]
    %v2020 = vld [vmem:[%s12 + $0x188] sm:$0xf]
    %v2021 = vld [vmem:[%s12 + $0x18c] sm:$0xff]
    %v2022 = vld [vmem:[%s12 + $0x194] sm:$0xf]
    %v2023 = vld [vmem:[%s12 + $0x198] sm:$0xff]
    %v2024 = vld [vmem:[%s12 + $0x1a0] sm:$0xf]
    %v2025 = vld [vmem:[%s12 + $0x1a4] sm:$0xff]
    %v2026 = vld [vmem:[%s12 + $0x1ac] sm:$0xf]
    %v2027 = vld [vmem:[%s12 + $0x1b0] sm:$0xff]
    %v2028 = vld [vmem:[%s12 + $0x1b8] sm:$0xf]
    %v2029 = vld [vmem:[%s12 + $0x1bc] sm:$0xff]
    %v2030 = vld [vmem:[%s12 + $0x1c4] sm:$0xf]
    %v2031 = vld [vmem:[%s12 + $0x1c8] sm:$0xff]
    %v2032 = vld [vmem:[%s12 + $0x1d0] sm:$0xf]
    %v2033 = vld [vmem:[%s12 + $0x1d4] sm:$0xff]
    %v2034 = vld [vmem:[%s12 + $0x1dc] sm:$0xf]
    %v2035 = vld [vmem:[%s12 + $0x1e0] sm:$0xff]
    %v2036 = vld [vmem:[%s12 + $0x1e8] sm:$0xf]
    %v2037 = vld [vmem:[%s12 + $0x1ec] sm:$0xff]
    %v2038 = vld [vmem:[%s12 + $0x1f4] sm:$0xf]
    %v2039 = vld [vmem:[%s12 + $0x1f8] sm:$0xff]
    %v2040 = vld [vmem:[%s12 + $0x200] sm:$0xf]
    %v2041 = vld [vmem:[%s12 + $0x204] sm:$0xff]
    %v2042 = vld [vmem:[%s12 + $0x20c] sm:$0xf]
    %v2043 = vld [vmem:[%s12 + $0x210] sm:$0xff]
    %v2044 = vld [vmem:[%s12 + $0x218] sm:$0xf]
    %v2045 = vld [vmem:[%s12 + $0x21c] sm:$0xff]
    %v2046 = vld [vmem:[%s12 + $0x224] sm:$0xf]
    %v2047 = vld [vmem:[%s12 + $0x228] sm:$0xff]
    %v2048 = vld [vmem:[%s12 + $0x230] sm:$0xf]
    %v2049 = vld [vmem:[%s12 + $0x234] sm:$0xff]
    %v2050 = vld [vmem:[%s12 + $0x23c] sm:$0xf]
    %v2051 = vld [vmem:[%s12 + $0x240] sm:$0xff]
    %v2052 = vld [vmem:[%s12 + $0x248] sm:$0xf]
    %v2053 = vld [vmem:[%s12 + $0x24c] sm:$0xff]
    %v2054 = vld [vmem:[%s12 + $0x254] sm:$0xf]
    %v2055 = vld [vmem:[%s12 + $0x258] sm:$0xff]
    %v2056 = vld [vmem:[%s12 + $0x260] sm:$0xf]
    %v2057 = vld [vmem:[%s12 + $0x264] sm:$0xff]
    %v2058 = vld [vmem:[%s12 + $0x26c] sm:$0xf]
    %v2059 = vld [vmem:[%s12 + $0x270] sm:$0xff]
    %v2060 = vld [vmem:[%s12 + $0x278] sm:$0xf]
    %v2061 = vld [vmem:[%s12 + $0x27c] sm:$0xff]
    %v2062 = vld [vmem:[%s12 + $0x284] sm:$0xf]
    %v2063 = vld [vmem:[%s12 + $0x288] sm:$0xff]
    %v2064 = vld [vmem:[%s12 + $0x290] sm:$0xf]
    %v2065 = vld [vmem:[%s12 + $0x294] sm:$0xff]
    %v2066 = vld [vmem:[%s12 + $0x29c] sm:$0xf]
    %v2067 = vld [vmem:[%s12 + $0x2a0] sm:$0xff]
    %v2068 = vld [vmem:[%s12 + $0x2a8] sm:$0xf]
    %v2069 = vld [vmem:[%s12 + $0x2ac] sm:$0xff]
    %v2070 = vld [vmem:[%s12 + $0x2b4] sm:$0xf]
    %v2071 = vld [vmem:[%s12 + $0x2b8] sm:$0xff]
    %v2072 = vld [vmem:[%s12 + $0x2c0] sm:$0xf]
    %v2073 = vld [vmem:[%s12 + $0x2c4] sm:$0xff]
    %v2074 = vld [vmem:[%s12 + $0x2cc] sm:$0xf]
    %v2075 = vld [vmem:[%s12 + $0x2d0] sm:$0xff]
    %v2076 = vld [vmem:[%s12 + $0x2d8] sm:$0xf]
    %v2077 = vld [vmem:[%s12 + $0x2dc] sm:$0xff]
    %v2078 = vld [vmem:[%s12 + $0x2e4] sm:$0xf]
    %v2079 = vld [vmem:[%s12 + $0x2e8] sm:$0xff]
    %v2080 = vld [vmem:[%s12 + $0x2f0] sm:$0xf]
    %v2081 = vld [vmem:[%s12 + $0x2f4] sm:$0xff]
    %v2082 = vld [vmem:[%s12 + $0x2fc] sm:$0xf]
    %v2083 = vld [vmem:[%s12 + $0x300] sm:$0xff]
    %v2084 = vld [vmem:[%s12 + $0x308] sm:$0xf]
    %v2085 = vld [vmem:[%s12 + $0x30c] sm:$0xff]
    %v2086 = vld [vmem:[%s12 + $0x314] sm:$0xf]
    %v2087 = vld [vmem:[%s12 + $0x318] sm:$0xff]
    %v2088 = vld [vmem:[%s12 + $0x320] sm:$0xf]
    %v2089 = vld [vmem:[%s12 + $0x324] sm:$0xff]
    %v2090 = vld [vmem:[%s12 + $0x32c] sm:$0xf]
    %v2091 = vld [vmem:[%s12 + $0x330] sm:$0xff]
    %v2092 = vld [vmem:[%s12 + $0x338] sm:$0xf]
    %v2093 = vld [vmem:[%s12 + $0x33c] sm:$0xff]
    %v2094 = vld [vmem:[%s12 + $0x344] sm:$0xf]
    %v2095 = vld [vmem:[%s12 + $0x348] sm:$0xff]
    %v2096 = vld [vmem:[%s12 + $0x350] sm:$0xf]
    %v2097 = vld [vmem:[%s12 + $0x354] sm:$0xff]
    %v2098 = vld [vmem:[%s12 + $0x35c] sm:$0xf]
    %v2099 = vld [vmem:[%s12 + $0x360] sm:$0xff]
    %v2100 = vld [vmem:[%s12 + $0x368] sm:$0xf]
    %v2101 = vld [vmem:[%s12 + $0x36c] sm:$0xff]
    %v2102 = vld [vmem:[%s12 + $0x374] sm:$0xf]
    %v2103 = vld [vmem:[%s12 + $0x378] sm:$0xff]
    %v2104 = vld [vmem:[%s12 + $0x380] sm:$0xf]
    %v2105 = vld [vmem:[%s12 + $0x384] sm:$0xff]
    %v2106 = vld [vmem:[%s12 + $0x38c] sm:$0xf]
    %v2107 = vld [vmem:[%s12 + $0x390] sm:$0xff]
    %v2108 = vld [vmem:[%s12 + $0x398] sm:$0xf]
    %v2109 = vld [vmem:[%s12 + $0x39c] sm:$0xff]
    %v2110 = vld [vmem:[%s12 + $0x3a4] sm:$0xf]
    %v2111 = vld [vmem:[%s12 + $0x3a8] sm:$0xff]
    %v2112 = vld [vmem:[%s12 + $0x3b0] sm:$0xf]
    %v2113 = vld [vmem:[%s12 + $0x3b4] sm:$0xff]
    %v2114 = vld [vmem:[%s12 + $0x3bc] sm:$0xf]
    %v2115 = vld [vmem:[%s13] sm:$0x7]
    %v2117 = vperm.slane %v2115, 0
    %v2118 = vperm.slane %v2115, 1
    %v2119 = vperm.slane %v2115, 2
    %v2283 = vunpack.c.l.b16 %v1955
    %v2284 = vunpack.c.h.b16 %v1955
    %v2285 = vunpack.c.l.b16 %v1956
    %v2286 = vunpack.c.l.b16 %v1957
    %v2287 = vunpack.c.h.b16 %v1957
    %v2288 = vunpack.c.l.b16 %v1958
    %v2289 = vunpack.c.l.b16 %v1959
    %v2290 = vunpack.c.h.b16 %v1959
    %v2291 = vunpack.c.l.b16 %v1960
    %v2292 = vunpack.c.l.b16 %v1961
    %v2293 = vunpack.c.h.b16 %v1961
    %v2294 = vunpack.c.l.b16 %v1962
    %v2295 = vunpack.c.l.b16 %v1963
    %v2296 = vunpack.c.h.b16 %v1963
    %v2297 = vunpack.c.l.b16 %v1964
    %v2298 = vunpack.c.l.b16 %v1965
    %v2299 = vunpack.c.h.b16 %v1965
    %v2300 = vunpack.c.l.b16 %v1966
    %v2301 = vunpack.c.l.b16 %v1967
    %v2302 = vunpack.c.h.b16 %v1967
    %v2303 = vunpack.c.l.b16 %v1968
    %v2304 = vunpack.c.l.b16 %v1969
    %v2305 = vunpack.c.h.b16 %v1969
    %v2306 = vunpack.c.l.b16 %v1970
    %v2307 = vunpack.c.l.b16 %v1971
    %v2308 = vunpack.c.h.b16 %v1971
    %v2309 = vunpack.c.l.b16 %v1972
    %v2310 = vunpack.c.l.b16 %v1973
    %v2311 = vunpack.c.h.b16 %v1973
    %v2312 = vunpack.c.l.b16 %v1974
    %v2313 = vunpack.c.l.b16 %v1975
    %v2314 = vunpack.c.h.b16 %v1975
    %v2315 = vunpack.c.l.b16 %v1976
    %v2316 = vunpack.c.l.b16 %v1977
    %v2317 = vunpack.c.h.b16 %v1977
    %v2318 = vunpack.c.l.b16 %v1978
    %v2319 = vunpack.c.l.b16 %v1979
    %v2320 = vunpack.c.h.b16 %v1979
    %v2321 = vunpack.c.l.b16 %v1980
    %v2322 = vunpack.c.l.b16 %v1981
    %v2323 = vunpack.c.h.b16 %v1981
    %v2324 = vunpack.c.l.b16 %v1982
    %v2325 = vunpack.c.l.b16 %v1983
    %v2326 = vunpack.c.h.b16 %v1983
    %v2327 = vunpack.c.l.b16 %v1984
    %v2328 = vunpack.c.l.b16 %v1985
    %v2329 = vunpack.c.h.b16 %v1985
    %v2330 = vunpack.c.l.b16 %v1986
    %v2331 = vunpack.c.l.b16 %v1987
    %v2332 = vunpack.c.h.b16 %v1987
    %v2333 = vunpack.c.l.b16 %v1988
    %v2334 = vunpack.c.l.b16 %v1989
    %v2335 = vunpack.c.h.b16 %v1989
    %v2336 = vunpack.c.l.b16 %v1990
    %v2337 = vunpack.c.l.b16 %v1991
    %v2338 = vunpack.c.h.b16 %v1991
    %v2339 = vunpack.c.l.b16 %v1992
    %v2340 = vunpack.c.l.b16 %v1993
    %v2341 = vunpack.c.h.b16 %v1993
    %v2342 = vunpack.c.l.b16 %v1994
    %v2343 = vunpack.c.l.b16 %v1995
    %v2344 = vunpack.c.h.b16 %v1995
    %v2345 = vunpack.c.l.b16 %v1996
    %v2346 = vunpack.c.l.b16 %v1997
    %v2347 = vunpack.c.h.b16 %v1997
    %v2348 = vunpack.c.l.b16 %v1998
    %v2349 = vunpack.c.l.b16 %v1999
    %v2350 = vunpack.c.h.b16 %v1999
    %v2351 = vunpack.c.l.b16 %v2000
    %v2352 = vunpack.c.l.b16 %v2001
    %v2353 = vunpack.c.h.b16 %v2001
    %v2354 = vunpack.c.l.b16 %v2002
    %v2355 = vunpack.c.l.b16 %v2003
    %v2356 = vunpack.c.h.b16 %v2003
    %v2357 = vunpack.c.l.b16 %v2004
    %v2358 = vunpack.c.l.b16 %v2005
    %v2359 = vunpack.c.h.b16 %v2005
    %v2360 = vunpack.c.l.b16 %v2006
    %v2361 = vunpack.c.l.b16 %v2007
    %v2362 = vunpack.c.h.b16 %v2007
    %v2363 = vunpack.c.l.b16 %v2008
    %v2364 = vunpack.c.l.b16 %v2009
    %v2365 = vunpack.c.h.b16 %v2009
    %v2366 = vunpack.c.l.b16 %v2010
    %v2367 = vunpack.c.l.b16 %v2011
    %v2368 = vunpack.c.h.b16 %v2011
    %v2369 = vunpack.c.l.b16 %v2012
    %v2370 = vunpack.c.l.b16 %v2013
    %v2371 = vunpack.c.h.b16 %v2013
    %v2372 = vunpack.c.l.b16 %v2014
    %v2373 = vunpack.c.l.b16 %v2015
    %v2374 = vunpack.c.h.b16 %v2015
    %v2375 = vunpack.c.l.b16 %v2016
    %v2376 = vunpack.c.l.b16 %v2017
    %v2377 = vunpack.c.h.b16 %v2017
    %v2378 = vunpack.c.l.b16 %v2018
    %v2379 = vunpack.c.l.b16 %v2019
    %v2380 = vunpack.c.h.b16 %v2019
    %v2381 = vunpack.c.l.b16 %v2020
    %v2382 = vunpack.c.l.b16 %v2021
    %v2383 = vunpack.c.h.b16 %v2021
    %v2384 = vunpack.c.l.b16 %v2022
    %v2385 = vunpack.c.l.b16 %v2023
    %v2386 = vunpack.c.h.b16 %v2023
    %v2387 = vunpack.c.l.b16 %v2024
    %v2388 = vunpack.c.l.b16 %v2025
    %v2389 = vunpack.c.h.b16 %v2025
    %v2390 = vunpack.c.l.b16 %v2026
    %v2391 = vunpack.c.l.b16 %v2027
    %v2392 = vunpack.c.h.b16 %v2027
    %v2393 = vunpack.c.l.b16 %v2028
    %v2394 = vunpack.c.l.b16 %v2029
    %v2395 = vunpack.c.h.b16 %v2029
    %v2396 = vunpack.c.l.b16 %v2030
    %v2397 = vunpack.c.l.b16 %v2031
    %v2398 = vunpack.c.h.b16 %v2031
    %v2399 = vunpack.c.l.b16 %v2032
    %v2400 = vunpack.c.l.b16 %v2033
    %v2401 = vunpack.c.h.b16 %v2033
    %v2402 = vunpack.c.l.b16 %v2034
    %v2403 = vunpack.c.l.b16 %v2035
    %v2404 = vunpack.c.h.b16 %v2035
    %v2405 = vunpack.c.l.b16 %v2036
    %v2406 = vunpack.c.l.b16 %v2037
    %v2407 = vunpack.c.h.b16 %v2037
    %v2408 = vunpack.c.l.b16 %v2038
    %v2409 = vunpack.c.l.b16 %v2039
    %v2410 = vunpack.c.h.b16 %v2039
    %v2411 = vunpack.c.l.b16 %v2040
    %v2412 = vunpack.c.l.b16 %v2041
    %v2413 = vunpack.c.h.b16 %v2041
    %v2414 = vunpack.c.l.b16 %v2042
    %v2415 = vunpack.c.l.b16 %v2043
    %v2416 = vunpack.c.h.b16 %v2043
    %v2417 = vunpack.c.l.b16 %v2044
    %v2418 = vunpack.c.l.b16 %v2045
    %v2419 = vunpack.c.h.b16 %v2045
    %v2420 = vunpack.c.l.b16 %v2046
    %v2421 = vunpack.c.l.b16 %v2047
    %v2422 = vunpack.c.h.b16 %v2047
    %v2423 = vunpack.c.l.b16 %v2048
    %v2424 = vunpack.c.l.b16 %v2049
    %v2425 = vunpack.c.h.b16 %v2049
    %v2426 = vunpack.c.l.b16 %v2050
    %v2427 = vunpack.c.l.b16 %v2051
    %v2428 = vunpack.c.h.b16 %v2051
    %v2429 = vunpack.c.l.b16 %v2052
    %v2430 = vunpack.c.l.b16 %v2053
    %v2431 = vunpack.c.h.b16 %v2053
    %v2432 = vunpack.c.l.b16 %v2054
    %v2433 = vunpack.c.l.b16 %v2055
    %v2434 = vunpack.c.h.b16 %v2055
    %v2435 = vunpack.c.l.b16 %v2056
    %v2436 = vunpack.c.l.b16 %v2057
    %v2437 = vunpack.c.h.b16 %v2057
    %v2438 = vunpack.c.l.b16 %v2058
    %v2439 = vunpack.c.l.b16 %v2059
    %v2440 = vunpack.c.h.b16 %v2059
    %v2441 = vunpack.c.l.b16 %v2060
    %v2442 = vunpack.c.l.b16 %v2061
    %v2443 = vunpack.c.h.b16 %v2061
    %v2444 = vunpack.c.l.b16 %v2062
    %v2445 = vunpack.c.l.b16 %v2063
    %v2446 = vunpack.c.h.b16 %v2063
    %v2447 = vunpack.c.l.b16 %v2064
    %v2448 = vunpack.c.l.b16 %v2065
    %v2449 = vunpack.c.h.b16 %v2065
    %v2450 = vunpack.c.l.b16 %v2066
    %v2451 = vunpack.c.l.b16 %v2067
    %v2452 = vunpack.c.h.b16 %v2067
    %v2453 = vunpack.c.l.b16 %v2068
    %v2454 = vunpack.c.l.b16 %v2069
    %v2455 = vunpack.c.h.b16 %v2069
    %v2456 = vunpack.c.l.b16 %v2070
    %v2457 = vunpack.c.l.b16 %v2071
    %v2458 = vunpack.c.h.b16 %v2071
    %v2459 = vunpack.c.l.b16 %v2072
    %v2460 = vunpack.c.l.b16 %v2073
    %v2461 = vunpack.c.h.b16 %v2073
    %v2462 = vunpack.c.l.b16 %v2074
    %v2463 = vunpack.c.l.b16 %v2075
    %v2464 = vunpack.c.h.b16 %v2075
    %v2465 = vunpack.c.l.b16 %v2076
    %v2466 = vunpack.c.l.b16 %v2077
    %v2467 = vunpack.c.h.b16 %v2077
    %v2468 = vunpack.c.l.b16 %v2078
    %v2469 = vunpack.c.l.b16 %v2079
    %v2470 = vunpack.c.h.b16 %v2079
    %v2471 = vunpack.c.l.b16 %v2080
    %v2472 = vunpack.c.l.b16 %v2081
    %v2473 = vunpack.c.h.b16 %v2081
    %v2474 = vunpack.c.l.b16 %v2082
    %v2475 = vunpack.c.l.b16 %v2083
    %v2476 = vunpack.c.h.b16 %v2083
    %v2477 = vunpack.c.l.b16 %v2084
    %v2478 = vunpack.c.l.b16 %v2085
    %v2479 = vunpack.c.h.b16 %v2085
    %v2480 = vunpack.c.l.b16 %v2086
    %v2481 = vunpack.c.l.b16 %v2087
    %v2482 = vunpack.c.h.b16 %v2087
    %v2483 = vunpack.c.l.b16 %v2088
    %v2484 = vunpack.c.l.b16 %v2089
    %v2485 = vunpack.c.h.b16 %v2089
    %v2486 = vunpack.c.l.b16 %v2090
    %v2487 = vunpack.c.l.b16 %v2091
    %v2488 = vunpack.c.h.b16 %v2091
    %v2489 = vunpack.c.l.b16 %v2092
    %v2490 = vunpack.c.l.b16 %v2093
    %v2491 = vunpack.c.h.b16 %v2093
    %v2492 = vunpack.c.l.b16 %v2094
    %v2493 = vunpack.c.l.b16 %v2095
    %v2494 = vunpack.c.h.b16 %v2095
    %v2495 = vunpack.c.l.b16 %v2096
    %v2496 = vunpack.c.l.b16 %v2097
    %v2497 = vunpack.c.h.b16 %v2097
    %v2498 = vunpack.c.l.b16 %v2098
    %v2499 = vunpack.c.l.b16 %v2099
    %v2500 = vunpack.c.h.b16 %v2099
    %v2501 = vunpack.c.l.b16 %v2100
    %v2502 = vunpack.c.l.b16 %v2101
    %v2503 = vunpack.c.h.b16 %v2101
    %v2504 = vunpack.c.l.b16 %v2102
    %v2505 = vunpack.c.l.b16 %v2103
    %v2506 = vunpack.c.h.b16 %v2103
    %v2507 = vunpack.c.l.b16 %v2104
    %v2508 = vunpack.c.l.b16 %v2105
    %v2509 = vunpack.c.h.b16 %v2105
    %v2510 = vunpack.c.l.b16 %v2106
    %v2511 = vunpack.c.l.b16 %v2107
    %v2512 = vunpack.c.h.b16 %v2107
    %v2513 = vunpack.c.l.b16 %v2108
    %v2514 = vunpack.c.l.b16 %v2109
    %v2515 = vunpack.c.h.b16 %v2109
    %v2516 = vunpack.c.l.b16 %v2110
    %v2517 = vunpack.c.l.b16 %v2111
    %v2518 = vunpack.c.h.b16 %v2111
    %v2519 = vunpack.c.l.b16 %v2112
    %v2520 = vunpack.c.l.b16 %v2113
    %v2521 = vunpack.c.h.b16 %v2113
    %v2522 = vunpack.c.l.b16 %v2114
    %v2523 = vpack.c.b16 %v2286, %v2283
    %v2524 = vpack.c.b16 %v2287, %v2284
    %v2525 = vpack.c.b16 %v2288, %v2285
    %v2526 = vpack.c.b16 %v2292, %v2289
    %v2527 = vpack.c.b16 %v2293, %v2290
    %v2528 = vpack.c.b16 %v2294, %v2291
    %v2529 = vpack.c.b16 %v2298, %v2295
    %v2530 = vpack.c.b16 %v2299, %v2296
    %v2531 = vpack.c.b16 %v2300, %v2297
    %v2532 = vpack.c.b16 %v2304, %v2301
    %v2533 = vpack.c.b16 %v2305, %v2302
    %v2534 = vpack.c.b16 %v2306, %v2303
    %v2535 = vpack.c.b16 %v2310, %v2307
    %v2536 = vpack.c.b16 %v2311, %v2308
    %v2537 = vpack.c.b16 %v2312, %v2309
    %v2538 = vpack.c.b16 %v2316, %v2313
    %v2539 = vpack.c.b16 %v2317, %v2314
    %v2540 = vpack.c.b16 %v2318, %v2315
    %v2541 = vpack.c.b16 %v2322, %v2319
    %v2542 = vpack.c.b16 %v2323, %v2320
    %v2543 = vpack.c.b16 %v2324, %v2321
    %v2544 = vpack.c.b16 %v2328, %v2325
    %v2545 = vpack.c.b16 %v2329, %v2326
    %v2546 = vpack.c.b16 %v2330, %v2327
    %v2547 = vpack.c.b16 %v2334, %v2331
    %v2548 = vpack.c.b16 %v2335, %v2332
    %v2549 = vpack.c.b16 %v2336, %v2333
    %v2550 = vpack.c.b16 %v2340, %v2337
    %v2551 = vpack.c.b16 %v2341, %v2338
    %v2552 = vpack.c.b16 %v2342, %v2339
    %v2553 = vpack.c.b16 %v2346, %v2343
    %v2554 = vpack.c.b16 %v2347, %v2344
    %v2555 = vpack.c.b16 %v2348, %v2345
    %v2556 = vpack.c.b16 %v2352, %v2349
    %v2557 = vpack.c.b16 %v2353, %v2350
    %v2558 = vpack.c.b16 %v2354, %v2351
    %v2559 = vpack.c.b16 %v2358, %v2355
    %v2560 = vpack.c.b16 %v2359, %v2356
    %v2561 = vpack.c.b16 %v2360, %v2357
    %v2562 = vpack.c.b16 %v2364, %v2361
    %v2563 = vpack.c.b16 %v2365, %v2362
    %v2564 = vpack.c.b16 %v2366, %v2363
    %v2565 = vpack.c.b16 %v2370, %v2367
    %v2566 = vpack.c.b16 %v2371, %v2368
    %v2567 = vpack.c.b16 %v2372, %v2369
    %v2568 = vpack.c.b16 %v2376, %v2373
    %v2569 = vpack.c.b16 %v2377, %v2374
    %v2570 = vpack.c.b16 %v2378, %v2375
    %v2571 = vpack.c.b16 %v2382, %v2379
    %v2572 = vpack.c.b16 %v2383, %v2380
    %v2573 = vpack.c.b16 %v2384, %v2381
    %v2574 = vpack.c.b16 %v2388, %v2385
    %v2575 = vpack.c.b16 %v2389, %v2386
    %v2576 = vpack.c.b16 %v2390, %v2387
    %v2577 = vpack.c.b16 %v2394, %v2391
    %v2578 = vpack.c.b16 %v2395, %v2392
    %v2579 = vpack.c.b16 %v2396, %v2393
    %v2580 = vpack.c.b16 %v2400, %v2397
    %v2581 = vpack.c.b16 %v2401, %v2398
    %v2582 = vpack.c.b16 %v2402, %v2399
    %v2583 = vpack.c.b16 %v2406, %v2403
    %v2584 = vpack.c.b16 %v2407, %v2404
    %v2585 = vpack.c.b16 %v2408, %v2405
    %v2586 = vpack.c.b16 %v2412, %v2409
    %v2587 = vpack.c.b16 %v2413, %v2410
    %v2588 = vpack.c.b16 %v2414, %v2411
    %v2589 = vpack.c.b16 %v2418, %v2415
    %v2590 = vpack.c.b16 %v2419, %v2416
    %v2591 = vpack.c.b16 %v2420, %v2417
    %v2592 = vpack.c.b16 %v2424, %v2421
    %v2593 = vpack.c.b16 %v2425, %v2422
    %v2594 = vpack.c.b16 %v2426, %v2423
    %v2595 = vpack.c.b16 %v2430, %v2427
    %v2596 = vpack.c.b16 %v2431, %v2428
    %v2597 = vpack.c.b16 %v2432, %v2429
    %v2598 = vpack.c.b16 %v2436, %v2433
    %v2599 = vpack.c.b16 %v2437, %v2434
    %v2600 = vpack.c.b16 %v2438, %v2435
    %v2601 = vpack.c.b16 %v2442, %v2439
    %v2602 = vpack.c.b16 %v2443, %v2440
    %v2603 = vpack.c.b16 %v2444, %v2441
    %v2604 = vpack.c.b16 %v2448, %v2445
    %v2605 = vpack.c.b16 %v2449, %v2446
    %v2606 = vpack.c.b16 %v2450, %v2447
    %v2607 = vpack.c.b16 %v2454, %v2451
    %v2608 = vpack.c.b16 %v2455, %v2452
    %v2609 = vpack.c.b16 %v2456, %v2453
    %v2610 = vpack.c.b16 %v2460, %v2457
    %v2611 = vpack.c.b16 %v2461, %v2458
    %v2612 = vpack.c.b16 %v2462, %v2459
    %v2613 = vpack.c.b16 %v2466, %v2463
    %v2614 = vpack.c.b16 %v2467, %v2464
    %v2615 = vpack.c.b16 %v2468, %v2465
    %v2616 = vpack.c.b16 %v2472, %v2469
    %v2617 = vpack.c.b16 %v2473, %v2470
    %v2618 = vpack.c.b16 %v2474, %v2471
    %v2619 = vpack.c.b16 %v2478, %v2475
    %v2620 = vpack.c.b16 %v2479, %v2476
    %v2621 = vpack.c.b16 %v2480, %v2477
    %v2622 = vpack.c.b16 %v2484, %v2481
    %v2623 = vpack.c.b16 %v2485, %v2482
    %v2624 = vpack.c.b16 %v2486, %v2483
    %v2625 = vpack.c.b16 %v2490, %v2487
    %v2626 = vpack.c.b16 %v2491, %v2488
    %v2627 = vpack.c.b16 %v2492, %v2489
    %v2628 = vpack.c.b16 %v2496, %v2493
    %v2629 = vpack.c.b16 %v2497, %v2494
    %v2630 = vpack.c.b16 %v2498, %v2495
    %v2631 = vpack.c.b16 %v2502, %v2499
    %v2632 = vpack.c.b16 %v2503, %v2500
    %v2633 = vpack.c.b16 %v2504, %v2501
    %v2634 = vpack.c.b16 %v2508, %v2505
    %v2635 = vpack.c.b16 %v2509, %v2506
    %v2636 = vpack.c.b16 %v2510, %v2507
    %v2637 = vpack.c.b16 %v2514, %v2511
    %v2638 = vpack.c.b16 %v2515, %v2512
    %v2639 = vpack.c.b16 %v2516, %v2513
    %v2640 = vpack.c.b16 %v2520, %v2517
    %v2641 = vpack.c.b16 %v2521, %v2518
    %v2642 = vpack.c.b16 %v2522, %v2519
    %2763 = vmatpush.bf16.msra.mxu0 %v2544
    %2764 = vmatpush.bf16.msra.mxu0 %v2541
    %2765 = vmatpush.bf16.msra.mxu0 %v2538
    %2766 = vmatpush.bf16.msra.mxu0 %v2535
    %2767 = vmatpush.bf16.msra.mxu0 %v2532
    %2768 = vmatpush.bf16.msra.mxu0 %v2529
    %2769 = vmatpush.bf16.msra.mxu0 %v2526
    %2770 = vmatpush.bf16.msra.mxu0 %v2523
    %2771 = vmatmul.bf16.gmra.mxu0 %v1950
    %v2772 = vpop.f32.mrf.mxu0
    %v2773 = vadd.f32 %v2117, %v2772
    %v2774 = vpop.f32.mrf.mxu0
    %2775 = vdwg.mxu0
    %2776 = vmatpush.bf16.msra.mxu0 %v2568
    %2777 = vmatpush.bf16.msra.mxu0 %v2565
    %2778 = vmatpush.bf16.msra.mxu0 %v2562
    %2779 = vmatpush.bf16.msra.mxu0 %v2559
    %2780 = vmatpush.bf16.msra.mxu0 %v2556
    %2781 = vmatpush.bf16.msra.mxu0 %v2553
    %2782 = vmatpush.bf16.msra.mxu0 %v2550
    %2783 = vmatpush.bf16.msra.mxu0 %v2547
    %2784 = vmatmul.bf16.gmra.mxu0 %v1951
    %v2785 = vpop.f32.mrf.mxu0
    %v2786 = vadd.f32 %v2773, %v2785
    %v2787 = vpop.f32.mrf.mxu0
    %2788 = vdwg.mxu0
    %2789 = vmatpush.bf16.msra.mxu0 %v2592
    %2790 = vmatpush.bf16.msra.mxu0 %v2589
    %2791 = vmatpush.bf16.msra.mxu0 %v2586
    %2792 = vmatpush.bf16.msra.mxu0 %v2583
    %2793 = vmatpush.bf16.msra.mxu0 %v2580
    %2794 = vmatpush.bf16.msra.mxu0 %v2577
    %2795 = vmatpush.bf16.msra.mxu0 %v2574
    %2796 = vmatpush.bf16.msra.mxu0 %v2571
    %2797 = vmatmul.bf16.gmra.mxu0 %v1952
    %v2798 = vpop.f32.mrf.mxu0
    %v2799 = vadd.f32 %v2786, %v2798
    %v2800 = vpop.f32.mrf.mxu0
    %2801 = vdwg.mxu0
    %2802 = vmatpush.bf16.msra.mxu0 %v2616
    %2803 = vmatpush.bf16.msra.mxu0 %v2613
    %2804 = vmatpush.bf16.msra.mxu0 %v2610
    %2805 = vmatpush.bf16.msra.mxu0 %v2607
    %2806 = vmatpush.bf16.msra.mxu0 %v2604
    %2807 = vmatpush.bf16.msra.mxu0 %v2601
    %2808 = vmatpush.bf16.msra.mxu0 %v2598
    %2809 = vmatpush.bf16.msra.mxu0 %v2595
    %2810 = vmatmul.bf16.gmra.mxu0 %v1953
    %v2811 = vpop.f32.mrf.mxu0
    %v2812 = vadd.f32 %v2799, %v2811
    %v2813 = vpop.f32.mrf.mxu0
    %2814 = vdwg.mxu0
    %2815 = vmatpush.bf16.msra.mxu0 %v2640
    %2816 = vmatpush.bf16.msra.mxu0 %v2637
    %2817 = vmatpush.bf16.msra.mxu0 %v2634
    %2818 = vmatpush.bf16.msra.mxu0 %v2631
    %2819 = vmatpush.bf16.msra.mxu0 %v2628
    %2820 = vmatpush.bf16.msra.mxu0 %v2625
    %2821 = vmatpush.bf16.msra.mxu0 %v2622
    %2822 = vmatpush.bf16.msra.mxu0 %v2619
    %2823 = vmatmul.bf16.gmra.mxu0 %v1954
    %v2824 = vpop.f32.mrf.mxu0
    %v2825 = vadd.f32 %v2812, %v2824
    %v2826 = vpop.f32.mrf.mxu0
    %2827 = vdwg.mxu0
    %2828 = vmatpush.bf16.msra.mxu0 %v2545
    %2829 = vmatpush.bf16.msra.mxu0 %v2542
    %2830 = vmatpush.bf16.msra.mxu0 %v2539
    %2831 = vmatpush.bf16.msra.mxu0 %v2536
    %2832 = vmatpush.bf16.msra.mxu0 %v2533
    %2833 = vmatpush.bf16.msra.mxu0 %v2530
    %2834 = vmatpush.bf16.msra.mxu0 %v2527
    %2835 = vmatpush.bf16.msra.mxu0 %v2524
    %2836 = vmatmul.bf16.gmra.mxu0 %v1950
    %v2837 = vpop.f32.mrf.mxu0
    %v2838 = vadd.f32 %v2118, %v2837
    %v2839 = vpop.f32.mrf.mxu0
    %2840 = vdwg.mxu0
    %2841 = vmatpush.bf16.msra.mxu0 %v2569
    %2842 = vmatpush.bf16.msra.mxu0 %v2566
    %2843 = vmatpush.bf16.msra.mxu0 %v2563
    %2844 = vmatpush.bf16.msra.mxu0 %v2560
    %2845 = vmatpush.bf16.msra.mxu0 %v2557
    %2846 = vmatpush.bf16.msra.mxu0 %v2554
    %2847 = vmatpush.bf16.msra.mxu0 %v2551
    %2848 = vmatpush.bf16.msra.mxu0 %v2548
    %2849 = vmatmul.bf16.gmra.mxu0 %v1951
    %v2850 = vpop.f32.mrf.mxu0
    %v2851 = vadd.f32 %v2838, %v2850
    %v2852 = vpop.f32.mrf.mxu0
    %2853 = vdwg.mxu0
    %2854 = vmatpush.bf16.msra.mxu0 %v2593
    %2855 = vmatpush.bf16.msra.mxu0 %v2590
    %2856 = vmatpush.bf16.msra.mxu0 %v2587
    %2857 = vmatpush.bf16.msra.mxu0 %v2584
    %2858 = vmatpush.bf16.msra.mxu0 %v2581
    %2859 = vmatpush.bf16.msra.mxu0 %v2578
    %2860 = vmatpush.bf16.msra.mxu0 %v2575
    %2861 = vmatpush.bf16.msra.mxu0 %v2572
    %2862 = vmatmul.bf16.gmra.mxu0 %v1952
    %v2863 = vpop.f32.mrf.mxu0
    %v2864 = vadd.f32 %v2851, %v2863
    %v2865 = vpop.f32.mrf.mxu0
    %2866 = vdwg.mxu0
    %2867 = vmatpush.bf16.msra.mxu0 %v2617
    %2868 = vmatpush.bf16.msra.mxu0 %v2614
    %2869 = vmatpush.bf16.msra.mxu0 %v2611
    %2870 = vmatpush.bf16.msra.mxu0 %v2608
    %2871 = vmatpush.bf16.msra.mxu0 %v2605
    %2872 = vmatpush.bf16.msra.mxu0 %v2602
    %2873 = vmatpush.bf16.msra.mxu0 %v2599
    %2874 = vmatpush.bf16.msra.mxu0 %v2596
    %2875 = vmatmul.bf16.gmra.mxu0 %v1953
    %v2876 = vpop.f32.mrf.mxu0
    %v2877 = vadd.f32 %v2864, %v2876
    %v2878 = vpop.f32.mrf.mxu0
    %2879 = vdwg.mxu0
    %2880 = vmatpush.bf16.msra.mxu0 %v2641
    %2881 = vmatpush.bf16.msra.mxu0 %v2638
    %2882 = vmatpush.bf16.msra.mxu0 %v2635
    %2883 = vmatpush.bf16.msra.mxu0 %v2632
    %2884 = vmatpush.bf16.msra.mxu0 %v2629
    %2885 = vmatpush.bf16.msra.mxu0 %v2626
    %2886 = vmatpush.bf16.msra.mxu0 %v2623
    %2887 = vmatpush.bf16.msra.mxu0 %v2620
    %2888 = vmatmul.bf16.gmra.mxu0 %v1954
    %v2889 = vpop.f32.mrf.mxu0
    %v2890 = vadd.f32 %v2877, %v2889
    %v2891 = vpop.f32.mrf.mxu0
    %2892 = vdwg.mxu0
    %2893 = vmatpush.bf16.msra.mxu0 %v2546
    %2894 = vmatpush.bf16.msra.mxu0 %v2543
    %2895 = vmatpush.bf16.msra.mxu0 %v2540
    %2896 = vmatpush.bf16.msra.mxu0 %v2537
    %2897 = vmatpush.bf16.msra.mxu0 %v2534
    %2898 = vmatpush.bf16.msra.mxu0 %v2531
    %2899 = vmatpush.bf16.msra.mxu0 %v2528
    %2900 = vmatpush.bf16.msra.mxu0 %v2525
    %2901 = vmatmul.bf16.gmra.mxu0 %v1950
    %v2902 = vpop.f32.mrf.mxu0
    %v2903 = vadd.f32 %v2119, %v2902
    %v2904 = vpop.f32.mrf.mxu0
    %2905 = vdwg.mxu0
    %2906 = vmatpush.bf16.msra.mxu0 %v2570
    %2907 = vmatpush.bf16.msra.mxu0 %v2567
    %2908 = vmatpush.bf16.msra.mxu0 %v2564
    %2909 = vmatpush.bf16.msra.mxu0 %v2561
    %2910 = vmatpush.bf16.msra.mxu0 %v2558
    %2911 = vmatpush.bf16.msra.mxu0 %v2555
    %2912 = vmatpush.bf16.msra.mxu0 %v2552
    %2913 = vmatpush.bf16.msra.mxu0 %v2549
    %2914 = vmatmul.bf16.gmra.mxu0 %v1951
    %v2915 = vpop.f32.mrf.mxu0
    %v2916 = vadd.f32 %v2903, %v2915
    %v2917 = vpop.f32.mrf.mxu0
    %2918 = vdwg.mxu0
    %2919 = vmatpush.bf16.msra.mxu0 %v2594
    %2920 = vmatpush.bf16.msra.mxu0 %v2591
    %2921 = vmatpush.bf16.msra.mxu0 %v2588
    %2922 = vmatpush.bf16.msra.mxu0 %v2585
    %2923 = vmatpush.bf16.msra.mxu0 %v2582
    %2924 = vmatpush.bf16.msra.mxu0 %v2579
    %2925 = vmatpush.bf16.msra.mxu0 %v2576
    %2926 = vmatpush.bf16.msra.mxu0 %v2573
    %2927 = vmatmul.bf16.gmra.mxu0 %v1952
    %v2928 = vpop.f32.mrf.mxu0
    %v2929 = vadd.f32 %v2916, %v2928
    %v2930 = vpop.f32.mrf.mxu0
    %2931 = vdwg.mxu0
    %2932 = vmatpush.bf16.msra.mxu0 %v2618
    %2933 = vmatpush.bf16.msra.mxu0 %v2615
    %2934 = vmatpush.bf16.msra.mxu0 %v2612
    %2935 = vmatpush.bf16.msra.mxu0 %v2609
    %2936 = vmatpush.bf16.msra.mxu0 %v2606
    %2937 = vmatpush.bf16.msra.mxu0 %v2603
    %2938 = vmatpush.bf16.msra.mxu0 %v2600
    %2939 = vmatpush.bf16.msra.mxu0 %v2597
    %2940 = vmatmul.bf16.gmra.mxu0 %v1953
    %v2941 = vpop.f32.mrf.mxu0
    %v2942 = vadd.f32 %v2929, %v2941
    %v2943 = vpop.f32.mrf.mxu0
    %2944 = vdwg.mxu0
    %2945 = vmatpush.bf16.msra.mxu0 %v2642
    %2946 = vmatpush.bf16.msra.mxu0 %v2639
    %2947 = vmatpush.bf16.msra.mxu0 %v2636
    %2948 = vmatpush.bf16.msra.mxu0 %v2633
    %2949 = vmatpush.bf16.msra.mxu0 %v2630
    %2950 = vmatpush.bf16.msra.mxu0 %v2627
    %2951 = vmatpush.bf16.msra.mxu0 %v2624
    %2952 = vmatpush.bf16.msra.mxu0 %v2621
    %2953 = vmatmul.bf16.gmra.mxu0 %v1954
    %v2954 = vpop.f32.mrf.mxu0
    %v2955 = vadd.f32 %v2942, %v2954
    %v2956 = vpop.f32.mrf.mxu0
    %2957 = vdwg.mxu0
    %v2958 = vpack.c.bf16 %v2825, %v2825
    %v2959 = vpack.c.bf16 %v2890, %v2890
    %v2960 = vpack.c.bf16 %v2955, %v2955
    %v2961 = vld [vmem:[%s14] sm:$0xf]
    %v2962 = vld [vmem:[%s14 + $0x4] sm:$0xf]
    %v2963 = vld [vmem:[%s14 + $0x8] sm:$0xf]
    %v2964 = vld [vmem:[%s14 + $0xc] sm:$0xf]
    %v2965 = vld [vmem:[%s14 + $0x10] sm:$0xf]
    %v2966 = vld [vmem:[%s14 + $0x14] sm:$0xf]
    %v2967 = vld [vmem:[%s14 + $0x18] sm:$0xf]
    %v2968 = vld [vmem:[%s14 + $0x1c] sm:$0xf]
    %v2969 = vld [vmem:[%s14 + $0x20] sm:$0xf]
    %v2970 = vld [vmem:[%s14 + $0x24] sm:$0xf]
    %v2971 = vld [vmem:[%s14 + $0x28] sm:$0xf]
    %v2972 = vld [vmem:[%s14 + $0x2c] sm:$0xf]
    %v2973 = vld [vmem:[%s14 + $0x30] sm:$0xf]
    %v2974 = vld [vmem:[%s14 + $0x34] sm:$0xf]
    %v2975 = vld [vmem:[%s14 + $0x38] sm:$0xf]
    %v2976 = vld [vmem:[%s14 + $0x3c] sm:$0xf]
    %v2977 = vld [vmem:[%s14 + $0x40] sm:$0xf]
    %v2978 = vld [vmem:[%s14 + $0x44] sm:$0xf]
    %v2979 = vld [vmem:[%s14 + $0x48] sm:$0xf]
    %v2980 = vld [vmem:[%s14 + $0x4c] sm:$0xf]
    %v2981 = vld [vmem:[%s14 + $0x50] sm:$0xf]
    %v2982 = vld [vmem:[%s14 + $0x54] sm:$0xf]
    %v2983 = vld [vmem:[%s14 + $0x58] sm:$0xf]
    %v2984 = vld [vmem:[%s14 + $0x5c] sm:$0xf]
    %v2985 = vld [vmem:[%s14 + $0x60] sm:$0xf]
    %v2986 = vld [vmem:[%s14 + $0x64] sm:$0xf]
    %v2987 = vld [vmem:[%s14 + $0x68] sm:$0xf]
    %v2988 = vld [vmem:[%s14 + $0x6c] sm:$0xf]
    %v2989 = vld [vmem:[%s14 + $0x70] sm:$0xf]
    %v2990 = vld [vmem:[%s14 + $0x74] sm:$0xf]
    %v2991 = vld [vmem:[%s14 + $0x78] sm:$0xf]
    %v2992 = vld [vmem:[%s14 + $0x7c] sm:$0xf]
    %v2993 = vld [vmem:[%s14 + $0x80] sm:$0xf]
    %v2994 = vld [vmem:[%s14 + $0x84] sm:$0xf]
    %v2995 = vld [vmem:[%s14 + $0x88] sm:$0xf]
    %v2996 = vld [vmem:[%s14 + $0x8c] sm:$0xf]
    %v2997 = vld [vmem:[%s14 + $0x90] sm:$0xf]
    %v2998 = vld [vmem:[%s14 + $0x94] sm:$0xf]
    %v2999 = vld [vmem:[%s14 + $0x98] sm:$0xf]
    %v3000 = vld [vmem:[%s14 + $0x9c] sm:$0xf]
    %v3001 = vld [vmem:[%s15] sm:$0x1]
    %v3003 = vperm.slane %v3001, 0
    %v3045 = vunpack.c.l.b16 %v2961
    %v3046 = vunpack.c.l.b16 %v2962
    %v3047 = vunpack.c.l.b16 %v2963
    %v3048 = vunpack.c.l.b16 %v2964
    %v3049 = vunpack.c.l.b16 %v2965
    %v3050 = vunpack.c.l.b16 %v2966
    %v3051 = vunpack.c.l.b16 %v2967
    %v3052 = vunpack.c.l.b16 %v2968
    %v3053 = vunpack.c.l.b16 %v2969
    %v3054 = vunpack.c.l.b16 %v2970
    %v3055 = vunpack.c.l.b16 %v2971
    %v3056 = vunpack.c.l.b16 %v2972
    %v3057 = vunpack.c.l.b16 %v2973
    %v3058 = vunpack.c.l.b16 %v2974
    %v3059 = vunpack.c.l.b16 %v2975
    %v3060 = vunpack.c.l.b16 %v2976
    %v3061 = vunpack.c.l.b16 %v2977
    %v3062 = vunpack.c.l.b16 %v2978
    %v3063 = vunpack.c.l.b16 %v2979
    %v3064 = vunpack.c.l.b16 %v2980
    %v3065 = vunpack.c.l.b16 %v2981
    %v3066 = vunpack.c.l.b16 %v2982
    %v3067 = vunpack.c.l.b16 %v2983
    %v3068 = vunpack.c.l.b16 %v2984
    %v3069 = vunpack.c.l.b16 %v2985
    %v3070 = vunpack.c.l.b16 %v2986
    %v3071 = vunpack.c.l.b16 %v2987
    %v3072 = vunpack.c.l.b16 %v2988
    %v3073 = vunpack.c.l.b16 %v2989
    %v3074 = vunpack.c.l.b16 %v2990
    %v3075 = vunpack.c.l.b16 %v2991
    %v3076 = vunpack.c.l.b16 %v2992
    %v3077 = vunpack.c.l.b16 %v2993
    %v3078 = vunpack.c.l.b16 %v2994
    %v3079 = vunpack.c.l.b16 %v2995
    %v3080 = vunpack.c.l.b16 %v2996
    %v3081 = vunpack.c.l.b16 %v2997
    %v3082 = vunpack.c.l.b16 %v2998
    %v3083 = vunpack.c.l.b16 %v2999
    %v3084 = vunpack.c.l.b16 %v3000
    %v3085 = vpack.c.b16 %v3046, %v3045
    %v3086 = vpack.c.b16 %v3048, %v3047
    %v3087 = vpack.c.b16 %v3050, %v3049
    %v3088 = vpack.c.b16 %v3052, %v3051
    %v3089 = vpack.c.b16 %v3054, %v3053
    %v3090 = vpack.c.b16 %v3056, %v3055
    %v3091 = vpack.c.b16 %v3058, %v3057
    %v3092 = vpack.c.b16 %v3060, %v3059
    %v3093 = vpack.c.b16 %v3062, %v3061
    %v3094 = vpack.c.b16 %v3064, %v3063
    %v3095 = vpack.c.b16 %v3066, %v3065
    %v3096 = vpack.c.b16 %v3068, %v3067
    %v3097 = vpack.c.b16 %v3070, %v3069
    %v3098 = vpack.c.b16 %v3072, %v3071
    %v3099 = vpack.c.b16 %v3074, %v3073
    %v3100 = vpack.c.b16 %v3076, %v3075
    %v3101 = vpack.c.b16 %v3078, %v3077
    %v3102 = vpack.c.b16 %v3080, %v3079
    %v3103 = vpack.c.b16 %v3082, %v3081
    %v3104 = vpack.c.b16 %v3084, %v3083
    %vm3125 = vcmask 523264
    %v3127 = vsel %vm3125, %v2960, 0
    %3129 = vmatpush.bf16.msra.mxu0 %v3092
    %3130 = vmatpush.bf16.msra.mxu0 %v3091
    %3131 = vmatpush.bf16.msra.mxu0 %v3090
    %3132 = vmatpush.bf16.msra.mxu0 %v3089
    %3133 = vmatpush.bf16.msra.mxu0 %v3088
    %3134 = vmatpush.bf16.msra.mxu0 %v3087
    %3135 = vmatpush.bf16.msra.mxu0 %v3086
    %3136 = vmatpush.bf16.msra.mxu0 %v3085
    %3137 = vmatmul.bf16.gmra.mxu0 %v2958
    %v3138 = vpop.f32.mrf.mxu0
    %v3139 = vadd.f32 %v3003, %v3138
    %v3140 = vpop.f32.mrf.mxu0
    %3141 = vdwg.mxu0
    %3142 = vmatpush.bf16.msra.mxu0 %v3100
    %3143 = vmatpush.bf16.msra.mxu0 %v3099
    %3144 = vmatpush.bf16.msra.mxu0 %v3098
    %3145 = vmatpush.bf16.msra.mxu0 %v3097
    %3146 = vmatpush.bf16.msra.mxu0 %v3096
    %3147 = vmatpush.bf16.msra.mxu0 %v3095
    %3148 = vmatpush.bf16.msra.mxu0 %v3094
    %3149 = vmatpush.bf16.msra.mxu0 %v3093
    %3150 = vmatmul.bf16.gmra.mxu0 %v2959
    %v3151 = vpop.f32.mrf.mxu0
    %v3152 = vadd.f32 %v3139, %v3151
    %v3153 = vpop.f32.mrf.mxu0
    %3154 = vdwg.mxu0
    %3155 = vmatpush.bf16.msra.mxu0 0
    %3156 = vmatpush.bf16.msra.mxu0 0
    %3157 = vmatpush.bf16.msra.mxu0 0
    %3158 = vmatpush.bf16.msra.mxu0 0
    %3159 = vmatpush.bf16.msra.mxu0 %v3104
    %3160 = vmatpush.bf16.msra.mxu0 %v3103
    %3161 = vmatpush.bf16.msra.mxu0 %v3102
    %3162 = vmatpush.bf16.msra.mxu0 %v3101
    %3163 = vmatmul.bf16.gmra.mxu0 %v3127
    %v3164 = vpop.f32.mrf.mxu0
    %v3165 = vadd.f32 %v3152, %v3164
    %v3166 = vpop.f32.mrf.mxu0
    %3167 = vdwg.mxu0
    %v3168 = vxor.u32 %v3165, 2147483648
    %v3169 = vmul.f32 %v3168, 1.442695
    %v3170 = vpow.pop %v3169
    %v3171 = vadd.f32 %v3170, 1.0
    %v3172 = vrcp.pop %v3171
    %v3173 = vmul.f32 %v3171, %v3172
    %v3174 = vsub.f32 1.0, %v3173
    %v3175 = vmul.f32 %v3172, %v3174
    %v3176 = vadd.f32 %v3172, %v3175
    %vm3177 = vweird.f32 %v3171
    %vm3178 = vweird.f32 %v3172
    %vm3179 = vmor %vm3177, %vm3178
    %v3180 = vsel %vm3179, %v3172, %v3176
    %v3181 = vand.u32 2147483647, %v3171
    %vm3182 = vcmp.eq.f32.partialorder %v3181, 8.507059e+37
    %v3183 = vand.u32 %v3171, 2147483648
    %v3184 = vor.u32 1.1754944e-38, %v3183
    %v3185 = vsel %vm3182, %v3184, %v3180
    %v3186 = vmul.f32 1.0, %v3185
    %vm3187 = vcmask 35840
    %3188 = vst.msk [vmem:[#allocation3] sm:$0xf] %vm3187, %v3186
    // Predicated region
    $region66: #{escort_forward.1} parent=1 // pred_check
      _
    $region67: #{escort_forward.1} parent=1 // pred_check_branch
      %3190 = sbr.rel (0) target = $region69
    $region68: #{escort_forward.1} parent=1 // pred_region
      %3192 = vsyncadd [#allocation4], 0
      %s3194 = sshll.u32 [#allocation3], 4
      %s3195 = int_to_ptr.vmem [resolvable:$true] %s3194
      %s3196 = sshll.u32 %s16, 4
      %s3197 = int_to_ptr.hbm [resolvable:$true] %s3196
      %3199 = dma.vmem_to_hbm [thread:$0]  %s3195, 64, %s3197, [#allocation4]
    $region69: #{escort_forward.1} parent=1 // pred_fallthru
      _
    // Predicated region
    $region70: #{escort_forward.1} parent=1 // pred_check
      _
    $region71: #{escort_forward.1} parent=1 // pred_check_branch
      %3201 = sbr.rel (0) target = $region73
    $region72: #{escort_forward.1} parent=1 // pred_region
      %3203 = dma.done [#allocation4], 64
    $region73: #{escort_forward.1} parent=1 // pred_fallthru
      _
    %3204 = vsyncpa [#allocation4], 1

</llo_original>
